<compile_context>
chip_gen: v5e
topology: v5e:2x2
jax: 0.10.0
libtpu: 0.0.40
codegen_flags: <defaults>
</compile_context>

<pallas_src>
import math

import jax
import jax.numpy as jnp
from jax import lax
from jax.experimental import pallas as pl
from jax.experimental.pallas import tpu as pltpu


# ----------------------------------------------------------------------------
# Positional embedding (standard sinusoidal: half sin / half cos of scale * v
# over log-spaced frequencies; len() == size).
# ----------------------------------------------------------------------------
def sinusoidal_embedding(v, size, scale):
    half = size // 2
    freqs = jnp.exp(
        -math.log(10000.0) * jnp.arange(half, dtype=jnp.float32) / float(half)
    )
    ang = v.astype(jnp.float32)[..., None] * scale * freqs
    return jnp.concatenate([jnp.sin(ang), jnp.cos(ang)], axis=-1)


# ----------------------------------------------------------------------------
# Pallas kernel: encoder-LSTM -> decoder-LSTM -> batched FC, all in one body.
# ----------------------------------------------------------------------------
def make_seq2seq_kernel(depth, hidden_dim, seq_length, batch_p, output_dim):
    H = hidden_dim
    S = seq_length
    Bp = batch_p
    O = output_dim

    def kernel(*refs):
        idx = 0
        x_ref = refs[idx]; idx += 1                              # (S*Bp, Din) bf16
        enc0_wih_ref = refs[idx]; idx += 1                       # (Din, 4H)  bf16
        enc0_whh_ref = refs[idx]; idx += 1                       # (H, 4H)    bf16
        enc0_b_ref = refs[idx]; idx += 1                         # (1, 4H)    f32
        enc_w_refs = refs[idx: idx + (depth - 1)]; idx += depth - 1   # (2H,4H) bf16
        enc_b_refs = refs[idx: idx + (depth - 1)]; idx += depth - 1   # (1,4H)  f32
        dec_w_refs = refs[idx: idx + depth]; idx += depth              # (2H,4H) bf16
        dec_b_refs = refs[idx: idx + depth]; idx += depth              # (1,4H)  f32
        init_vec_ref = refs[idx]; idx += 1                       # (1, H)  f32
        fcw_ref = refs[idx]; idx += 1                            # (H, O)  f32
        fcb_ref = refs[idx]; idx += 1                            # (1, O)  f32
        out_ref = refs[idx]; idx += 1                            # (S*Bp, O) f32
        xproj_ref = refs[idx]; idx += 1                          # (S*Bp, 4H) f32 scratch
        dec_h_ref = refs[idx]; idx += 1                          # (S*Bp, H)  f32 scratch

        # Weight footprint is a handful of vregs at these sizes -> hoist loads
        # and bias broadcasts out of the time loops (JAX does not CSE
        # broadcast_in_dim inside loops).
        enc0_whh = enc0_whh_ref[...]
        enc_w = [r[...] for r in enc_w_refs]
        enc_bb = [jnp.broadcast_to(r[...], (Bp, 4 * H)) for r in enc_b_refs]
        dec_w = [r[...] for r in dec_w_refs]
        dec_bb = [jnp.broadcast_to(r[...], (Bp, 4 * H)) for r in dec_b_refs]

        # --- Encoder layer-0 input projection for the whole sequence (+bias),
        # one big MXU-friendly matmul off the recurrent critical path.
        xproj_ref[...] = (
            jnp.dot(x_ref[...], enc0_wih_ref[...],
                    preferred_element_type=jnp.float32)
            + jnp.broadcast_to(enc0_b_ref[...], (S * Bp, 4 * H))
        )

        # Gate columns are pre-permuted in the wrapper to (i, f, o, g):
        # one sigmoid on [:, :3H], one tanh on [:, 3H:].
        def gates_to_hc(gates, c):
            sig = jax.nn.sigmoid(gates[:, : 3 * H])
            g = jnp.tanh(gates[:, 3 * H:])
            i = sig[:, :H]
            f = sig[:, H: 2 * H]
            o = sig[:, 2 * H: 3 * H]
            c_new = f * c + i * g
            h_new = o * jnp.tanh(c_new)
            return h_new, c_new

        def fused_cell(x, h, c, w, b_bcast):
            xh = jnp.concatenate([x, h], axis=-1).astype(jnp.bfloat16)
            gates = jnp.dot(xh, w, preferred_element_type=jnp.float32) + b_bcast
            return gates_to_hc(gates, c)

        zeros = jnp.zeros((Bp, H), jnp.float32)
        hs0 = tuple(zeros for _ in range(depth))
        cs0 = tuple(zeros for _ in range(depth))

        # ---------------- Encoder: multi-layer LSTM over the sequence --------
        def enc_step(t, carry):
            hs, cs = carry
            row = pl.multiple_of(t * Bp, Bp)
            # Layer 0: x-projection was precomputed; only h @ W_hh is recurrent.
            gates0 = xproj_ref[pl.ds(row, Bp), :] + jnp.dot(
                hs[0].astype(jnp.bfloat16), enc0_whh,
                preferred_element_type=jnp.float32)
            h, c = gates_to_hc(gates0, cs[0])
            new_hs, new_cs = [h], [c]
            layer_in = h
            for l in range(1, depth):
                h, c = fused_cell(layer_in, hs[l], cs[l],
                                  enc_w[l - 1], enc_bb[l - 1])
                new_hs.append(h)
                new_cs.append(c)
                layer_in = h
            return tuple(new_hs), tuple(new_cs)

        hs, cs = lax.fori_loop(0, S, enc_step, (hs0, cs0), unroll=True)

        # ---------------- Decoder: auto-regressive LSTM ------------------------
        dec_in0 = jnp.broadcast_to(init_vec_ref[...], (Bp, H))

        # TODO(synk): PyTorch teacher forcing (random.random() > 0.5 with a
        # target_tensor) is nondeterministic; only the target_tensor=None path
        # (decoder feeds back its own LSTM output) is implemented.
        def dec_step(t, carry):
            hs_d, cs_d, inp = carry
            layer_in = inp
            new_hs, new_cs = [], []
            for l in range(depth):
                h, c = fused_cell(layer_in, hs_d[l], cs_d[l],
                                  dec_w[l], dec_bb[l])
                new_hs.append(h)
                new_cs.append(c)
                layer_in = h
            row = pl.multiple_of(t * Bp, Bp)
            dec_h_ref[pl.ds(row, Bp), :] = layer_in
            return tuple(new_hs), tuple(new_cs), layer_in

        lax.fori_loop(0, S, dec_step, (hs, cs, dec_in0), unroll=True)

        # ---------------- FC projection: one batched matmul + one store -------
        out_ref[...] = (
            jnp.dot(dec_h_ref[...], fcw_ref[...],
                    preferred_element_type=jnp.float32)
            + jnp.broadcast_to(fcb_ref[...], (S * Bp, O))
        )

    return kernel


# ----------------------------------------------------------------------------
# Wrapper: deterministic parameter init + embedding glue + pallas_call.
# ----------------------------------------------------------------------------
def _permute_gates(w):
    """Reorder last-dim gate columns from PyTorch (i,f,g,o) to (i,f,o,g)."""
    H = w.shape[-1] // 4
    return jnp.concatenate(
        [w[..., : 2 * H], w[..., 3 * H:], w[..., 2 * H: 3 * H]], axis=-1)


class Seq2SeqPallas:
    def __init__(self, depth, size, hidden_dim, output_dim, input_size=2,
                 key=jax.random.PRNGKey(0)):
        assert size % 2 == 0, "sinusoidal embedding size must be even"
        self.depth = depth
        self.size = size
        self.hidden_dim = hidden_dim
        self.output_dim = output_dim
        self.input_size = input_size
        self.input_dim = size * (1 + input_size)   # time emb + per-coord embs

        H = hidden_dim
        k = 1.0 / math.sqrt(H)

        def uni(key, shape):
            return jax.random.uniform(key, shape, jnp.float32, -k, k)

        keys = iter(jax.random.split(key, 8 * depth + 4))

        # ---- Encoder LSTM (input_dim -> H, `depth` layers), PyTorch layout ----
        # Layer 0 kept split (x-projection precomputed in the kernel);
        # layers >= 1 fused into a single (2H, 4H) weight.
        self.enc_fused_w, self.enc_fused_b = [], []
        for l in range(depth):
            in_dim = self.input_dim if l == 0 else H
            w_ih = uni(next(keys), (4 * H, in_dim))
            w_hh = uni(next(keys), (4 * H, H))
            b_ih = uni(next(keys), (4 * H,))
            b_hh = uni(next(keys), (4 * H,))
            b = _permute_gates((b_ih + b_hh).reshape(1, 4 * H))
            if l == 0:
                self.enc0_wih = _permute_gates(jnp.transpose(w_ih)).astype(jnp.bfloat16)
                self.enc0_whh = _permute_gates(jnp.transpose(w_hh)).astype(jnp.bfloat16)
                self.enc0_b = b
            else:
                w_fused = jnp.concatenate(
                    [jnp.transpose(w_ih), jnp.transpose(w_hh)], axis=0)
                self.enc_fused_w.append(_permute_gates(w_fused).astype(jnp.bfloat16))
                self.enc_fused_b.append(b)

        # ---- Decoder LSTM (H -> H, `depth` layers), fully fused ----
        self.dec_fused_w, self.dec_fused_b = [], []
        for l in range(depth):
            w_ih = uni(next(keys), (4 * H, H))
            w_hh = uni(next(keys), (4 * H, H))
            b_ih = uni(next(keys), (4 * H,))
            b_hh = uni(next(keys), (4 * H,))
            w_fused = jnp.concatenate(
                [jnp.transpose(w_ih), jnp.transpose(w_hh)], axis=0)
            self.dec_fused_w.append(_permute_gates(w_fused).astype(jnp.bfloat16))
            self.dec_fused_b.append(
                _permute_gates((b_ih + b_hh).reshape(1, 4 * H)))

        # Decoder learned initial vector (torch.randn(1, 1, H)) and FC layer.
        self.init_vec = jax.random.normal(next(keys), (1, H), jnp.float32)
        kf = 1.0 / math.sqrt(H)
        self.fc_w_t = jax.random.uniform(next(keys), (H, output_dim),
                                         jnp.float32, -kf, kf)
        self.fc_b = jax.random.uniform(next(keys), (1, output_dim),
                                       jnp.float32, -kf, kf)

    def __call__(self, X, Timestamps, target_tensor=None):
        if X.ndim == 2:
            X = X[None]
        B, S, _ = X.shape
        H, O = self.hidden_dim, self.output_dim

        # --- embedding glue (plain JAX) ---
        time_emb = sinusoidal_embedding(Timestamps, self.size, 1.0)   # (B, size)
        time_emb = jnp.broadcast_to(time_emb[:, None, :], (B, S, self.size))
        parts = [time_emb]
        for d in range(self.input_size):
            parts.append(sinusoidal_embedding(X[:, :, d], self.size, 25.0))
        x_emb = jnp.concatenate(parts, axis=-1).astype(jnp.float32)   # (B,S,Din)

        # Pad batch to a multiple of 8 (f32 sublane tile); flatten time-major.
        Bp = -(-B // 8) * 8
        x_pad = jnp.pad(x_emb, ((0, Bp - B), (0, 0), (0, 0)))
        x_flat = jnp.transpose(x_pad, (1, 0, 2)).reshape(S * Bp, self.input_dim)
        x_flat = x_flat.astype(jnp.bfloat16)

        kernel = make_seq2seq_kernel(self.depth, H, S, Bp, O)

        inputs = (
            [x_flat, self.enc0_wih, self.enc0_whh, self.enc0_b]
            + self.enc_fused_w + self.enc_fused_b
            + self.dec_fused_w + self.dec_fused_b
            + [self.init_vec, self.fc_w_t, self.fc_b]
        )
        vmem = pl.BlockSpec(memory_space=pltpu.MemorySpace.VMEM)

        # TODO(synk): for large H/S/B stream x/out from HBM (pl.ANY + manual
        # DMA) and add a batch-parallel grid for v7x's two TensorCores; at
        # these sizes full VMEM residency on one core is fastest.
        out_flat = pl.pallas_call(
            kernel,
            out_shape=jax.ShapeDtypeStruct((S * Bp, O), jnp.float32),
            in_specs=[vmem] * len(inputs),
            out_specs=vmem,
            scratch_shapes=[
                pltpu.VMEM((S * Bp, 4 * H), jnp.float32),   # encoder l0 x-proj
                pltpu.VMEM((S * Bp, H), jnp.float32),       # decoder top-layer h
            ],
        )(*inputs)

        out = out_flat.reshape(S, Bp, O)[:, :B, :]
        return jnp.transpose(out, (1, 0, 2))   # (B, S, output_dim)


if __name__ == "__main__":
    root = jax.random.PRNGKey(0)
    k_param, k_x, k_t = jax.random.split(root, 3)

    depth, size, hidden_dim, output_dim = 2, 16, 32, 2
    batch, seq, input_size = 2, 8, 2

    model = Seq2SeqPallas(depth, size, hidden_dim, output_dim,
                          input_size=input_size, key=k_param)

    X = jax.random.normal(k_x, (batch, seq, input_size), jnp.float32)
    Timestamps = jax.random.uniform(k_t, (batch,), jnp.float32)

    out = model(X, Timestamps)
    out = jax.block_until_ready(out)

    assert out.shape == (batch, seq, output_dim), out.shape
    assert bool(jnp.all(jnp.isfinite(out)))
    print("KERNEL_OK")
</pallas_src>

<mosaic_0001>
module attributes {stable_mosaic.version = 11 : i64} {
  func.func @kernel(%arg0: memref<64x48xbf16, #tpu.memory_space<vmem>>, %arg1: memref<48x128xbf16, #tpu.memory_space<vmem>>, %arg2: memref<32x128xbf16, #tpu.memory_space<vmem>>, %arg3: memref<1x128xf32, #tpu.memory_space<vmem>>, %arg4: memref<64x128xbf16, #tpu.memory_space<vmem>>, %arg5: memref<1x128xf32, #tpu.memory_space<vmem>>, %arg6: memref<64x128xbf16, #tpu.memory_space<vmem>>, %arg7: memref<64x128xbf16, #tpu.memory_space<vmem>>, %arg8: memref<1x128xf32, #tpu.memory_space<vmem>>, %arg9: memref<1x128xf32, #tpu.memory_space<vmem>>, %arg10: memref<1x32xf32, #tpu.memory_space<vmem>>, %arg11: memref<32x2xf32, #tpu.memory_space<vmem>>, %arg12: memref<1x2xf32, #tpu.memory_space<vmem>>, %arg13: memref<64x2xf32, #tpu.memory_space<vmem>>, %arg14: memref<64x128xf32, #tpu.memory_space<vmem>>, %arg15: memref<64x32xf32, #tpu.memory_space<vmem>>) attributes {dimension_semantics = [], scalar_prefetch = 0 : i64, scratch_operands = 2 : i64, tpu.core_type = #tpu.core_type<tc>} {
    %c0 = arith.constant 0 : index
    %c0_0 = arith.constant 0 : index
    %0 = vector.load %arg2[%c0, %c0_0] : memref<32x128xbf16, #tpu.memory_space<vmem>>, vector<32x128xbf16>
    %c0_1 = arith.constant 0 : index
    %c0_2 = arith.constant 0 : index
    %1 = vector.load %arg4[%c0_1, %c0_2] : memref<64x128xbf16, #tpu.memory_space<vmem>>, vector<64x128xbf16>
    %c0_3 = arith.constant 0 : index
    %c0_4 = arith.constant 0 : index
    %2 = vector.load %arg5[%c0_3, %c0_4] : memref<1x128xf32, #tpu.memory_space<vmem>>, vector<1x128xf32>
    %3 = vector.shape_cast %2 : vector<1x128xf32> to vector<1x128xf32>
    %4 = vector.broadcast %3 : vector<1x128xf32> to vector<8x128xf32>
    %c0_5 = arith.constant 0 : index
    %c0_6 = arith.constant 0 : index
    %5 = vector.load %arg6[%c0_5, %c0_6] : memref<64x128xbf16, #tpu.memory_space<vmem>>, vector<64x128xbf16>
    %c0_7 = arith.constant 0 : index
    %c0_8 = arith.constant 0 : index
    %6 = vector.load %arg7[%c0_7, %c0_8] : memref<64x128xbf16, #tpu.memory_space<vmem>>, vector<64x128xbf16>
    %c0_9 = arith.constant 0 : index
    %c0_10 = arith.constant 0 : index
    %7 = vector.load %arg8[%c0_9, %c0_10] : memref<1x128xf32, #tpu.memory_space<vmem>>, vector<1x128xf32>
    %8 = vector.shape_cast %7 : vector<1x128xf32> to vector<1x128xf32>
    %9 = vector.broadcast %8 : vector<1x128xf32> to vector<8x128xf32>
    %c0_11 = arith.constant 0 : index
    %c0_12 = arith.constant 0 : index
    %10 = vector.load %arg9[%c0_11, %c0_12] : memref<1x128xf32, #tpu.memory_space<vmem>>, vector<1x128xf32>
    %11 = vector.shape_cast %10 : vector<1x128xf32> to vector<1x128xf32>
    %12 = vector.broadcast %11 : vector<1x128xf32> to vector<8x128xf32>
    %c0_13 = arith.constant 0 : index
    %c0_14 = arith.constant 0 : index
    %13 = vector.load %arg0[%c0_13, %c0_14] : memref<64x48xbf16, #tpu.memory_space<vmem>>, vector<64x48xbf16>
    %c0_15 = arith.constant 0 : index
    %c0_16 = arith.constant 0 : index
    %14 = vector.load %arg1[%c0_15, %c0_16] : memref<48x128xbf16, #tpu.memory_space<vmem>>, vector<48x128xbf16>
    %cst = arith.constant dense<0.000000e+00> : vector<64x128xf32>
    %15 = tpu.matmul %13, %14, %cst {dimension_numbers = #tpu.dot_dimension_numbers<[1], [0], [0], [1], [0, 0, 1, 1], [], []>} : vector<64x48xbf16>, vector<48x128xbf16>, vector<64x128xf32> -> vector<64x128xf32>
    %c0_17 = arith.constant 0 : index
    %c0_18 = arith.constant 0 : index
    %16 = vector.load %arg3[%c0_17, %c0_18] : memref<1x128xf32, #tpu.memory_space<vmem>>, vector<1x128xf32>
    %17 = vector.shape_cast %16 : vector<1x128xf32> to vector<1x128xf32>
    %18 = vector.broadcast %17 : vector<1x128xf32> to vector<64x128xf32>
    %19 = arith.addf %15, %18 : vector<64x128xf32>
    %c0_19 = arith.constant 0 : index
    %c0_20 = arith.constant 0 : index
    %20 = vector.load %arg14[%c0_19, %c0_20] : memref<64x128xf32, #tpu.memory_space<vmem>>, vector<64x128xf32>
    tpu.vector_store %arg14[%c0_19, %c0_20], %19 {strides = array<i32>} : memref<64x128xf32, #tpu.memory_space<vmem>>, vector<64x128xf32>,
    %cst_21 = arith.constant 0.000000e+00 : f32
    %21 = vector.broadcast %cst_21 : f32 to vector<8x32xf32>
    %c0_i32 = arith.constant 0 : i32
    %c8_i32 = arith.constant 8 : i32
    %22 = arith.muli %c0_i32, %c8_i32 : i32
    %23 = tpu.assume_multiple %22, 8 : i32
    %24 = arith.index_cast %23 : i32 to index
    %c0_22 = arith.constant 0 : index
    %25 = vector.load %arg14[%24, %c0_22] : memref<64x128xf32, #tpu.memory_space<vmem>>, vector<8x128xf32>
    %26 = arith.truncf %21 : vector<8x32xf32> to vector<8x32xbf16>
    %cst_23 = arith.constant dense<0.000000e+00> : vector<8x128xf32>
    %27 = tpu.matmul %26, %0, %cst_23 {dimension_numbers = #tpu.dot_dimension_numbers<[1], [0], [0], [1], [0, 0, 1, 1], [], []>} : vector<8x32xbf16>, vector<32x128xbf16>, vector<8x128xf32> -> vector<8x128xf32>
    %28 = arith.addf %25, %27 : vector<8x128xf32>
    %29 = vector.extract_strided_slice %28 {offsets = [0, 0], sizes = [8, 96], strides = [1, 1]} : vector<8x128xf32> to vector<8x96xf32>
    %30 = arith.negf %29 : vector<8x96xf32>
    %31 = math.exp %30 : vector<8x96xf32>
    %cst_24 = arith.constant 1.000000e+00 : f32
    %32 = vector.broadcast %cst_24 : f32 to vector<8x96xf32>
    %33 = arith.addf %32, %31 : vector<8x96xf32>
    %34 = arith.divf %32, %33 : vector<8x96xf32>
    %35 = vector.extract_strided_slice %28 {offsets = [0, 96], sizes = [8, 32], strides = [1, 1]} : vector<8x128xf32> to vector<8x32xf32>
    %36 = math.tanh %35 : vector<8x32xf32>
    %37 = vector.extract_strided_slice %34 {offsets = [0, 0], sizes = [8, 32], strides = [1, 1]} : vector<8x96xf32> to vector<8x32xf32>
    %38 = vector.extract_strided_slice %34 {offsets = [0, 32], sizes = [8, 32], strides = [1, 1]} : vector<8x96xf32> to vector<8x32xf32>
    %39 = vector.extract_strided_slice %34 {offsets = [0, 64], sizes = [8, 32], strides = [1, 1]} : vector<8x96xf32> to vector<8x32xf32>
    %40 = arith.mulf %38, %21 : vector<8x32xf32>
    %41 = arith.mulf %37, %36 : vector<8x32xf32>
    %42 = arith.addf %40, %41 : vector<8x32xf32>
    %43 = math.tanh %42 : vector<8x32xf32>
    %44 = arith.mulf %39, %43 : vector<8x32xf32>
    %45 = tpu.concatenate %44, %21 in 1 : vector<8x32xf32>, vector<8x32xf32> -> vector<8x64xf32>
    %46 = arith.truncf %45 : vector<8x64xf32> to vector<8x64xbf16>
    %cst_25 = arith.constant dense<0.000000e+00> : vector<8x128xf32>
    %47 = tpu.matmul %46, %1, %cst_25 {dimension_numbers = #tpu.dot_dimension_numbers<[1], [0], [0], [1], [0, 0, 1, 1], [], []>} : vector<8x64xbf16>, vector<64x128xbf16>, vector<8x128xf32> -> vector<8x128xf32>
    %48 = arith.addf %47, %4 : vector<8x128xf32>
    %49 = vector.extract_strided_slice %48 {offsets = [0, 0], sizes = [8, 96], strides = [1, 1]} : vector<8x128xf32> to vector<8x96xf32>
    %50 = arith.negf %49 : vector<8x96xf32>
    %51 = math.exp %50 : vector<8x96xf32>
    %cst_26 = arith.constant 1.000000e+00 : f32
    %52 = vector.broadcast %cst_26 : f32 to vector<8x96xf32>
    %53 = arith.addf %52, %51 : vector<8x96xf32>
    %54 = arith.divf %52, %53 : vector<8x96xf32>
    %55 = vector.extract_strided_slice %48 {offsets = [0, 96], sizes = [8, 32], strides = [1, 1]} : vector<8x128xf32> to vector<8x32xf32>
    %56 = math.tanh %55 : vector<8x32xf32>
    %57 = vector.extract_strided_slice %54 {offsets = [0, 0], sizes = [8, 32], strides = [1, 1]} : vector<8x96xf32> to vector<8x32xf32>
    %58 = vector.extract_strided_slice %54 {offsets = [0, 32], sizes = [8, 32], strides = [1, 1]} : vector<8x96xf32> to vector<8x32xf32>
    %59 = vector.extract_strided_slice %54 {offsets = [0, 64], sizes = [8, 32], strides = [1, 1]} : vector<8x96xf32> to vector<8x32xf32>
    %60 = arith.mulf %58, %21 : vector<8x32xf32>
    %61 = arith.mulf %57, %56 : vector<8x32xf32>
    %62 = arith.addf %60, %61 : vector<8x32xf32>
    %63 = math.tanh %62 : vector<8x32xf32>
    %64 = arith.mulf %59, %63 : vector<8x32xf32>
    %c1_i32 = arith.constant 1 : i32
    %c8_i32_27 = arith.constant 8 : i32
    %65 = arith.muli %c1_i32, %c8_i32_27 : i32
    %66 = tpu.assume_multiple %65, 8 : i32
    %67 = arith.index_cast %66 : i32 to index
    %c0_28 = arith.constant 0 : index
    %68 = vector.load %arg14[%67, %c0_28] : memref<64x128xf32, #tpu.memory_space<vmem>>, vector<8x128xf32>
    %69 = arith.truncf %44 : vector<8x32xf32> to vector<8x32xbf16>
    %cst_29 = arith.constant dense<0.000000e+00> : vector<8x128xf32>
    %70 = tpu.matmul %69, %0, %cst_29 {dimension_numbers = #tpu.dot_dimension_numbers<[1], [0], [0], [1], [0, 0, 1, 1], [], []>} : vector<8x32xbf16>, vector<32x128xbf16>, vector<8x128xf32> -> vector<8x128xf32>
    %71 = arith.addf %68, %70 : vector<8x128xf32>
    %72 = vector.extract_strided_slice %71 {offsets = [0, 0], sizes = [8, 96], strides = [1, 1]} : vector<8x128xf32> to vector<8x96xf32>
    %73 = arith.negf %72 : vector<8x96xf32>
    %74 = math.exp %73 : vector<8x96xf32>
    %cst_30 = arith.constant 1.000000e+00 : f32
    %75 = vector.broadcast %cst_30 : f32 to vector<8x96xf32>
    %76 = arith.addf %75, %74 : vector<8x96xf32>
    %77 = arith.divf %75, %76 : vector<8x96xf32>
    %78 = vector.extract_strided_slice %71 {offsets = [0, 96], sizes = [8, 32], strides = [1, 1]} : vector<8x128xf32> to vector<8x32xf32>
    %79 = math.tanh %78 : vector<8x32xf32>
    %80 = vector.extract_strided_slice %77 {offsets = [0, 0], sizes = [8, 32], strides = [1, 1]} : vector<8x96xf32> to vector<8x32xf32>
    %81 = vector.extract_strided_slice %77 {offsets = [0, 32], sizes = [8, 32], strides = [1, 1]} : vector<8x96xf32> to vector<8x32xf32>
    %82 = vector.extract_strided_slice %77 {offsets = [0, 64], sizes = [8, 32], strides = [1, 1]} : vector<8x96xf32> to vector<8x32xf32>
    %83 = arith.mulf %81, %42 : vector<8x32xf32>
    %84 = arith.mulf %80, %79 : vector<8x32xf32>
    %85 = arith.addf %83, %84 : vector<8x32xf32>
    %86 = math.tanh %85 : vector<8x32xf32>
    %87 = arith.mulf %82, %86 : vector<8x32xf32>
    %88 = tpu.concatenate %87, %64 in 1 : vector<8x32xf32>, vector<8x32xf32> -> vector<8x64xf32>
    %89 = arith.truncf %88 : vector<8x64xf32> to vector<8x64xbf16>
    %cst_31 = arith.constant dense<0.000000e+00> : vector<8x128xf32>
    %90 = tpu.matmul %89, %1, %cst_31 {dimension_numbers = #tpu.dot_dimension_numbers<[1], [0], [0], [1], [0, 0, 1, 1], [], []>} : vector<8x64xbf16>, vector<64x128xbf16>, vector<8x128xf32> -> vector<8x128xf32>
    %91 = arith.addf %90, %4 : vector<8x128xf32>
    %92 = vector.extract_strided_slice %91 {offsets = [0, 0], sizes = [8, 96], strides = [1, 1]} : vector<8x128xf32> to vector<8x96xf32>
    %93 = arith.negf %92 : vector<8x96xf32>
    %94 = math.exp %93 : vector<8x96xf32>
    %cst_32 = arith.constant 1.000000e+00 : f32
    %95 = vector.broadcast %cst_32 : f32 to vector<8x96xf32>
    %96 = arith.addf %95, %94 : vector<8x96xf32>
    %97 = arith.divf %95, %96 : vector<8x96xf32>
    %98 = vector.extract_strided_slice %91 {offsets = [0, 96], sizes = [8, 32], strides = [1, 1]} : vector<8x128xf32> to vector<8x32xf32>
    %99 = math.tanh %98 : vector<8x32xf32>
    %100 = vector.extract_strided_slice %97 {offsets = [0, 0], sizes = [8, 32], strides = [1, 1]} : vector<8x96xf32> to vector<8x32xf32>
    %101 = vector.extract_strided_slice %97 {offsets = [0, 32], sizes = [8, 32], strides = [1, 1]} : vector<8x96xf32> to vector<8x32xf32>
    %102 = vector.extract_strided_slice %97 {offsets = [0, 64], sizes = [8, 32], strides = [1, 1]} : vector<8x96xf32> to vector<8x32xf32>
    %103 = arith.mulf %101, %62 : vector<8x32xf32>
    %104 = arith.mulf %100, %99 : vector<8x32xf32>
    %105 = arith.addf %103, %104 : vector<8x32xf32>
    %106 = math.tanh %105 : vector<8x32xf32>
    %107 = arith.mulf %102, %106 : vector<8x32xf32>
    %c2_i32 = arith.constant 2 : i32
    %c8_i32_33 = arith.constant 8 : i32
    %108 = arith.muli %c2_i32, %c8_i32_33 : i32
    %109 = tpu.assume_multiple %108, 8 : i32
    %110 = arith.index_cast %109 : i32 to index
    %c0_34 = arith.constant 0 : index
    %111 = vector.load %arg14[%110, %c0_34] : memref<64x128xf32, #tpu.memory_space<vmem>>, vector<8x128xf32>
    %112 = arith.truncf %87 : vector<8x32xf32> to vector<8x32xbf16>
    %cst_35 = arith.constant dense<0.000000e+00> : vector<8x128xf32>
    %113 = tpu.matmul %112, %0, %cst_35 {dimension_numbers = #tpu.dot_dimension_numbers<[1], [0], [0], [1], [0, 0, 1, 1], [], []>} : vector<8x32xbf16>, vector<32x128xbf16>, vector<8x128xf32> -> vector<8x128xf32>
    %114 = arith.addf %111, %113 : vector<8x128xf32>
    %115 = vector.extract_strided_slice %114 {offsets = [0, 0], sizes = [8, 96], strides = [1, 1]} : vector<8x128xf32> to vector<8x96xf32>
    %116 = arith.negf %115 : vector<8x96xf32>
    %117 = math.exp %116 : vector<8x96xf32>
    %cst_36 = arith.constant 1.000000e+00 : f32
    %118 = vector.broadcast %cst_36 : f32 to vector<8x96xf32>
    %119 = arith.addf %118, %117 : vector<8x96xf32>
    %120 = arith.divf %118, %119 : vector<8x96xf32>
    %121 = vector.extract_strided_slice %114 {offsets = [0, 96], sizes = [8, 32], strides = [1, 1]} : vector<8x128xf32> to vector<8x32xf32>
    %122 = math.tanh %121 : vector<8x32xf32>
    %123 = vector.extract_strided_slice %120 {offsets = [0, 0], sizes = [8, 32], strides = [1, 1]} : vector<8x96xf32> to vector<8x32xf32>
    %124 = vector.extract_strided_slice %120 {offsets = [0, 32], sizes = [8, 32], strides = [1, 1]} : vector<8x96xf32> to vector<8x32xf32>
    %125 = vector.extract_strided_slice %120 {offsets = [0, 64], sizes = [8, 32], strides = [1, 1]} : vector<8x96xf32> to vector<8x32xf32>
    %126 = arith.mulf %124, %85 : vector<8x32xf32>
    %127 = arith.mulf %123, %122 : vector<8x32xf32>
    %128 = arith.addf %126, %127 : vector<8x32xf32>
    %129 = math.tanh %128 : vector<8x32xf32>
    %130 = arith.mulf %125, %129 : vector<8x32xf32>
    %131 = tpu.concatenate %130, %107 in 1 : vector<8x32xf32>, vector<8x32xf32> -> vector<8x64xf32>
    %132 = arith.truncf %131 : vector<8x64xf32> to vector<8x64xbf16>
    %cst_37 = arith.constant dense<0.000000e+00> : vector<8x128xf32>
    %133 = tpu.matmul %132, %1, %cst_37 {dimension_numbers = #tpu.dot_dimension_numbers<[1], [0], [0], [1], [0, 0, 1, 1], [], []>} : vector<8x64xbf16>, vector<64x128xbf16>, vector<8x128xf32> -> vector<8x128xf32>
    %134 = arith.addf %133, %4 : vector<8x128xf32>
    %135 = vector.extract_strided_slice %134 {offsets = [0, 0], sizes = [8, 96], strides = [1, 1]} : vector<8x128xf32> to vector<8x96xf32>
    %136 = arith.negf %135 : vector<8x96xf32>
    %137 = math.exp %136 : vector<8x96xf32>
    %cst_38 = arith.constant 1.000000e+00 : f32
    %138 = vector.broadcast %cst_38 : f32 to vector<8x96xf32>
    %139 = arith.addf %138, %137 : vector<8x96xf32>
    %140 = arith.divf %138, %139 : vector<8x96xf32>
    %141 = vector.extract_strided_slice %134 {offsets = [0, 96], sizes = [8, 32], strides = [1, 1]} : vector<8x128xf32> to vector<8x32xf32>
    %142 = math.tanh %141 : vector<8x32xf32>
    %143 = vector.extract_strided_slice %140 {offsets = [0, 0], sizes = [8, 32], strides = [1, 1]} : vector<8x96xf32> to vector<8x32xf32>
    %144 = vector.extract_strided_slice %140 {offsets = [0, 32], sizes = [8, 32], strides = [1, 1]} : vector<8x96xf32> to vector<8x32xf32>
    %145 = vector.extract_strided_slice %140 {offsets = [0, 64], sizes = [8, 32], strides = [1, 1]} : vector<8x96xf32> to vector<8x32xf32>
    %146 = arith.mulf %144, %105 : vector<8x32xf32>
    %147 = arith.mulf %143, %142 : vector<8x32xf32>
    %148 = arith.addf %146, %147 : vector<8x32xf32>
    %149 = math.tanh %148 : vector<8x32xf32>
    %150 = arith.mulf %145, %149 : vector<8x32xf32>
    %c3_i32 = arith.constant 3 : i32
    %c8_i32_39 = arith.constant 8 : i32
    %151 = arith.muli %c3_i32, %c8_i32_39 : i32
    %152 = tpu.assume_multiple %151, 8 : i32
    %153 = arith.index_cast %152 : i32 to index
    %c0_40 = arith.constant 0 : index
    %154 = vector.load %arg14[%153, %c0_40] : memref<64x128xf32, #tpu.memory_space<vmem>>, vector<8x128xf32>
    %155 = arith.truncf %130 : vector<8x32xf32> to vector<8x32xbf16>
    %cst_41 = arith.constant dense<0.000000e+00> : vector<8x128xf32>
    %156 = tpu.matmul %155, %0, %cst_41 {dimension_numbers = #tpu.dot_dimension_numbers<[1], [0], [0], [1], [0, 0, 1, 1], [], []>} : vector<8x32xbf16>, vector<32x128xbf16>, vector<8x128xf32> -> vector<8x128xf32>
    %157 = arith.addf %154, %156 : vector<8x128xf32>
    %158 = vector.extract_strided_slice %157 {offsets = [0, 0], sizes = [8, 96], strides = [1, 1]} : vector<8x128xf32> to vector<8x96xf32>
    %159 = arith.negf %158 : vector<8x96xf32>
    %160 = math.exp %159 : vector<8x96xf32>
    %cst_42 = arith.constant 1.000000e+00 : f32
    %161 = vector.broadcast %cst_42 : f32 to vector<8x96xf32>
    %162 = arith.addf %161, %160 : vector<8x96xf32>
    %163 = arith.divf %161, %162 : vector<8x96xf32>
    %164 = vector.extract_strided_slice %157 {offsets = [0, 96], sizes = [8, 32], strides = [1, 1]} : vector<8x128xf32> to vector<8x32xf32>
    %165 = math.tanh %164 : vector<8x32xf32>
    %166 = vector.extract_strided_slice %163 {offsets = [0, 0], sizes = [8, 32], strides = [1, 1]} : vector<8x96xf32> to vector<8x32xf32>
    %167 = vector.extract_strided_slice %163 {offsets = [0, 32], sizes = [8, 32], strides = [1, 1]} : vector<8x96xf32> to vector<8x32xf32>
    %168 = vector.extract_strided_slice %163 {offsets = [0, 64], sizes = [8, 32], strides = [1, 1]} : vector<8x96xf32> to vector<8x32xf32>
    %169 = arith.mulf %167, %128 : vector<8x32xf32>
    %170 = arith.mulf %166, %165 : vector<8x32xf32>
    %171 = arith.addf %169, %170 : vector<8x32xf32>
    %172 = math.tanh %171 : vector<8x32xf32>
    %173 = arith.mulf %168, %172 : vector<8x32xf32>
    %174 = tpu.concatenate %173, %150 in 1 : vector<8x32xf32>, vector<8x32xf32> -> vector<8x64xf32>
    %175 = arith.truncf %174 : vector<8x64xf32> to vector<8x64xbf16>
    %cst_43 = arith.constant dense<0.000000e+00> : vector<8x128xf32>
    %176 = tpu.matmul %175, %1, %cst_43 {dimension_numbers = #tpu.dot_dimension_numbers<[1], [0], [0], [1], [0, 0, 1, 1], [], []>} : vector<8x64xbf16>, vector<64x128xbf16>, vector<8x128xf32> -> vector<8x128xf32>
    %177 = arith.addf %176, %4 : vector<8x128xf32>
    %178 = vector.extract_strided_slice %177 {offsets = [0, 0], sizes = [8, 96], strides = [1, 1]} : vector<8x128xf32> to vector<8x96xf32>
    %179 = arith.negf %178 : vector<8x96xf32>
    %180 = math.exp %179 : vector<8x96xf32>
    %cst_44 = arith.constant 1.000000e+00 : f32
    %181 = vector.broadcast %cst_44 : f32 to vector<8x96xf32>
    %182 = arith.addf %181, %180 : vector<8x96xf32>
    %183 = arith.divf %181, %182 : vector<8x96xf32>
    %184 = vector.extract_strided_slice %177 {offsets = [0, 96], sizes = [8, 32], strides = [1, 1]} : vector<8x128xf32> to vector<8x32xf32>
    %185 = math.tanh %184 : vector<8x32xf32>
    %186 = vector.extract_strided_slice %183 {offsets = [0, 0], sizes = [8, 32], strides = [1, 1]} : vector<8x96xf32> to vector<8x32xf32>
    %187 = vector.extract_strided_slice %183 {offsets = [0, 32], sizes = [8, 32], strides = [1, 1]} : vector<8x96xf32> to vector<8x32xf32>
    %188 = vector.extract_strided_slice %183 {offsets = [0, 64], sizes = [8, 32], strides = [1, 1]} : vector<8x96xf32> to vector<8x32xf32>
    %189 = arith.mulf %187, %148 : vector<8x32xf32>
    %190 = arith.mulf %186, %185 : vector<8x32xf32>
    %191 = arith.addf %189, %190 : vector<8x32xf32>
    %192 = math.tanh %191 : vector<8x32xf32>
    %193 = arith.mulf %188, %192 : vector<8x32xf32>
    %c4_i32 = arith.constant 4 : i32
    %c8_i32_45 = arith.constant 8 : i32
    %194 = arith.muli %c4_i32, %c8_i32_45 : i32
    %195 = tpu.assume_multiple %194, 8 : i32
    %196 = arith.index_cast %195 : i32 to index
    %c0_46 = arith.constant 0 : index
    %197 = vector.load %arg14[%196, %c0_46] : memref<64x128xf32, #tpu.memory_space<vmem>>, vector<8x128xf32>
    %198 = arith.truncf %173 : vector<8x32xf32> to vector<8x32xbf16>
    %cst_47 = arith.constant dense<0.000000e+00> : vector<8x128xf32>
    %199 = tpu.matmul %198, %0, %cst_47 {dimension_numbers = #tpu.dot_dimension_numbers<[1], [0], [0], [1], [0, 0, 1, 1], [], []>} : vector<8x32xbf16>, vector<32x128xbf16>, vector<8x128xf32> -> vector<8x128xf32>
    %200 = arith.addf %197, %199 : vector<8x128xf32>
    %201 = vector.extract_strided_slice %200 {offsets = [0, 0], sizes = [8, 96], strides = [1, 1]} : vector<8x128xf32> to vector<8x96xf32>
    %202 = arith.negf %201 : vector<8x96xf32>
    %203 = math.exp %202 : vector<8x96xf32>
    %cst_48 = arith.constant 1.000000e+00 : f32
    %204 = vector.broadcast %cst_48 : f32 to vector<8x96xf32>
    %205 = arith.addf %204, %203 : vector<8x96xf32>
    %206 = arith.divf %204, %205 : vector<8x96xf32>
    %207 = vector.extract_strided_slice %200 {offsets = [0, 96], sizes = [8, 32], strides = [1, 1]} : vector<8x128xf32> to vector<8x32xf32>
    %208 = math.tanh %207 : vector<8x32xf32>
    %209 = vector.extract_strided_slice %206 {offsets = [0, 0], sizes = [8, 32], strides = [1, 1]} : vector<8x96xf32> to vector<8x32xf32>
    %210 = vector.extract_strided_slice %206 {offsets = [0, 32], sizes = [8, 32], strides = [1, 1]} : vector<8x96xf32> to vector<8x32xf32>
    %211 = vector.extract_strided_slice %206 {offsets = [0, 64], sizes = [8, 32], strides = [1, 1]} : vector<8x96xf32> to vector<8x32xf32>
    %212 = arith.mulf %210, %171 : vector<8x32xf32>
    %213 = arith.mulf %209, %208 : vector<8x32xf32>
    %214 = arith.addf %212, %213 : vector<8x32xf32>
    %215 = math.tanh %214 : vector<8x32xf32>
    %216 = arith.mulf %211, %215 : vector<8x32xf32>
    %217 = tpu.concatenate %216, %193 in 1 : vector<8x32xf32>, vector<8x32xf32> -> vector<8x64xf32>
    %218 = arith.truncf %217 : vector<8x64xf32> to vector<8x64xbf16>
    %cst_49 = arith.constant dense<0.000000e+00> : vector<8x128xf32>
    %219 = tpu.matmul %218, %1, %cst_49 {dimension_numbers = #tpu.dot_dimension_numbers<[1], [0], [0], [1], [0, 0, 1, 1], [], []>} : vector<8x64xbf16>, vector<64x128xbf16>, vector<8x128xf32> -> vector<8x128xf32>
    %220 = arith.addf %219, %4 : vector<8x128xf32>
    %221 = vector.extract_strided_slice %220 {offsets = [0, 0], sizes = [8, 96], strides = [1, 1]} : vector<8x128xf32> to vector<8x96xf32>
    %222 = arith.negf %221 : vector<8x96xf32>
    %223 = math.exp %222 : vector<8x96xf32>
    %cst_50 = arith.constant 1.000000e+00 : f32
    %224 = vector.broadcast %cst_50 : f32 to vector<8x96xf32>
    %225 = arith.addf %224, %223 : vector<8x96xf32>
    %226 = arith.divf %224, %225 : vector<8x96xf32>
    %227 = vector.extract_strided_slice %220 {offsets = [0, 96], sizes = [8, 32], strides = [1, 1]} : vector<8x128xf32> to vector<8x32xf32>
    %228 = math.tanh %227 : vector<8x32xf32>
    %229 = vector.extract_strided_slice %226 {offsets = [0, 0], sizes = [8, 32], strides = [1, 1]} : vector<8x96xf32> to vector<8x32xf32>
    %230 = vector.extract_strided_slice %226 {offsets = [0, 32], sizes = [8, 32], strides = [1, 1]} : vector<8x96xf32> to vector<8x32xf32>
    %231 = vector.extract_strided_slice %226 {offsets = [0, 64], sizes = [8, 32], strides = [1, 1]} : vector<8x96xf32> to vector<8x32xf32>
    %232 = arith.mulf %230, %191 : vector<8x32xf32>
    %233 = arith.mulf %229, %228 : vector<8x32xf32>
    %234 = arith.addf %232, %233 : vector<8x32xf32>
    %235 = math.tanh %234 : vector<8x32xf32>
    %236 = arith.mulf %231, %235 : vector<8x32xf32>
    %c5_i32 = arith.constant 5 : i32
    %c8_i32_51 = arith.constant 8 : i32
    %237 = arith.muli %c5_i32, %c8_i32_51 : i32
    %238 = tpu.assume_multiple %237, 8 : i32
    %239 = arith.index_cast %238 : i32 to index
    %c0_52 = arith.constant 0 : index
    %240 = vector.load %arg14[%239, %c0_52] : memref<64x128xf32, #tpu.memory_space<vmem>>, vector<8x128xf32>
    %241 = arith.truncf %216 : vector<8x32xf32> to vector<8x32xbf16>
    %cst_53 = arith.constant dense<0.000000e+00> : vector<8x128xf32>
    %242 = tpu.matmul %241, %0, %cst_53 {dimension_numbers = #tpu.dot_dimension_numbers<[1], [0], [0], [1], [0, 0, 1, 1], [], []>} : vector<8x32xbf16>, vector<32x128xbf16>, vector<8x128xf32> -> vector<8x128xf32>
    %243 = arith.addf %240, %242 : vector<8x128xf32>
    %244 = vector.extract_strided_slice %243 {offsets = [0, 0], sizes = [8, 96], strides = [1, 1]} : vector<8x128xf32> to vector<8x96xf32>
    %245 = arith.negf %244 : vector<8x96xf32>
    %246 = math.exp %245 : vector<8x96xf32>
    %cst_54 = arith.constant 1.000000e+00 : f32
    %247 = vector.broadcast %cst_54 : f32 to vector<8x96xf32>
    %248 = arith.addf %247, %246 : vector<8x96xf32>
    %249 = arith.divf %247, %248 : vector<8x96xf32>
    %250 = vector.extract_strided_slice %243 {offsets = [0, 96], sizes = [8, 32], strides = [1, 1]} : vector<8x128xf32> to vector<8x32xf32>
    %251 = math.tanh %250 : vector<8x32xf32>
    %252 = vector.extract_strided_slice %249 {offsets = [0, 0], sizes = [8, 32], strides = [1, 1]} : vector<8x96xf32> to vector<8x32xf32>
    %253 = vector.extract_strided_slice %249 {offsets = [0, 32], sizes = [8, 32], strides = [1, 1]} : vector<8x96xf32> to vector<8x32xf32>
    %254 = vector.extract_strided_slice %249 {offsets = [0, 64], sizes = [8, 32], strides = [1, 1]} : vector<8x96xf32> to vector<8x32xf32>
    %255 = arith.mulf %253, %214 : vector<8x32xf32>
    %256 = arith.mulf %252, %251 : vector<8x32xf32>
    %257 = arith.addf %255, %256 : vector<8x32xf32>
    %258 = math.tanh %257 : vector<8x32xf32>
    %259 = arith.mulf %254, %258 : vector<8x32xf32>
    %260 = tpu.concatenate %259, %236 in 1 : vector<8x32xf32>, vector<8x32xf32> -> vector<8x64xf32>
    %261 = arith.truncf %260 : vector<8x64xf32> to vector<8x64xbf16>
    %cst_55 = arith.constant dense<0.000000e+00> : vector<8x128xf32>
    %262 = tpu.matmul %261, %1, %cst_55 {dimension_numbers = #tpu.dot_dimension_numbers<[1], [0], [0], [1], [0, 0, 1, 1], [], []>} : vector<8x64xbf16>, vector<64x128xbf16>, vector<8x128xf32> -> vector<8x128xf32>
    %263 = arith.addf %262, %4 : vector<8x128xf32>
    %264 = vector.extract_strided_slice %263 {offsets = [0, 0], sizes = [8, 96], strides = [1, 1]} : vector<8x128xf32> to vector<8x96xf32>
    %265 = arith.negf %264 : vector<8x96xf32>
    %266 = math.exp %265 : vector<8x96xf32>
    %cst_56 = arith.constant 1.000000e+00 : f32
    %267 = vector.broadcast %cst_56 : f32 to vector<8x96xf32>
    %268 = arith.addf %267, %266 : vector<8x96xf32>
    %269 = arith.divf %267, %268 : vector<8x96xf32>
    %270 = vector.extract_strided_slice %263 {offsets = [0, 96], sizes = [8, 32], strides = [1, 1]} : vector<8x128xf32> to vector<8x32xf32>
    %271 = math.tanh %270 : vector<8x32xf32>
    %272 = vector.extract_strided_slice %269 {offsets = [0, 0], sizes = [8, 32], strides = [1, 1]} : vector<8x96xf32> to vector<8x32xf32>
    %273 = vector.extract_strided_slice %269 {offsets = [0, 32], sizes = [8, 32], strides = [1, 1]} : vector<8x96xf32> to vector<8x32xf32>
    %274 = vector.extract_strided_slice %269 {offsets = [0, 64], sizes = [8, 32], strides = [1, 1]} : vector<8x96xf32> to vector<8x32xf32>
    %275 = arith.mulf %273, %234 : vector<8x32xf32>
    %276 = arith.mulf %272, %271 : vector<8x32xf32>
    %277 = arith.addf %275, %276 : vector<8x32xf32>
    %278 = math.tanh %277 : vector<8x32xf32>
    %279 = arith.mulf %274, %278 : vector<8x32xf32>
    %c6_i32 = arith.constant 6 : i32
    %c8_i32_57 = arith.constant 8 : i32
    %280 = arith.muli %c6_i32, %c8_i32_57 : i32
    %281 = tpu.assume_multiple %280, 8 : i32
    %282 = arith.index_cast %281 : i32 to index
    %c0_58 = arith.constant 0 : index
    %283 = vector.load %arg14[%282, %c0_58] : memref<64x128xf32, #tpu.memory_space<vmem>>, vector<8x128xf32>
    %284 = arith.truncf %259 : vector<8x32xf32> to vector<8x32xbf16>
    %cst_59 = arith.constant dense<0.000000e+00> : vector<8x128xf32>
    %285 = tpu.matmul %284, %0, %cst_59 {dimension_numbers = #tpu.dot_dimension_numbers<[1], [0], [0], [1], [0, 0, 1, 1], [], []>} : vector<8x32xbf16>, vector<32x128xbf16>, vector<8x128xf32> -> vector<8x128xf32>
    %286 = arith.addf %283, %285 : vector<8x128xf32>
    %287 = vector.extract_strided_slice %286 {offsets = [0, 0], sizes = [8, 96], strides = [1, 1]} : vector<8x128xf32> to vector<8x96xf32>
    %288 = arith.negf %287 : vector<8x96xf32>
    %289 = math.exp %288 : vector<8x96xf32>
    %cst_60 = arith.constant 1.000000e+00 : f32
    %290 = vector.broadcast %cst_60 : f32 to vector<8x96xf32>
    %291 = arith.addf %290, %289 : vector<8x96xf32>
    %292 = arith.divf %290, %291 : vector<8x96xf32>
    %293 = vector.extract_strided_slice %286 {offsets = [0, 96], sizes = [8, 32], strides = [1, 1]} : vector<8x128xf32> to vector<8x32xf32>
    %294 = math.tanh %293 : vector<8x32xf32>
    %295 = vector.extract_strided_slice %292 {offsets = [0, 0], sizes = [8, 32], strides = [1, 1]} : vector<8x96xf32> to vector<8x32xf32>
    %296 = vector.extract_strided_slice %292 {offsets = [0, 32], sizes = [8, 32], strides = [1, 1]} : vector<8x96xf32> to vector<8x32xf32>
    %297 = vector.extract_strided_slice %292 {offsets = [0, 64], sizes = [8, 32], strides = [1, 1]} : vector<8x96xf32> to vector<8x32xf32>
    %298 = arith.mulf %296, %257 : vector<8x32xf32>
    %299 = arith.mulf %295, %294 : vector<8x32xf32>
    %300 = arith.addf %298, %299 : vector<8x32xf32>
    %301 = math.tanh %300 : vector<8x32xf32>
    %302 = arith.mulf %297, %301 : vector<8x32xf32>
    %303 = tpu.concatenate %302, %279 in 1 : vector<8x32xf32>, vector<8x32xf32> -> vector<8x64xf32>
    %304 = arith.truncf %303 : vector<8x64xf32> to vector<8x64xbf16>
    %cst_61 = arith.constant dense<0.000000e+00> : vector<8x128xf32>
    %305 = tpu.matmul %304, %1, %cst_61 {dimension_numbers = #tpu.dot_dimension_numbers<[1], [0], [0], [1], [0, 0, 1, 1], [], []>} : vector<8x64xbf16>, vector<64x128xbf16>, vector<8x128xf32> -> vector<8x128xf32>
    %306 = arith.addf %305, %4 : vector<8x128xf32>
    %307 = vector.extract_strided_slice %306 {offsets = [0, 0], sizes = [8, 96], strides = [1, 1]} : vector<8x128xf32> to vector<8x96xf32>
    %308 = arith.negf %307 : vector<8x96xf32>
    %309 = math.exp %308 : vector<8x96xf32>
    %cst_62 = arith.constant 1.000000e+00 : f32
    %310 = vector.broadcast %cst_62 : f32 to vector<8x96xf32>
    %311 = arith.addf %310, %309 : vector<8x96xf32>
    %312 = arith.divf %310, %311 : vector<8x96xf32>
    %313 = vector.extract_strided_slice %306 {offsets = [0, 96], sizes = [8, 32], strides = [1, 1]} : vector<8x128xf32> to vector<8x32xf32>
    %314 = math.tanh %313 : vector<8x32xf32>
    %315 = vector.extract_strided_slice %312 {offsets = [0, 0], sizes = [8, 32], strides = [1, 1]} : vector<8x96xf32> to vector<8x32xf32>
    %316 = vector.extract_strided_slice %312 {offsets = [0, 32], sizes = [8, 32], strides = [1, 1]} : vector<8x96xf32> to vector<8x32xf32>
    %317 = vector.extract_strided_slice %312 {offsets = [0, 64], sizes = [8, 32], strides = [1, 1]} : vector<8x96xf32> to vector<8x32xf32>
    %318 = arith.mulf %316, %277 : vector<8x32xf32>
    %319 = arith.mulf %315, %314 : vector<8x32xf32>
    %320 = arith.addf %318, %319 : vector<8x32xf32>
    %321 = math.tanh %320 : vector<8x32xf32>
    %322 = arith.mulf %317, %321 : vector<8x32xf32>
    %c7_i32 = arith.constant 7 : i32
    %c8_i32_63 = arith.constant 8 : i32
    %323 = arith.muli %c7_i32, %c8_i32_63 : i32
    %324 = tpu.assume_multiple %323, 8 : i32
    %325 = arith.index_cast %324 : i32 to index
    %c0_64 = arith.constant 0 : index
    %326 = vector.load %arg14[%325, %c0_64] : memref<64x128xf32, #tpu.memory_space<vmem>>, vector<8x128xf32>
    %327 = arith.truncf %302 : vector<8x32xf32> to vector<8x32xbf16>
    %cst_65 = arith.constant dense<0.000000e+00> : vector<8x128xf32>
    %328 = tpu.matmul %327, %0, %cst_65 {dimension_numbers = #tpu.dot_dimension_numbers<[1], [0], [0], [1], [0, 0, 1, 1], [], []>} : vector<8x32xbf16>, vector<32x128xbf16>, vector<8x128xf32> -> vector<8x128xf32>
    %329 = arith.addf %326, %328 : vector<8x128xf32>
    %330 = vector.extract_strided_slice %329 {offsets = [0, 0], sizes = [8, 96], strides = [1, 1]} : vector<8x128xf32> to vector<8x96xf32>
    %331 = arith.negf %330 : vector<8x96xf32>
    %332 = math.exp %331 : vector<8x96xf32>
    %cst_66 = arith.constant 1.000000e+00 : f32
    %333 = vector.broadcast %cst_66 : f32 to vector<8x96xf32>
    %334 = arith.addf %333, %332 : vector<8x96xf32>
    %335 = arith.divf %333, %334 : vector<8x96xf32>
    %336 = vector.extract_strided_slice %329 {offsets = [0, 96], sizes = [8, 32], strides = [1, 1]} : vector<8x128xf32> to vector<8x32xf32>
    %337 = math.tanh %336 : vector<8x32xf32>
    %338 = vector.extract_strided_slice %335 {offsets = [0, 0], sizes = [8, 32], strides = [1, 1]} : vector<8x96xf32> to vector<8x32xf32>
    %339 = vector.extract_strided_slice %335 {offsets = [0, 32], sizes = [8, 32], strides = [1, 1]} : vector<8x96xf32> to vector<8x32xf32>
    %340 = vector.extract_strided_slice %335 {offsets = [0, 64], sizes = [8, 32], strides = [1, 1]} : vector<8x96xf32> to vector<8x32xf32>
    %341 = arith.mulf %339, %300 : vector<8x32xf32>
    %342 = arith.mulf %338, %337 : vector<8x32xf32>
    %343 = arith.addf %341, %342 : vector<8x32xf32>
    %344 = math.tanh %343 : vector<8x32xf32>
    %345 = arith.mulf %340, %344 : vector<8x32xf32>
    %346 = tpu.concatenate %345, %322 in 1 : vector<8x32xf32>, vector<8x32xf32> -> vector<8x64xf32>
    %347 = arith.truncf %346 : vector<8x64xf32> to vector<8x64xbf16>
    %cst_67 = arith.constant dense<0.000000e+00> : vector<8x128xf32>
    %348 = tpu.matmul %347, %1, %cst_67 {dimension_numbers = #tpu.dot_dimension_numbers<[1], [0], [0], [1], [0, 0, 1, 1], [], []>} : vector<8x64xbf16>, vector<64x128xbf16>, vector<8x128xf32> -> vector<8x128xf32>
    %349 = arith.addf %348, %4 : vector<8x128xf32>
    %350 = vector.extract_strided_slice %349 {offsets = [0, 0], sizes = [8, 96], strides = [1, 1]} : vector<8x128xf32> to vector<8x96xf32>
    %351 = arith.negf %350 : vector<8x96xf32>
    %352 = math.exp %351 : vector<8x96xf32>
    %cst_68 = arith.constant 1.000000e+00 : f32
    %353 = vector.broadcast %cst_68 : f32 to vector<8x96xf32>
    %354 = arith.addf %353, %352 : vector<8x96xf32>
    %355 = arith.divf %353, %354 : vector<8x96xf32>
    %356 = vector.extract_strided_slice %349 {offsets = [0, 96], sizes = [8, 32], strides = [1, 1]} : vector<8x128xf32> to vector<8x32xf32>
    %357 = math.tanh %356 : vector<8x32xf32>
    %358 = vector.extract_strided_slice %355 {offsets = [0, 0], sizes = [8, 32], strides = [1, 1]} : vector<8x96xf32> to vector<8x32xf32>
    %359 = vector.extract_strided_slice %355 {offsets = [0, 32], sizes = [8, 32], strides = [1, 1]} : vector<8x96xf32> to vector<8x32xf32>
    %360 = vector.extract_strided_slice %355 {offsets = [0, 64], sizes = [8, 32], strides = [1, 1]} : vector<8x96xf32> to vector<8x32xf32>
    %361 = arith.mulf %359, %320 : vector<8x32xf32>
    %362 = arith.mulf %358, %357 : vector<8x32xf32>
    %363 = arith.addf %361, %362 : vector<8x32xf32>
    %364 = math.tanh %363 : vector<8x32xf32>
    %365 = arith.mulf %360, %364 : vector<8x32xf32>
    %c8_i32_69 = arith.constant 8 : i32
    %c0_70 = arith.constant 0 : index
    %c0_71 = arith.constant 0 : index
    %366 = vector.load %arg10[%c0_70, %c0_71] : memref<1x32xf32, #tpu.memory_space<vmem>>, vector<1x32xf32>
    %367 = vector.shape_cast %366 : vector<1x32xf32> to vector<1x32xf32>
    %368 = vector.broadcast %367 : vector<1x32xf32> to vector<8x32xf32>
    %c0_i32_72 = arith.constant 0 : i32
    %369 = tpu.concatenate %368, %345 in 1 : vector<8x32xf32>, vector<8x32xf32> -> vector<8x64xf32>
    %370 = arith.truncf %369 : vector<8x64xf32> to vector<8x64xbf16>
    %cst_73 = arith.constant dense<0.000000e+00> : vector<8x128xf32>
    %371 = tpu.matmul %370, %5, %cst_73 {dimension_numbers = #tpu.dot_dimension_numbers<[1], [0], [0], [1], [0, 0, 1, 1], [], []>} : vector<8x64xbf16>, vector<64x128xbf16>, vector<8x128xf32> -> vector<8x128xf32>
    %372 = arith.addf %371, %9 : vector<8x128xf32>
    %373 = vector.extract_strided_slice %372 {offsets = [0, 0], sizes = [8, 96], strides = [1, 1]} : vector<8x128xf32> to vector<8x96xf32>
    %374 = arith.negf %373 : vector<8x96xf32>
    %375 = math.exp %374 : vector<8x96xf32>
    %cst_74 = arith.constant 1.000000e+00 : f32
    %376 = vector.broadcast %cst_74 : f32 to vector<8x96xf32>
    %377 = arith.addf %376, %375 : vector<8x96xf32>
    %378 = arith.divf %376, %377 : vector<8x96xf32>
    %379 = vector.extract_strided_slice %372 {offsets = [0, 96], sizes = [8, 32], strides = [1, 1]} : vector<8x128xf32> to vector<8x32xf32>
    %380 = math.tanh %379 : vector<8x32xf32>
    %381 = vector.extract_strided_slice %378 {offsets = [0, 0], sizes = [8, 32], strides = [1, 1]} : vector<8x96xf32> to vector<8x32xf32>
    %382 = vector.extract_strided_slice %378 {offsets = [0, 32], sizes = [8, 32], strides = [1, 1]} : vector<8x96xf32> to vector<8x32xf32>
    %383 = vector.extract_strided_slice %378 {offsets = [0, 64], sizes = [8, 32], strides = [1, 1]} : vector<8x96xf32> to vector<8x32xf32>
    %384 = arith.mulf %382, %343 : vector<8x32xf32>
    %385 = arith.mulf %381, %380 : vector<8x32xf32>
    %386 = arith.addf %384, %385 : vector<8x32xf32>
    %387 = math.tanh %386 : vector<8x32xf32>
    %388 = arith.mulf %383, %387 : vector<8x32xf32>
    %389 = tpu.concatenate %388, %365 in 1 : vector<8x32xf32>, vector<8x32xf32> -> vector<8x64xf32>
    %390 = arith.truncf %389 : vector<8x64xf32> to vector<8x64xbf16>
    %cst_75 = arith.constant dense<0.000000e+00> : vector<8x128xf32>
    %391 = tpu.matmul %390, %6, %cst_75 {dimension_numbers = #tpu.dot_dimension_numbers<[1], [0], [0], [1], [0, 0, 1, 1], [], []>} : vector<8x64xbf16>, vector<64x128xbf16>, vector<8x128xf32> -> vector<8x128xf32>
    %392 = arith.addf %391, %12 : vector<8x128xf32>
    %393 = vector.extract_strided_slice %392 {offsets = [0, 0], sizes = [8, 96], strides = [1, 1]} : vector<8x128xf32> to vector<8x96xf32>
    %394 = arith.negf %393 : vector<8x96xf32>
    %395 = math.exp %394 : vector<8x96xf32>
    %cst_76 = arith.constant 1.000000e+00 : f32
    %396 = vector.broadcast %cst_76 : f32 to vector<8x96xf32>
    %397 = arith.addf %396, %395 : vector<8x96xf32>
    %398 = arith.divf %396, %397 : vector<8x96xf32>
    %399 = vector.extract_strided_slice %392 {offsets = [0, 96], sizes = [8, 32], strides = [1, 1]} : vector<8x128xf32> to vector<8x32xf32>
    %400 = math.tanh %399 : vector<8x32xf32>
    %401 = vector.extract_strided_slice %398 {offsets = [0, 0], sizes = [8, 32], strides = [1, 1]} : vector<8x96xf32> to vector<8x32xf32>
    %402 = vector.extract_strided_slice %398 {offsets = [0, 32], sizes = [8, 32], strides = [1, 1]} : vector<8x96xf32> to vector<8x32xf32>
    %403 = vector.extract_strided_slice %398 {offsets = [0, 64], sizes = [8, 32], strides = [1, 1]} : vector<8x96xf32> to vector<8x32xf32>
    %404 = arith.mulf %402, %363 : vector<8x32xf32>
    %405 = arith.mulf %401, %400 : vector<8x32xf32>
    %406 = arith.addf %404, %405 : vector<8x32xf32>
    %407 = math.tanh %406 : vector<8x32xf32>
    %408 = arith.mulf %403, %407 : vector<8x32xf32>
    %c8_i32_77 = arith.constant 8 : i32
    %409 = arith.muli %c0_i32_72, %c8_i32_77 : i32
    %410 = tpu.assume_multiple %409, 8 : i32
    %411 = arith.index_cast %410 : i32 to index
    %c0_78 = arith.constant 0 : index
    %412 = vector.load %arg15[%411, %c0_78] : memref<64x32xf32, #tpu.memory_space<vmem>>, vector<8x32xf32>
    tpu.vector_store %arg15[%411, %c0_78], %408 {strides = array<i32>} : memref<64x32xf32, #tpu.memory_space<vmem>>, vector<8x32xf32>,
    %c1_i32_79 = arith.constant 1 : i32
    %413 = tpu.concatenate %408, %388 in 1 : vector<8x32xf32>, vector<8x32xf32> -> vector<8x64xf32>
    %414 = arith.truncf %413 : vector<8x64xf32> to vector<8x64xbf16>
    %cst_80 = arith.constant dense<0.000000e+00> : vector<8x128xf32>
    %415 = tpu.matmul %414, %5, %cst_80 {dimension_numbers = #tpu.dot_dimension_numbers<[1], [0], [0], [1], [0, 0, 1, 1], [], []>} : vector<8x64xbf16>, vector<64x128xbf16>, vector<8x128xf32> -> vector<8x128xf32>
    %416 = arith.addf %415, %9 : vector<8x128xf32>
    %417 = vector.extract_strided_slice %416 {offsets = [0, 0], sizes = [8, 96], strides = [1, 1]} : vector<8x128xf32> to vector<8x96xf32>
    %418 = arith.negf %417 : vector<8x96xf32>
    %419 = math.exp %418 : vector<8x96xf32>
    %cst_81 = arith.constant 1.000000e+00 : f32
    %420 = vector.broadcast %cst_81 : f32 to vector<8x96xf32>
    %421 = arith.addf %420, %419 : vector<8x96xf32>
    %422 = arith.divf %420, %421 : vector<8x96xf32>
    %423 = vector.extract_strided_slice %416 {offsets = [0, 96], sizes = [8, 32], strides = [1, 1]} : vector<8x128xf32> to vector<8x32xf32>
    %424 = math.tanh %423 : vector<8x32xf32>
    %425 = vector.extract_strided_slice %422 {offsets = [0, 0], sizes = [8, 32], strides = [1, 1]} : vector<8x96xf32> to vector<8x32xf32>
    %426 = vector.extract_strided_slice %422 {offsets = [0, 32], sizes = [8, 32], strides = [1, 1]} : vector<8x96xf32> to vector<8x32xf32>
    %427 = vector.extract_strided_slice %422 {offsets = [0, 64], sizes = [8, 32], strides = [1, 1]} : vector<8x96xf32> to vector<8x32xf32>
    %428 = arith.mulf %426, %386 : vector<8x32xf32>
    %429 = arith.mulf %425, %424 : vector<8x32xf32>
    %430 = arith.addf %428, %429 : vector<8x32xf32>
    %431 = math.tanh %430 : vector<8x32xf32>
    %432 = arith.mulf %427, %431 : vector<8x32xf32>
    %433 = tpu.concatenate %432, %408 in 1 : vector<8x32xf32>, vector<8x32xf32> -> vector<8x64xf32>
    %434 = arith.truncf %433 : vector<8x64xf32> to vector<8x64xbf16>
    %cst_82 = arith.constant dense<0.000000e+00> : vector<8x128xf32>
    %435 = tpu.matmul %434, %6, %cst_82 {dimension_numbers = #tpu.dot_dimension_numbers<[1], [0], [0], [1], [0, 0, 1, 1], [], []>} : vector<8x64xbf16>, vector<64x128xbf16>, vector<8x128xf32> -> vector<8x128xf32>
    %436 = arith.addf %435, %12 : vector<8x128xf32>
    %437 = vector.extract_strided_slice %436 {offsets = [0, 0], sizes = [8, 96], strides = [1, 1]} : vector<8x128xf32> to vector<8x96xf32>
    %438 = arith.negf %437 : vector<8x96xf32>
    %439 = math.exp %438 : vector<8x96xf32>
    %cst_83 = arith.constant 1.000000e+00 : f32
    %440 = vector.broadcast %cst_83 : f32 to vector<8x96xf32>
    %441 = arith.addf %440, %439 : vector<8x96xf32>
    %442 = arith.divf %440, %441 : vector<8x96xf32>
    %443 = vector.extract_strided_slice %436 {offsets = [0, 96], sizes = [8, 32], strides = [1, 1]} : vector<8x128xf32> to vector<8x32xf32>
    %444 = math.tanh %443 : vector<8x32xf32>
    %445 = vector.extract_strided_slice %442 {offsets = [0, 0], sizes = [8, 32], strides = [1, 1]} : vector<8x96xf32> to vector<8x32xf32>
    %446 = vector.extract_strided_slice %442 {offsets = [0, 32], sizes = [8, 32], strides = [1, 1]} : vector<8x96xf32> to vector<8x32xf32>
    %447 = vector.extract_strided_slice %442 {offsets = [0, 64], sizes = [8, 32], strides = [1, 1]} : vector<8x96xf32> to vector<8x32xf32>
    %448 = arith.mulf %446, %406 : vector<8x32xf32>
    %449 = arith.mulf %445, %444 : vector<8x32xf32>
    %450 = arith.addf %448, %449 : vector<8x32xf32>
    %451 = math.tanh %450 : vector<8x32xf32>
    %452 = arith.mulf %447, %451 : vector<8x32xf32>
    %c8_i32_84 = arith.constant 8 : i32
    %453 = arith.muli %c1_i32_79, %c8_i32_84 : i32
    %454 = tpu.assume_multiple %453, 8 : i32
    %455 = arith.index_cast %454 : i32 to index
    %c0_85 = arith.constant 0 : index
    %456 = vector.load %arg15[%455, %c0_85] : memref<64x32xf32, #tpu.memory_space<vmem>>, vector<8x32xf32>
    tpu.vector_store %arg15[%455, %c0_85], %452 {strides = array<i32>} : memref<64x32xf32, #tpu.memory_space<vmem>>, vector<8x32xf32>,
    %c2_i32_86 = arith.constant 2 : i32
    %457 = tpu.concatenate %452, %432 in 1 : vector<8x32xf32>, vector<8x32xf32> -> vector<8x64xf32>
    %458 = arith.truncf %457 : vector<8x64xf32> to vector<8x64xbf16>
    %cst_87 = arith.constant dense<0.000000e+00> : vector<8x128xf32>
    %459 = tpu.matmul %458, %5, %cst_87 {dimension_numbers = #tpu.dot_dimension_numbers<[1], [0], [0], [1], [0, 0, 1, 1], [], []>} : vector<8x64xbf16>, vector<64x128xbf16>, vector<8x128xf32> -> vector<8x128xf32>
    %460 = arith.addf %459, %9 : vector<8x128xf32>
    %461 = vector.extract_strided_slice %460 {offsets = [0, 0], sizes = [8, 96], strides = [1, 1]} : vector<8x128xf32> to vector<8x96xf32>
    %462 = arith.negf %461 : vector<8x96xf32>
    %463 = math.exp %462 : vector<8x96xf32>
    %cst_88 = arith.constant 1.000000e+00 : f32
    %464 = vector.broadcast %cst_88 : f32 to vector<8x96xf32>
    %465 = arith.addf %464, %463 : vector<8x96xf32>
    %466 = arith.divf %464, %465 : vector<8x96xf32>
    %467 = vector.extract_strided_slice %460 {offsets = [0, 96], sizes = [8, 32], strides = [1, 1]} : vector<8x128xf32> to vector<8x32xf32>
    %468 = math.tanh %467 : vector<8x32xf32>
    %469 = vector.extract_strided_slice %466 {offsets = [0, 0], sizes = [8, 32], strides = [1, 1]} : vector<8x96xf32> to vector<8x32xf32>
    %470 = vector.extract_strided_slice %466 {offsets = [0, 32], sizes = [8, 32], strides = [1, 1]} : vector<8x96xf32> to vector<8x32xf32>
    %471 = vector.extract_strided_slice %466 {offsets = [0, 64], sizes = [8, 32], strides = [1, 1]} : vector<8x96xf32> to vector<8x32xf32>
    %472 = arith.mulf %470, %430 : vector<8x32xf32>
    %473 = arith.mulf %469, %468 : vector<8x32xf32>
    %474 = arith.addf %472, %473 : vector<8x32xf32>
    %475 = math.tanh %474 : vector<8x32xf32>
    %476 = arith.mulf %471, %475 : vector<8x32xf32>
    %477 = tpu.concatenate %476, %452 in 1 : vector<8x32xf32>, vector<8x32xf32> -> vector<8x64xf32>
    %478 = arith.truncf %477 : vector<8x64xf32> to vector<8x64xbf16>
    %cst_89 = arith.constant dense<0.000000e+00> : vector<8x128xf32>
    %479 = tpu.matmul %478, %6, %cst_89 {dimension_numbers = #tpu.dot_dimension_numbers<[1], [0], [0], [1], [0, 0, 1, 1], [], []>} : vector<8x64xbf16>, vector<64x128xbf16>, vector<8x128xf32> -> vector<8x128xf32>
    %480 = arith.addf %479, %12 : vector<8x128xf32>
    %481 = vector.extract_strided_slice %480 {offsets = [0, 0], sizes = [8, 96], strides = [1, 1]} : vector<8x128xf32> to vector<8x96xf32>
    %482 = arith.negf %481 : vector<8x96xf32>
    %483 = math.exp %482 : vector<8x96xf32>
    %cst_90 = arith.constant 1.000000e+00 : f32
    %484 = vector.broadcast %cst_90 : f32 to vector<8x96xf32>
    %485 = arith.addf %484, %483 : vector<8x96xf32>
    %486 = arith.divf %484, %485 : vector<8x96xf32>
    %487 = vector.extract_strided_slice %480 {offsets = [0, 96], sizes = [8, 32], strides = [1, 1]} : vector<8x128xf32> to vector<8x32xf32>
    %488 = math.tanh %487 : vector<8x32xf32>
    %489 = vector.extract_strided_slice %486 {offsets = [0, 0], sizes = [8, 32], strides = [1, 1]} : vector<8x96xf32> to vector<8x32xf32>
    %490 = vector.extract_strided_slice %486 {offsets = [0, 32], sizes = [8, 32], strides = [1, 1]} : vector<8x96xf32> to vector<8x32xf32>
    %491 = vector.extract_strided_slice %486 {offsets = [0, 64], sizes = [8, 32], strides = [1, 1]} : vector<8x96xf32> to vector<8x32xf32>
    %492 = arith.mulf %490, %450 : vector<8x32xf32>
    %493 = arith.mulf %489, %488 : vector<8x32xf32>
    %494 = arith.addf %492, %493 : vector<8x32xf32>
    %495 = math.tanh %494 : vector<8x32xf32>
    %496 = arith.mulf %491, %495 : vector<8x32xf32>
    %c8_i32_91 = arith.constant 8 : i32
    %497 = arith.muli %c2_i32_86, %c8_i32_91 : i32
    %498 = tpu.assume_multiple %497, 8 : i32
    %499 = arith.index_cast %498 : i32 to index
    %c0_92 = arith.constant 0 : index
    %500 = vector.load %arg15[%499, %c0_92] : memref<64x32xf32, #tpu.memory_space<vmem>>, vector<8x32xf32>
    tpu.vector_store %arg15[%499, %c0_92], %496 {strides = array<i32>} : memref<64x32xf32, #tpu.memory_space<vmem>>, vector<8x32xf32>,
    %c3_i32_93 = arith.constant 3 : i32
    %501 = tpu.concatenate %496, %476 in 1 : vector<8x32xf32>, vector<8x32xf32> -> vector<8x64xf32>
    %502 = arith.truncf %501 : vector<8x64xf32> to vector<8x64xbf16>
    %cst_94 = arith.constant dense<0.000000e+00> : vector<8x128xf32>
    %503 = tpu.matmul %502, %5, %cst_94 {dimension_numbers = #tpu.dot_dimension_numbers<[1], [0], [0], [1], [0, 0, 1, 1], [], []>} : vector<8x64xbf16>, vector<64x128xbf16>, vector<8x128xf32> -> vector<8x128xf32>
    %504 = arith.addf %503, %9 : vector<8x128xf32>
    %505 = vector.extract_strided_slice %504 {offsets = [0, 0], sizes = [8, 96], strides = [1, 1]} : vector<8x128xf32> to vector<8x96xf32>
    %506 = arith.negf %505 : vector<8x96xf32>
    %507 = math.exp %506 : vector<8x96xf32>
    %cst_95 = arith.constant 1.000000e+00 : f32
    %508 = vector.broadcast %cst_95 : f32 to vector<8x96xf32>
    %509 = arith.addf %508, %507 : vector<8x96xf32>
    %510 = arith.divf %508, %509 : vector<8x96xf32>
    %511 = vector.extract_strided_slice %504 {offsets = [0, 96], sizes = [8, 32], strides = [1, 1]} : vector<8x128xf32> to vector<8x32xf32>
    %512 = math.tanh %511 : vector<8x32xf32>
    %513 = vector.extract_strided_slice %510 {offsets = [0, 0], sizes = [8, 32], strides = [1, 1]} : vector<8x96xf32> to vector<8x32xf32>
    %514 = vector.extract_strided_slice %510 {offsets = [0, 32], sizes = [8, 32], strides = [1, 1]} : vector<8x96xf32> to vector<8x32xf32>
    %515 = vector.extract_strided_slice %510 {offsets = [0, 64], sizes = [8, 32], strides = [1, 1]} : vector<8x96xf32> to vector<8x32xf32>
    %516 = arith.mulf %514, %474 : vector<8x32xf32>
    %517 = arith.mulf %513, %512 : vector<8x32xf32>
    %518 = arith.addf %516, %517 : vector<8x32xf32>
    %519 = math.tanh %518 : vector<8x32xf32>
    %520 = arith.mulf %515, %519 : vector<8x32xf32>
    %521 = tpu.concatenate %520, %496 in 1 : vector<8x32xf32>, vector<8x32xf32> -> vector<8x64xf32>
    %522 = arith.truncf %521 : vector<8x64xf32> to vector<8x64xbf16>
    %cst_96 = arith.constant dense<0.000000e+00> : vector<8x128xf32>
    %523 = tpu.matmul %522, %6, %cst_96 {dimension_numbers = #tpu.dot_dimension_numbers<[1], [0], [0], [1], [0, 0, 1, 1], [], []>} : vector<8x64xbf16>, vector<64x128xbf16>, vector<8x128xf32> -> vector<8x128xf32>
    %524 = arith.addf %523, %12 : vector<8x128xf32>
    %525 = vector.extract_strided_slice %524 {offsets = [0, 0], sizes = [8, 96], strides = [1, 1]} : vector<8x128xf32> to vector<8x96xf32>
    %526 = arith.negf %525 : vector<8x96xf32>
    %527 = math.exp %526 : vector<8x96xf32>
    %cst_97 = arith.constant 1.000000e+00 : f32
    %528 = vector.broadcast %cst_97 : f32 to vector<8x96xf32>
    %529 = arith.addf %528, %527 : vector<8x96xf32>
    %530 = arith.divf %528, %529 : vector<8x96xf32>
    %531 = vector.extract_strided_slice %524 {offsets = [0, 96], sizes = [8, 32], strides = [1, 1]} : vector<8x128xf32> to vector<8x32xf32>
    %532 = math.tanh %531 : vector<8x32xf32>
    %533 = vector.extract_strided_slice %530 {offsets = [0, 0], sizes = [8, 32], strides = [1, 1]} : vector<8x96xf32> to vector<8x32xf32>
    %534 = vector.extract_strided_slice %530 {offsets = [0, 32], sizes = [8, 32], strides = [1, 1]} : vector<8x96xf32> to vector<8x32xf32>
    %535 = vector.extract_strided_slice %530 {offsets = [0, 64], sizes = [8, 32], strides = [1, 1]} : vector<8x96xf32> to vector<8x32xf32>
    %536 = arith.mulf %534, %494 : vector<8x32xf32>
    %537 = arith.mulf %533, %532 : vector<8x32xf32>
    %538 = arith.addf %536, %537 : vector<8x32xf32>
    %539 = math.tanh %538 : vector<8x32xf32>
    %540 = arith.mulf %535, %539 : vector<8x32xf32>
    %c8_i32_98 = arith.constant 8 : i32
    %541 = arith.muli %c3_i32_93, %c8_i32_98 : i32
    %542 = tpu.assume_multiple %541, 8 : i32
    %543 = arith.index_cast %542 : i32 to index
    %c0_99 = arith.constant 0 : index
    %544 = vector.load %arg15[%543, %c0_99] : memref<64x32xf32, #tpu.memory_space<vmem>>, vector<8x32xf32>
    tpu.vector_store %arg15[%543, %c0_99], %540 {strides = array<i32>} : memref<64x32xf32, #tpu.memory_space<vmem>>, vector<8x32xf32>,
    %c4_i32_100 = arith.constant 4 : i32
    %545 = tpu.concatenate %540, %520 in 1 : vector<8x32xf32>, vector<8x32xf32> -> vector<8x64xf32>
    %546 = arith.truncf %545 : vector<8x64xf32> to vector<8x64xbf16>
    %cst_101 = arith.constant dense<0.000000e+00> : vector<8x128xf32>
    %547 = tpu.matmul %546, %5, %cst_101 {dimension_numbers = #tpu.dot_dimension_numbers<[1], [0], [0], [1], [0, 0, 1, 1], [], []>} : vector<8x64xbf16>, vector<64x128xbf16>, vector<8x128xf32> -> vector<8x128xf32>
    %548 = arith.addf %547, %9 : vector<8x128xf32>
    %549 = vector.extract_strided_slice %548 {offsets = [0, 0], sizes = [8, 96], strides = [1, 1]} : vector<8x128xf32> to vector<8x96xf32>
    %550 = arith.negf %549 : vector<8x96xf32>
    %551 = math.exp %550 : vector<8x96xf32>
    %cst_102 = arith.constant 1.000000e+00 : f32
    %552 = vector.broadcast %cst_102 : f32 to vector<8x96xf32>
    %553 = arith.addf %552, %551 : vector<8x96xf32>
    %554 = arith.divf %552, %553 : vector<8x96xf32>
    %555 = vector.extract_strided_slice %548 {offsets = [0, 96], sizes = [8, 32], strides = [1, 1]} : vector<8x128xf32> to vector<8x32xf32>
    %556 = math.tanh %555 : vector<8x32xf32>
    %557 = vector.extract_strided_slice %554 {offsets = [0, 0], sizes = [8, 32], strides = [1, 1]} : vector<8x96xf32> to vector<8x32xf32>
    %558 = vector.extract_strided_slice %554 {offsets = [0, 32], sizes = [8, 32], strides = [1, 1]} : vector<8x96xf32> to vector<8x32xf32>
    %559 = vector.extract_strided_slice %554 {offsets = [0, 64], sizes = [8, 32], strides = [1, 1]} : vector<8x96xf32> to vector<8x32xf32>
    %560 = arith.mulf %558, %518 : vector<8x32xf32>
    %561 = arith.mulf %557, %556 : vector<8x32xf32>
    %562 = arith.addf %560, %561 : vector<8x32xf32>
    %563 = math.tanh %562 : vector<8x32xf32>
    %564 = arith.mulf %559, %563 : vector<8x32xf32>
    %565 = tpu.concatenate %564, %540 in 1 : vector<8x32xf32>, vector<8x32xf32> -> vector<8x64xf32>
    %566 = arith.truncf %565 : vector<8x64xf32> to vector<8x64xbf16>
    %cst_103 = arith.constant dense<0.000000e+00> : vector<8x128xf32>
    %567 = tpu.matmul %566, %6, %cst_103 {dimension_numbers = #tpu.dot_dimension_numbers<[1], [0], [0], [1], [0, 0, 1, 1], [], []>} : vector<8x64xbf16>, vector<64x128xbf16>, vector<8x128xf32> -> vector<8x128xf32>
    %568 = arith.addf %567, %12 : vector<8x128xf32>
    %569 = vector.extract_strided_slice %568 {offsets = [0, 0], sizes = [8, 96], strides = [1, 1]} : vector<8x128xf32> to vector<8x96xf32>
    %570 = arith.negf %569 : vector<8x96xf32>
    %571 = math.exp %570 : vector<8x96xf32>
    %cst_104 = arith.constant 1.000000e+00 : f32
    %572 = vector.broadcast %cst_104 : f32 to vector<8x96xf32>
    %573 = arith.addf %572, %571 : vector<8x96xf32>
    %574 = arith.divf %572, %573 : vector<8x96xf32>
    %575 = vector.extract_strided_slice %568 {offsets = [0, 96], sizes = [8, 32], strides = [1, 1]} : vector<8x128xf32> to vector<8x32xf32>
    %576 = math.tanh %575 : vector<8x32xf32>
    %577 = vector.extract_strided_slice %574 {offsets = [0, 0], sizes = [8, 32], strides = [1, 1]} : vector<8x96xf32> to vector<8x32xf32>
    %578 = vector.extract_strided_slice %574 {offsets = [0, 32], sizes = [8, 32], strides = [1, 1]} : vector<8x96xf32> to vector<8x32xf32>
    %579 = vector.extract_strided_slice %574 {offsets = [0, 64], sizes = [8, 32], strides = [1, 1]} : vector<8x96xf32> to vector<8x32xf32>
    %580 = arith.mulf %578, %538 : vector<8x32xf32>
    %581 = arith.mulf %577, %576 : vector<8x32xf32>
    %582 = arith.addf %580, %581 : vector<8x32xf32>
    %583 = math.tanh %582 : vector<8x32xf32>
    %584 = arith.mulf %579, %583 : vector<8x32xf32>
    %c8_i32_105 = arith.constant 8 : i32
    %585 = arith.muli %c4_i32_100, %c8_i32_105 : i32
    %586 = tpu.assume_multiple %585, 8 : i32
    %587 = arith.index_cast %586 : i32 to index
    %c0_106 = arith.constant 0 : index
    %588 = vector.load %arg15[%587, %c0_106] : memref<64x32xf32, #tpu.memory_space<vmem>>, vector<8x32xf32>
    tpu.vector_store %arg15[%587, %c0_106], %584 {strides = array<i32>} : memref<64x32xf32, #tpu.memory_space<vmem>>, vector<8x32xf32>,
    %c5_i32_107 = arith.constant 5 : i32
    %589 = tpu.concatenate %584, %564 in 1 : vector<8x32xf32>, vector<8x32xf32> -> vector<8x64xf32>
    %590 = arith.truncf %589 : vector<8x64xf32> to vector<8x64xbf16>
    %cst_108 = arith.constant dense<0.000000e+00> : vector<8x128xf32>
    %591 = tpu.matmul %590, %5, %cst_108 {dimension_numbers = #tpu.dot_dimension_numbers<[1], [0], [0], [1], [0, 0, 1, 1], [], []>} : vector<8x64xbf16>, vector<64x128xbf16>, vector<8x128xf32> -> vector<8x128xf32>
    %592 = arith.addf %591, %9 : vector<8x128xf32>
    %593 = vector.extract_strided_slice %592 {offsets = [0, 0], sizes = [8, 96], strides = [1, 1]} : vector<8x128xf32> to vector<8x96xf32>
    %594 = arith.negf %593 : vector<8x96xf32>
    %595 = math.exp %594 : vector<8x96xf32>
    %cst_109 = arith.constant 1.000000e+00 : f32
    %596 = vector.broadcast %cst_109 : f32 to vector<8x96xf32>
    %597 = arith.addf %596, %595 : vector<8x96xf32>
    %598 = arith.divf %596, %597 : vector<8x96xf32>
    %599 = vector.extract_strided_slice %592 {offsets = [0, 96], sizes = [8, 32], strides = [1, 1]} : vector<8x128xf32> to vector<8x32xf32>
    %600 = math.tanh %599 : vector<8x32xf32>
    %601 = vector.extract_strided_slice %598 {offsets = [0, 0], sizes = [8, 32], strides = [1, 1]} : vector<8x96xf32> to vector<8x32xf32>
    %602 = vector.extract_strided_slice %598 {offsets = [0, 32], sizes = [8, 32], strides = [1, 1]} : vector<8x96xf32> to vector<8x32xf32>
    %603 = vector.extract_strided_slice %598 {offsets = [0, 64], sizes = [8, 32], strides = [1, 1]} : vector<8x96xf32> to vector<8x32xf32>
    %604 = arith.mulf %602, %562 : vector<8x32xf32>
    %605 = arith.mulf %601, %600 : vector<8x32xf32>
    %606 = arith.addf %604, %605 : vector<8x32xf32>
    %607 = math.tanh %606 : vector<8x32xf32>
    %608 = arith.mulf %603, %607 : vector<8x32xf32>
    %609 = tpu.concatenate %608, %584 in 1 : vector<8x32xf32>, vector<8x32xf32> -> vector<8x64xf32>
    %610 = arith.truncf %609 : vector<8x64xf32> to vector<8x64xbf16>
    %cst_110 = arith.constant dense<0.000000e+00> : vector<8x128xf32>
    %611 = tpu.matmul %610, %6, %cst_110 {dimension_numbers = #tpu.dot_dimension_numbers<[1], [0], [0], [1], [0, 0, 1, 1], [], []>} : vector<8x64xbf16>, vector<64x128xbf16>, vector<8x128xf32> -> vector<8x128xf32>
    %612 = arith.addf %611, %12 : vector<8x128xf32>
    %613 = vector.extract_strided_slice %612 {offsets = [0, 0], sizes = [8, 96], strides = [1, 1]} : vector<8x128xf32> to vector<8x96xf32>
    %614 = arith.negf %613 : vector<8x96xf32>
    %615 = math.exp %614 : vector<8x96xf32>
    %cst_111 = arith.constant 1.000000e+00 : f32
    %616 = vector.broadcast %cst_111 : f32 to vector<8x96xf32>
    %617 = arith.addf %616, %615 : vector<8x96xf32>
    %618 = arith.divf %616, %617 : vector<8x96xf32>
    %619 = vector.extract_strided_slice %612 {offsets = [0, 96], sizes = [8, 32], strides = [1, 1]} : vector<8x128xf32> to vector<8x32xf32>
    %620 = math.tanh %619 : vector<8x32xf32>
    %621 = vector.extract_strided_slice %618 {offsets = [0, 0], sizes = [8, 32], strides = [1, 1]} : vector<8x96xf32> to vector<8x32xf32>
    %622 = vector.extract_strided_slice %618 {offsets = [0, 32], sizes = [8, 32], strides = [1, 1]} : vector<8x96xf32> to vector<8x32xf32>
    %623 = vector.extract_strided_slice %618 {offsets = [0, 64], sizes = [8, 32], strides = [1, 1]} : vector<8x96xf32> to vector<8x32xf32>
    %624 = arith.mulf %622, %582 : vector<8x32xf32>
    %625 = arith.mulf %621, %620 : vector<8x32xf32>
    %626 = arith.addf %624, %625 : vector<8x32xf32>
    %627 = math.tanh %626 : vector<8x32xf32>
    %628 = arith.mulf %623, %627 : vector<8x32xf32>
    %c8_i32_112 = arith.constant 8 : i32
    %629 = arith.muli %c5_i32_107, %c8_i32_112 : i32
    %630 = tpu.assume_multiple %629, 8 : i32
    %631 = arith.index_cast %630 : i32 to index
    %c0_113 = arith.constant 0 : index
    %632 = vector.load %arg15[%631, %c0_113] : memref<64x32xf32, #tpu.memory_space<vmem>>, vector<8x32xf32>
    tpu.vector_store %arg15[%631, %c0_113], %628 {strides = array<i32>} : memref<64x32xf32, #tpu.memory_space<vmem>>, vector<8x32xf32>,
    %c6_i32_114 = arith.constant 6 : i32
    %633 = tpu.concatenate %628, %608 in 1 : vector<8x32xf32>, vector<8x32xf32> -> vector<8x64xf32>
    %634 = arith.truncf %633 : vector<8x64xf32> to vector<8x64xbf16>
    %cst_115 = arith.constant dense<0.000000e+00> : vector<8x128xf32>
    %635 = tpu.matmul %634, %5, %cst_115 {dimension_numbers = #tpu.dot_dimension_numbers<[1], [0], [0], [1], [0, 0, 1, 1], [], []>} : vector<8x64xbf16>, vector<64x128xbf16>, vector<8x128xf32> -> vector<8x128xf32>
    %636 = arith.addf %635, %9 : vector<8x128xf32>
    %637 = vector.extract_strided_slice %636 {offsets = [0, 0], sizes = [8, 96], strides = [1, 1]} : vector<8x128xf32> to vector<8x96xf32>
    %638 = arith.negf %637 : vector<8x96xf32>
    %639 = math.exp %638 : vector<8x96xf32>
    %cst_116 = arith.constant 1.000000e+00 : f32
    %640 = vector.broadcast %cst_116 : f32 to vector<8x96xf32>
    %641 = arith.addf %640, %639 : vector<8x96xf32>
    %642 = arith.divf %640, %641 : vector<8x96xf32>
    %643 = vector.extract_strided_slice %636 {offsets = [0, 96], sizes = [8, 32], strides = [1, 1]} : vector<8x128xf32> to vector<8x32xf32>
    %644 = math.tanh %643 : vector<8x32xf32>
    %645 = vector.extract_strided_slice %642 {offsets = [0, 0], sizes = [8, 32], strides = [1, 1]} : vector<8x96xf32> to vector<8x32xf32>
    %646 = vector.extract_strided_slice %642 {offsets = [0, 32], sizes = [8, 32], strides = [1, 1]} : vector<8x96xf32> to vector<8x32xf32>
    %647 = vector.extract_strided_slice %642 {offsets = [0, 64], sizes = [8, 32], strides = [1, 1]} : vector<8x96xf32> to vector<8x32xf32>
    %648 = arith.mulf %646, %606 : vector<8x32xf32>
    %649 = arith.mulf %645, %644 : vector<8x32xf32>
    %650 = arith.addf %648, %649 : vector<8x32xf32>
    %651 = math.tanh %650 : vector<8x32xf32>
    %652 = arith.mulf %647, %651 : vector<8x32xf32>
    %653 = tpu.concatenate %652, %628 in 1 : vector<8x32xf32>, vector<8x32xf32> -> vector<8x64xf32>
    %654 = arith.truncf %653 : vector<8x64xf32> to vector<8x64xbf16>
    %cst_117 = arith.constant dense<0.000000e+00> : vector<8x128xf32>
    %655 = tpu.matmul %654, %6, %cst_117 {dimension_numbers = #tpu.dot_dimension_numbers<[1], [0], [0], [1], [0, 0, 1, 1], [], []>} : vector<8x64xbf16>, vector<64x128xbf16>, vector<8x128xf32> -> vector<8x128xf32>
    %656 = arith.addf %655, %12 : vector<8x128xf32>
    %657 = vector.extract_strided_slice %656 {offsets = [0, 0], sizes = [8, 96], strides = [1, 1]} : vector<8x128xf32> to vector<8x96xf32>
    %658 = arith.negf %657 : vector<8x96xf32>
    %659 = math.exp %658 : vector<8x96xf32>
    %cst_118 = arith.constant 1.000000e+00 : f32
    %660 = vector.broadcast %cst_118 : f32 to vector<8x96xf32>
    %661 = arith.addf %660, %659 : vector<8x96xf32>
    %662 = arith.divf %660, %661 : vector<8x96xf32>
    %663 = vector.extract_strided_slice %656 {offsets = [0, 96], sizes = [8, 32], strides = [1, 1]} : vector<8x128xf32> to vector<8x32xf32>
    %664 = math.tanh %663 : vector<8x32xf32>
    %665 = vector.extract_strided_slice %662 {offsets = [0, 0], sizes = [8, 32], strides = [1, 1]} : vector<8x96xf32> to vector<8x32xf32>
    %666 = vector.extract_strided_slice %662 {offsets = [0, 32], sizes = [8, 32], strides = [1, 1]} : vector<8x96xf32> to vector<8x32xf32>
    %667 = vector.extract_strided_slice %662 {offsets = [0, 64], sizes = [8, 32], strides = [1, 1]} : vector<8x96xf32> to vector<8x32xf32>
    %668 = arith.mulf %666, %626 : vector<8x32xf32>
    %669 = arith.mulf %665, %664 : vector<8x32xf32>
    %670 = arith.addf %668, %669 : vector<8x32xf32>
    %671 = math.tanh %670 : vector<8x32xf32>
    %672 = arith.mulf %667, %671 : vector<8x32xf32>
    %c8_i32_119 = arith.constant 8 : i32
    %673 = arith.muli %c6_i32_114, %c8_i32_119 : i32
    %674 = tpu.assume_multiple %673, 8 : i32
    %675 = arith.index_cast %674 : i32 to index
    %c0_120 = arith.constant 0 : index
    %676 = vector.load %arg15[%675, %c0_120] : memref<64x32xf32, #tpu.memory_space<vmem>>, vector<8x32xf32>
    tpu.vector_store %arg15[%675, %c0_120], %672 {strides = array<i32>} : memref<64x32xf32, #tpu.memory_space<vmem>>, vector<8x32xf32>,
    %c7_i32_121 = arith.constant 7 : i32
    %677 = tpu.concatenate %672, %652 in 1 : vector<8x32xf32>, vector<8x32xf32> -> vector<8x64xf32>
    %678 = arith.truncf %677 : vector<8x64xf32> to vector<8x64xbf16>
    %cst_122 = arith.constant dense<0.000000e+00> : vector<8x128xf32>
    %679 = tpu.matmul %678, %5, %cst_122 {dimension_numbers = #tpu.dot_dimension_numbers<[1], [0], [0], [1], [0, 0, 1, 1], [], []>} : vector<8x64xbf16>, vector<64x128xbf16>, vector<8x128xf32> -> vector<8x128xf32>
    %680 = arith.addf %679, %9 : vector<8x128xf32>
    %681 = vector.extract_strided_slice %680 {offsets = [0, 0], sizes = [8, 96], strides = [1, 1]} : vector<8x128xf32> to vector<8x96xf32>
    %682 = arith.negf %681 : vector<8x96xf32>
    %683 = math.exp %682 : vector<8x96xf32>
    %cst_123 = arith.constant 1.000000e+00 : f32
    %684 = vector.broadcast %cst_123 : f32 to vector<8x96xf32>
    %685 = arith.addf %684, %683 : vector<8x96xf32>
    %686 = arith.divf %684, %685 : vector<8x96xf32>
    %687 = vector.extract_strided_slice %680 {offsets = [0, 96], sizes = [8, 32], strides = [1, 1]} : vector<8x128xf32> to vector<8x32xf32>
    %688 = math.tanh %687 : vector<8x32xf32>
    %689 = vector.extract_strided_slice %686 {offsets = [0, 0], sizes = [8, 32], strides = [1, 1]} : vector<8x96xf32> to vector<8x32xf32>
    %690 = vector.extract_strided_slice %686 {offsets = [0, 32], sizes = [8, 32], strides = [1, 1]} : vector<8x96xf32> to vector<8x32xf32>
    %691 = vector.extract_strided_slice %686 {offsets = [0, 64], sizes = [8, 32], strides = [1, 1]} : vector<8x96xf32> to vector<8x32xf32>
    %692 = arith.mulf %690, %650 : vector<8x32xf32>
    %693 = arith.mulf %689, %688 : vector<8x32xf32>
    %694 = arith.addf %692, %693 : vector<8x32xf32>
    %695 = math.tanh %694 : vector<8x32xf32>
    %696 = arith.mulf %691, %695 : vector<8x32xf32>
    %697 = tpu.concatenate %696, %672 in 1 : vector<8x32xf32>, vector<8x32xf32> -> vector<8x64xf32>
    %698 = arith.truncf %697 : vector<8x64xf32> to vector<8x64xbf16>
    %cst_124 = arith.constant dense<0.000000e+00> : vector<8x128xf32>
    %699 = tpu.matmul %698, %6, %cst_124 {dimension_numbers = #tpu.dot_dimension_numbers<[1], [0], [0], [1], [0, 0, 1, 1], [], []>} : vector<8x64xbf16>, vector<64x128xbf16>, vector<8x128xf32> -> vector<8x128xf32>
    %700 = arith.addf %699, %12 : vector<8x128xf32>
    %701 = vector.extract_strided_slice %700 {offsets = [0, 0], sizes = [8, 96], strides = [1, 1]} : vector<8x128xf32> to vector<8x96xf32>
    %702 = arith.negf %701 : vector<8x96xf32>
    %703 = math.exp %702 : vector<8x96xf32>
    %cst_125 = arith.constant 1.000000e+00 : f32
    %704 = vector.broadcast %cst_125 : f32 to vector<8x96xf32>
    %705 = arith.addf %704, %703 : vector<8x96xf32>
    %706 = arith.divf %704, %705 : vector<8x96xf32>
    %707 = vector.extract_strided_slice %700 {offsets = [0, 96], sizes = [8, 32], strides = [1, 1]} : vector<8x128xf32> to vector<8x32xf32>
    %708 = math.tanh %707 : vector<8x32xf32>
    %709 = vector.extract_strided_slice %706 {offsets = [0, 0], sizes = [8, 32], strides = [1, 1]} : vector<8x96xf32> to vector<8x32xf32>
    %710 = vector.extract_strided_slice %706 {offsets = [0, 32], sizes = [8, 32], strides = [1, 1]} : vector<8x96xf32> to vector<8x32xf32>
    %711 = vector.extract_strided_slice %706 {offsets = [0, 64], sizes = [8, 32], strides = [1, 1]} : vector<8x96xf32> to vector<8x32xf32>
    %712 = arith.mulf %710, %670 : vector<8x32xf32>
    %713 = arith.mulf %709, %708 : vector<8x32xf32>
    %714 = arith.addf %712, %713 : vector<8x32xf32>
    %715 = math.tanh %714 : vector<8x32xf32>
    %716 = arith.mulf %711, %715 : vector<8x32xf32>
    %c8_i32_126 = arith.constant 8 : i32
    %717 = arith.muli %c7_i32_121, %c8_i32_126 : i32
    %718 = tpu.assume_multiple %717, 8 : i32
    %719 = arith.index_cast %718 : i32 to index
    %c0_127 = arith.constant 0 : index
    %720 = vector.load %arg15[%719, %c0_127] : memref<64x32xf32, #tpu.memory_space<vmem>>, vector<8x32xf32>
    tpu.vector_store %arg15[%719, %c0_127], %716 {strides = array<i32>} : memref<64x32xf32, #tpu.memory_space<vmem>>, vector<8x32xf32>,
    %c8_i32_128 = arith.constant 8 : i32
    %c0_129 = arith.constant 0 : index
    %c0_130 = arith.constant 0 : index
    %721 = vector.load %arg15[%c0_129, %c0_130] : memref<64x32xf32, #tpu.memory_space<vmem>>, vector<64x32xf32>
    %c0_131 = arith.constant 0 : index
    %c0_132 = arith.constant 0 : index
    %722 = vector.load %arg11[%c0_131, %c0_132] : memref<32x2xf32, #tpu.memory_space<vmem>>, vector<32x2xf32>
    %cst_133 = arith.constant dense<0.000000e+00> : vector<64x2xf32>
    %723 = tpu.matmul %721, %722, %cst_133 {dimension_numbers = #tpu.dot_dimension_numbers<[1], [0], [0], [1], [0, 0, 1, 1], [], []>} : vector<64x32xf32>, vector<32x2xf32>, vector<64x2xf32> -> vector<64x2xf32>
    %c0_134 = arith.constant 0 : index
    %c0_135 = arith.constant 0 : index
    %724 = vector.load %arg12[%c0_134, %c0_135] : memref<1x2xf32, #tpu.memory_space<vmem>>, vector<1x2xf32>
    %725 = vector.shape_cast %724 : vector<1x2xf32> to vector<1x2xf32>
    %726 = vector.broadcast %725 : vector<1x2xf32> to vector<64x2xf32>
    %727 = arith.addf %723, %726 : vector<64x2xf32>
    %c0_136 = arith.constant 0 : index
    %c0_137 = arith.constant 0 : index
    %728 = vector.load %arg13[%c0_136, %c0_137] : memref<64x2xf32, #tpu.memory_space<vmem>>, vector<64x2xf32>
    tpu.vector_store %arg13[%c0_136, %c0_137], %727 {strides = array<i32>} : memref<64x2xf32, #tpu.memory_space<vmem>>, vector<64x2xf32>,
    return
  }
}

</mosaic_0001>

<llo_original>
// kernel: tpu_custom_call.1
$region0: #{tpu_custom_call.1}
  #allocation0 [shape = 'u32[]', space=smem, size = 0x4, offset = 0x4, fixed_abs, tag = 'smem constant byte address 0x4 - core index']
  #allocation1 [shape = 'u32[72,128]{1,0:T(1,128)}', space=vmem, size = 0x9000, scoped, tag = 'internal scratch']
  #allocation2 [shape = 'f32[64,128]{1,0:T(8,128)}', space=vmem, size = 0x8000, scoped, tag = 'scratch operand']
  #allocation3 [shape = 'f32[64,32]{1,0:T(8,128)}', space=vmem, size = 0x8000, scoped, tag = 'scratch operand']
  %s0 = inlined_call_operand.vmem [shape: bf16[64,48], index: 0, kind: input, shape index: {}]
  %s1 = inlined_call_operand.vmem [shape: bf16[48,128], index: 1, kind: input, shape index: {}]
  %s2 = inlined_call_operand.hbm [shape: bf16[32,128], index: 2, kind: input, shape index: {}]
  %s3 = inlined_call_operand.vmem [shape: f32[1,128], index: 3, kind: input, shape index: {}]
  %s4 = inlined_call_operand.vmem [shape: bf16[64,128], index: 4, kind: input, shape index: {}]
  %s5 = inlined_call_operand.vmem [shape: f32[1,128], index: 5, kind: input, shape index: {}]
  %s6 = inlined_call_operand.vmem [shape: bf16[64,128], index: 6, kind: input, shape index: {}]
  %s7 = inlined_call_operand.hbm [shape: bf16[64,128], index: 7, kind: input, shape index: {}]
  %s8 = inlined_call_operand.vmem [shape: f32[1,128], index: 8, kind: input, shape index: {}]
  %s9 = inlined_call_operand.vmem [shape: f32[1,128], index: 9, kind: input, shape index: {}]
  %s10 = inlined_call_operand.vmem [shape: f32[1,32], index: 10, kind: input, shape index: {}]
  %s11 = inlined_call_operand.vmem [shape: f32[32,2], index: 11, kind: input, shape index: {}]
  %s12 = inlined_call_operand.vmem [shape: f32[1,2], index: 12, kind: input, shape index: {}]
  %s13 = inlined_call_operand.vmem [shape: f32[64,2], index: 13, kind: output, shape index: {}]
  %s14 = sld [smem:[#allocation0]]
  $region70: #{tpu_custom_call.1} parent=0
    _
  %s16 = ssub.s32 1, %s14
  %s17 = scalar_select 0, %s16, %s14
  $region1: #{tpu_custom_call.1} parent=0
    #allocation4 [shape = 'u8[8192]{0}', space=vmem, size = 0x2000, scoped, tag = 'input window, operand 2, single buffered']
    #allocation5 [shape = 's32[1]{0}', space=sflag, size = 0x4, scoped, tag = 'scoped memory for tpu_custom_call.1']
    #allocation6 [shape = 'u8[16384]{0}', space=vmem, size = 0x4000, scoped, tag = 'input window, operand 7, single buffered']
    #allocation7 [shape = 's32[1]{0}', space=sflag, size = 0x4, scoped, tag = 'scoped memory for tpu_custom_call.1']
    %18 = vsyncpa [#allocation5], 0
    %19 = vsyncpa [#allocation7], 0
    // Predicated region
    $region2: #{tpu_custom_call.1} parent=1 // pred_check
      _
    $region3: #{tpu_custom_call.1} parent=1 // pred_check_branch
      %21 = sbr.rel (0) target = $region5
    $region4: #{tpu_custom_call.1} parent=1 // pred_region
      _
    $region5: #{tpu_custom_call.1} parent=1 // pred_fallthru
      _
    // Predicated region
    $region6: #{tpu_custom_call.1} parent=1 // pred_check
      _
    $region7: #{tpu_custom_call.1} parent=1 // pred_check_branch
      %23 = sbr.rel (0) target = $region9
    $region8: #{tpu_custom_call.1} parent=1 // pred_region
      _
    $region9: #{tpu_custom_call.1} parent=1 // pred_fallthru
      _
    // Predicated region
    $region10: #{tpu_custom_call.1} parent=1 // pred_check
      _
    $region11: #{tpu_custom_call.1} parent=1 // pred_check_branch
      %25 = sbr.rel (0) target = $region13
    $region12: #{tpu_custom_call.1} parent=1 // pred_region
      %27 = vsyncadd [#allocation5], 0
      %s28 = sshll.u32 %s2, 4
      %s29 = int_to_ptr.hbm [resolvable:$true] %s28
      %s30 = sshll.u32 [#allocation4], 4
      %s31 = int_to_ptr.vmem [resolvable:$true] %s30
      %36 = dma.hbm_to_vmem [thread:$0]  %s29, 256, %s31, [#allocation5], 64, 64, 4
    $region13: #{tpu_custom_call.1} parent=1 // pred_fallthru
      _
    // Predicated region
    $region14: #{tpu_custom_call.1} parent=1 // pred_check
      _
    $region15: #{tpu_custom_call.1} parent=1 // pred_check_branch
      %38 = sbr.rel (0) target = $region17
    $region16: #{tpu_custom_call.1} parent=1 // pred_region
      _
    $region17: #{tpu_custom_call.1} parent=1 // pred_fallthru
      _
    // Predicated region
    $region18: #{tpu_custom_call.1} parent=1 // pred_check
      _
    $region19: #{tpu_custom_call.1} parent=1 // pred_check_branch
      %40 = sbr.rel (0) target = $region21
    $region20: #{tpu_custom_call.1} parent=1 // pred_region
      _
    $region21: #{tpu_custom_call.1} parent=1 // pred_fallthru
      _
    // Predicated region
    $region22: #{tpu_custom_call.1} parent=1 // pred_check
      _
    $region23: #{tpu_custom_call.1} parent=1 // pred_check_branch
      %42 = sbr.rel (0) target = $region25
    $region24: #{tpu_custom_call.1} parent=1 // pred_region
      _
    $region25: #{tpu_custom_call.1} parent=1 // pred_fallthru
      _
    // Predicated region
    $region26: #{tpu_custom_call.1} parent=1 // pred_check
      _
    $region27: #{tpu_custom_call.1} parent=1 // pred_check_branch
      %44 = sbr.rel (0) target = $region29
    $region28: #{tpu_custom_call.1} parent=1 // pred_region
      _
    $region29: #{tpu_custom_call.1} parent=1 // pred_fallthru
      _
    // Predicated region
    $region30: #{tpu_custom_call.1} parent=1 // pred_check
      _
    $region31: #{tpu_custom_call.1} parent=1 // pred_check_branch
      %46 = sbr.rel (0) target = $region33
    $region32: #{tpu_custom_call.1} parent=1 // pred_region
      %48 = vsyncadd [#allocation7], 0
      %s49 = sshll.u32 %s7, 4
      %s50 = int_to_ptr.hbm [resolvable:$true] %s49
      %s51 = sshll.u32 [#allocation6], 4
      %s52 = int_to_ptr.vmem [resolvable:$true] %s51
      %57 = dma.hbm_to_vmem [thread:$0]  %s50, 512, %s52, [#allocation7], 64, 64, 4
    $region33: #{tpu_custom_call.1} parent=1 // pred_fallthru
      _
    // Predicated region
    $region34: #{tpu_custom_call.1} parent=1 // pred_check
      _
    $region35: #{tpu_custom_call.1} parent=1 // pred_check_branch
      %59 = sbr.rel (0) target = $region37
    $region36: #{tpu_custom_call.1} parent=1 // pred_region
      _
    $region37: #{tpu_custom_call.1} parent=1 // pred_fallthru
      _
    // Predicated region
    $region38: #{tpu_custom_call.1} parent=1 // pred_check
      _
    $region39: #{tpu_custom_call.1} parent=1 // pred_check_branch
      %61 = sbr.rel (0) target = $region41
    $region40: #{tpu_custom_call.1} parent=1 // pred_region
      _
    $region41: #{tpu_custom_call.1} parent=1 // pred_fallthru
      _
    // Predicated region
    $region42: #{tpu_custom_call.1} parent=1 // pred_check
      _
    $region43: #{tpu_custom_call.1} parent=1 // pred_check_branch
      %63 = sbr.rel (0) target = $region45
    $region44: #{tpu_custom_call.1} parent=1 // pred_region
      _
    $region45: #{tpu_custom_call.1} parent=1 // pred_fallthru
      _
    // Predicated region
    $region46: #{tpu_custom_call.1} parent=1 // pred_check
      _
    $region47: #{tpu_custom_call.1} parent=1 // pred_check_branch
      %65 = sbr.rel (0) target = $region49
    $region48: #{tpu_custom_call.1} parent=1 // pred_region
      _
    $region49: #{tpu_custom_call.1} parent=1 // pred_fallthru
      _
    // Predicated region
    $region50: #{tpu_custom_call.1} parent=1 // pred_check
      _
    $region51: #{tpu_custom_call.1} parent=1 // pred_check_branch
      %67 = sbr.rel (0) target = $region53
    $region52: #{tpu_custom_call.1} parent=1 // pred_region
      _
    $region53: #{tpu_custom_call.1} parent=1 // pred_fallthru
      _
    // Predicated region
    $region54: #{tpu_custom_call.1} parent=1 // pred_check
      _
    $region55: #{tpu_custom_call.1} parent=1 // pred_check_branch
      %69 = sbr.rel (0) target = $region57
    $region56: #{tpu_custom_call.1} parent=1 // pred_region
      %71 = dma.done [#allocation5], 256
    $region57: #{tpu_custom_call.1} parent=1 // pred_fallthru
      _
    // Predicated region
    $region58: #{tpu_custom_call.1} parent=1 // pred_check
      _
    $region59: #{tpu_custom_call.1} parent=1 // pred_check_branch
      %73 = sbr.rel (0) target = $region61
    $region60: #{tpu_custom_call.1} parent=1 // pred_region
      %75 = dma.done [#allocation7], 512
    $region61: #{tpu_custom_call.1} parent=1 // pred_fallthru
      _
    %v77 = vld [vmem:[#allocation4] sm:$0xf]
    %v78 = vld [vmem:[#allocation4 + $0x4] sm:$0xf]
    %v79 = vld [vmem:[#allocation4 + $0x8] sm:$0xf]
    %v80 = vld [vmem:[#allocation4 + $0xc] sm:$0xf]
    %v81 = vld [vmem:[%s4] sm:$0xf]
    %v82 = vld [vmem:[%s4 + $0x4] sm:$0xf]
    %v83 = vld [vmem:[%s4 + $0x8] sm:$0xf]
    %v84 = vld [vmem:[%s4 + $0xc] sm:$0xf]
    %v85 = vld [vmem:[%s4 + $0x10] sm:$0xf]
    %v86 = vld [vmem:[%s4 + $0x14] sm:$0xf]
    %v87 = vld [vmem:[%s4 + $0x18] sm:$0xf]
    %v88 = vld [vmem:[%s4 + $0x1c] sm:$0xf]
    %v89 = vld [vmem:[%s5] sm:$0x1]
    %v91 = vperm.slane %v89, 0
    %v93 = vld [vmem:[%s6] sm:$0xf]
    %v94 = vld [vmem:[%s6 + $0x4] sm:$0xf]
    %v95 = vld [vmem:[%s6 + $0x8] sm:$0xf]
    %v96 = vld [vmem:[%s6 + $0xc] sm:$0xf]
    %v97 = vld [vmem:[%s6 + $0x10] sm:$0xf]
    %v98 = vld [vmem:[%s6 + $0x14] sm:$0xf]
    %v99 = vld [vmem:[%s6 + $0x18] sm:$0xf]
    %v100 = vld [vmem:[%s6 + $0x1c] sm:$0xf]
    %v101 = vld [vmem:[#allocation6] sm:$0xf]
    %v102 = vld [vmem:[#allocation6 + $0x4] sm:$0xf]
    %v103 = vld [vmem:[#allocation6 + $0x8] sm:$0xf]
    %v104 = vld [vmem:[#allocation6 + $0xc] sm:$0xf]
    %v105 = vld [vmem:[#allocation6 + $0x10] sm:$0xf]
    %v106 = vld [vmem:[#allocation6 + $0x14] sm:$0xf]
    %v107 = vld [vmem:[#allocation6 + $0x18] sm:$0xf]
    %v108 = vld [vmem:[#allocation6 + $0x1c] sm:$0xf]
    %v109 = vld [vmem:[%s8] sm:$0x1]
    %v111 = vperm.slane %v109, 0
    %v113 = vld [vmem:[%s9] sm:$0x1]
    %v115 = vperm.slane %v113, 0
    %v117 = vld [vmem:[%s0] sm:$0xf]
    %v118 = vld [vmem:[%s0 + $0x4] sm:$0xf]
    %v119 = vld [vmem:[%s0 + $0x8] sm:$0xf]
    %v120 = vld [vmem:[%s0 + $0xc] sm:$0xf]
    %v121 = vld [vmem:[%s0 + $0x10] sm:$0xf]
    %v122 = vld [vmem:[%s0 + $0x14] sm:$0xf]
    %v123 = vld [vmem:[%s0 + $0x18] sm:$0xf]
    %v124 = vld [vmem:[%s0 + $0x1c] sm:$0xf]
    %v125 = vld [vmem:[%s1] sm:$0xf]
    %v126 = vld [vmem:[%s1 + $0x4] sm:$0xf]
    %v127 = vld [vmem:[%s1 + $0x8] sm:$0xf]
    %v128 = vld [vmem:[%s1 + $0xc] sm:$0xf]
    %v129 = vld [vmem:[%s1 + $0x10] sm:$0xf]
    %v130 = vld [vmem:[%s1 + $0x14] sm:$0xf]
    %v131 = vld [vmem:[%s3] sm:$0x1]
    %v133 = vperm.slane %v131, 0
    %v143 = vunpack.c.l.b16 %v117
    %v144 = vunpack.c.l.b16 %v118
    %v145 = vunpack.c.l.b16 %v119
    %v146 = vunpack.c.l.b16 %v120
    %v147 = vunpack.c.l.b16 %v121
    %v148 = vunpack.c.l.b16 %v122
    %v149 = vunpack.c.l.b16 %v123
    %v150 = vunpack.c.l.b16 %v124
    %v151 = vpack.c.b16 %v144, %v143
    %v152 = vpack.c.b16 %v146, %v145
    %v153 = vpack.c.b16 %v148, %v147
    %v154 = vpack.c.b16 %v150, %v149
    %v161 = vunpack.c.l.b16 %v125
    %v162 = vunpack.c.l.b16 %v126
    %v163 = vunpack.c.l.b16 %v127
    %v164 = vunpack.c.l.b16 %v128
    %v165 = vunpack.c.l.b16 %v129
    %v166 = vunpack.c.l.b16 %v130
    %v167 = vpack.c.b16 %v162, %v161
    %v168 = vpack.c.b16 %v164, %v163
    %v169 = vpack.c.b16 %v166, %v165
    %vm173 = vcmask 392192
    %v175 = vsel %vm173, %v151, 0
    %v178 = vsel %vm173, %v152, 0
    %v181 = vsel %vm173, %v153, 0
    %v184 = vsel %vm173, %v154, 0
    %186 = vmatpush.bf16.msra.mxu0 0
    %187 = vmatpush.bf16.msra.mxu0 0
    %188 = vmatpush.bf16.msra.mxu0 0
    %189 = vmatpush.bf16.msra.mxu0 0
    %190 = vmatpush.bf16.msra.mxu0 0
    %191 = vmatpush.bf16.msra.mxu0 %v169
    %192 = vmatpush.bf16.msra.mxu0 %v168
    %193 = vmatpush.bf16.msra.mxu0 %v167
    %194 = vmatmul.bf16.gmra.mxu0 %v175
    %v195 = vpop.f32.mrf.mxu0
    %v196 = vadd.f32 %v133, %v195
    %v197 = vpop.f32.mrf.mxu0
    %v198 = vadd.f32 %v133, %v197
    %199 = vmatmul.bf16.gmra.mxu0 %v178
    %v200 = vpop.f32.mrf.mxu0
    %v201 = vadd.f32 %v133, %v200
    %v202 = vpop.f32.mrf.mxu0
    %v203 = vadd.f32 %v133, %v202
    %204 = vmatmul.bf16.gmra.mxu0 %v181
    %v205 = vpop.f32.mrf.mxu0
    %v206 = vadd.f32 %v133, %v205
    %v207 = vpop.f32.mrf.mxu0
    %v208 = vadd.f32 %v133, %v207
    %209 = vmatmul.bf16.gmra.mxu0 %v184
    %v210 = vpop.f32.mrf.mxu0
    %v211 = vadd.f32 %v133, %v210
    %v212 = vpop.f32.mrf.mxu0
    %v213 = vadd.f32 %v133, %v212
    %214 = vdwg.mxu0
    %215 = vst [vmem:[#allocation2] sm:$0xff] %v196
    %216 = vst [vmem:[#allocation2 + $0x8] sm:$0xff] %v198
    %217 = vst [vmem:[#allocation2 + $0x10] sm:$0xff] %v201
    %218 = vst [vmem:[#allocation2 + $0x18] sm:$0xff] %v203
    %219 = vst [vmem:[#allocation2 + $0x20] sm:$0xff] %v206
    %220 = vst [vmem:[#allocation2 + $0x28] sm:$0xff] %v208
    %221 = vst [vmem:[#allocation2 + $0x30] sm:$0xff] %v211
    %222 = vst [vmem:[#allocation2 + $0x38] sm:$0xff] %v213
    %v223 = vld [vmem:[#allocation2] sm:$0xff]
    %v228 = vunpack.c.l.b16 %v77
    %v229 = vunpack.c.l.b16 %v78
    %v230 = vunpack.c.l.b16 %v79
    %v231 = vunpack.c.l.b16 %v80
    %v232 = vpack.c.b16 %v229, %v228
    %v233 = vpack.c.b16 %v231, %v230
    %vm236 = vcmask 261120
    %v238 = vsel %vm236, 0, 0
    %240 = vmatpush.bf16.msra.mxu0 0
    %241 = vmatpush.bf16.msra.mxu0 0
    %242 = vmatpush.bf16.msra.mxu0 0
    %243 = vmatpush.bf16.msra.mxu0 0
    %244 = vmatpush.bf16.msra.mxu0 0
    %245 = vmatpush.bf16.msra.mxu0 0
    %246 = vmatpush.bf16.msra.mxu0 %v233
    %247 = vmatpush.bf16.msra.mxu0 %v232
    %248 = vmatmul.bf16.gmra.mxu0 %v238
    %v249 = vpop.f32.mrf.mxu0
    %v250 = vadd.f32 0.0, %v249
    %v251 = vpop.f32.mrf.mxu0
    %252 = vdwg.mxu0
    %v253 = vadd.f32 %v223, %v250
    %v254 = vxor.u32 %v253, 2147483648
    %v255 = vmul.f32 %v254, 1.442695
    %v256 = vpow.pop %v255
    %v257 = vadd.f32 %v256, 1.0
    %v258 = vrcp.pop %v257
    %v259 = vmul.f32 %v257, %v258
    %v260 = vsub.f32 1.0, %v259
    %v261 = vmul.f32 %v258, %v260
    %v262 = vadd.f32 %v258, %v261
    %vm263 = vweird.f32 %v257
    %vm264 = vweird.f32 %v258
    %vm265 = vmor %vm263, %vm264
    %v266 = vsel %vm265, %v258, %v262
    %v267 = vand.u32 2147483647, %v257
    %vm268 = vcmp.eq.f32.partialorder %v267, 8.507059e+37
    %v269 = vand.u32 %v257, 2147483648
    %v270 = vor.u32 1.1754944e-38, %v269
    %v271 = vsel %vm268, %v270, %v266
    %v272 = vmul.f32 1.0, %v271
    %v273 = vtanh.pop %v253
    %v274 = vmul.f32 %v272, 0.0
    %276 = vrot.lane.b32.xlu0 %v273, 32
    %v277 = vpop.permute.xlu0 %276
    %v279 = vmul.f32 %v272, %v277
    %281 = vrot.lane.b32.xlu0 %v279, 32
    %v282 = vpop.permute.xlu0 %281
    %v284 = vadd.f32 %v274, %v282
    %v285 = vtanh.pop %v284
    %287 = vrot.lane.b32.xlu0 %v285, 32
    %v288 = vpop.permute.xlu0 %287
    %v290 = vmul.f32 %v272, %v288
    %292 = vrot.lane.b32.xlu0 %v290, 64
    %v293 = vpop.permute.xlu0 %292
    %v295 = vsel %vm236, %v293, 0.0
    %v296 = vpack.c.bf16 %v295, %v295
    %v305 = vunpack.c.l.b16 %v81
    %v306 = vunpack.c.l.b16 %v82
    %v307 = vunpack.c.l.b16 %v83
    %v308 = vunpack.c.l.b16 %v84
    %v309 = vunpack.c.l.b16 %v85
    %v310 = vunpack.c.l.b16 %v86
    %v311 = vunpack.c.l.b16 %v87
    %v312 = vunpack.c.l.b16 %v88
    %v313 = vpack.c.b16 %v306, %v305
    %v314 = vpack.c.b16 %v308, %v307
    %v315 = vpack.c.b16 %v310, %v309
    %v316 = vpack.c.b16 %v312, %v311
    %vm321 = vcmask 523264
    %v323 = vsel %vm321, %v296, 0
    %325 = vmatpush.bf16.msra.mxu0 0
    %326 = vmatpush.bf16.msra.mxu0 0
    %327 = vmatpush.bf16.msra.mxu0 0
    %328 = vmatpush.bf16.msra.mxu0 0
    %329 = vmatpush.bf16.msra.mxu0 %v316
    %330 = vmatpush.bf16.msra.mxu0 %v315
    %331 = vmatpush.bf16.msra.mxu0 %v314
    %332 = vmatpush.bf16.msra.mxu0 %v313
    %333 = vmatmul.bf16.gmra.mxu0 %v323
    %v334 = vpop.f32.mrf.mxu0
    %v335 = vadd.f32 %v91, %v334
    %v336 = vpop.f32.mrf.mxu0
    %337 = vdwg.mxu0
    %v338 = vxor.u32 %v335, 2147483648
    %v339 = vmul.f32 %v338, 1.442695
    %v340 = vpow.pop %v339
    %v341 = vadd.f32 %v340, 1.0
    %v342 = vrcp.pop %v341
    %v343 = vmul.f32 %v341, %v342
    %v344 = vsub.f32 1.0, %v343
    %v345 = vmul.f32 %v342, %v344
    %v346 = vadd.f32 %v342, %v345
    %vm347 = vweird.f32 %v341
    %vm348 = vweird.f32 %v342
    %vm349 = vmor %vm347, %vm348
    %v350 = vsel %vm349, %v342, %v346
    %v351 = vand.u32 2147483647, %v341
    %vm352 = vcmp.eq.f32.partialorder %v351, 8.507059e+37
    %v353 = vand.u32 %v341, 2147483648
    %v354 = vor.u32 1.1754944e-38, %v353
    %v355 = vsel %vm352, %v354, %v350
    %v356 = vmul.f32 1.0, %v355
    %v357 = vtanh.pop %v335
    %v358 = vmul.f32 %v356, 0.0
    %360 = vrot.lane.b32.xlu0 %v357, 32
    %v361 = vpop.permute.xlu0 %360
    %v363 = vmul.f32 %v356, %v361
    %365 = vrot.lane.b32.xlu0 %v363, 32
    %v366 = vpop.permute.xlu0 %365
    %v368 = vadd.f32 %v358, %v366
    %v369 = vtanh.pop %v368
    %371 = vrot.lane.b32.xlu0 %v369, 32
    %v372 = vpop.permute.xlu0 %371
    %v374 = vmul.f32 %v356, %v372
    %s375 = scalar_lea.vmem [#allocation2], 8
    %v376 = vld [vmem:[%s375] sm:$0xff]
    %v377 = vpack.c.bf16 %v290, %v290
    %379 = vrot.lane.b32.xlu0 %v377, 64
    %v380 = vpop.permute.xlu0 %379
    %v382 = vsel %vm236, %v380, 0
    %384 = vmatpush.bf16.msra.mxu0 0
    %385 = vmatpush.bf16.msra.mxu0 0
    %386 = vmatpush.bf16.msra.mxu0 0
    %387 = vmatpush.bf16.msra.mxu0 0
    %388 = vmatpush.bf16.msra.mxu0 0
    %389 = vmatpush.bf16.msra.mxu0 0
    %390 = vmatpush.bf16.msra.mxu0 %v233
    %391 = vmatpush.bf16.msra.mxu0 %v232
    %392 = vmatmul.bf16.gmra.mxu0 %v382
    %v393 = vpop.f32.mrf.mxu0
    %v394 = vadd.f32 0.0, %v393
    %v395 = vpop.f32.mrf.mxu0
    %396 = vdwg.mxu0
    %v397 = vadd.f32 %v376, %v394
    %v398 = vxor.u32 %v397, 2147483648
    %v399 = vmul.f32 %v398, 1.442695
    %v400 = vpow.pop %v399
    %v401 = vadd.f32 %v400, 1.0
    %v402 = vrcp.pop %v401
    %v403 = vmul.f32 %v401, %v402
    %v404 = vsub.f32 1.0, %v403
    %v405 = vmul.f32 %v402, %v404
    %v406 = vadd.f32 %v402, %v405
    %vm407 = vweird.f32 %v401
    %vm408 = vweird.f32 %v402
    %vm409 = vmor %vm407, %vm408
    %v410 = vsel %vm409, %v402, %v406
    %v411 = vand.u32 2147483647, %v401
    %vm412 = vcmp.eq.f32.partialorder %v411, 8.507059e+37
    %v413 = vand.u32 %v401, 2147483648
    %v414 = vor.u32 1.1754944e-38, %v413
    %v415 = vsel %vm412, %v414, %v410
    %v416 = vmul.f32 1.0, %v415
    %v417 = vtanh.pop %v397
    %v418 = vmul.f32 %v416, %v284
    %420 = vrot.lane.b32.xlu0 %v417, 32
    %v421 = vpop.permute.xlu0 %420
    %v423 = vmul.f32 %v416, %v421
    %425 = vrot.lane.b32.xlu0 %v423, 32
    %v426 = vpop.permute.xlu0 %425
    %v428 = vadd.f32 %v418, %v426
    %v429 = vtanh.pop %v428
    %431 = vrot.lane.b32.xlu0 %v429, 32
    %v432 = vpop.permute.xlu0 %431
    %v434 = vmul.f32 %v416, %v432
    %436 = vrot.lane.b32.xlu0 %v434, 64
    %v437 = vpop.permute.xlu0 %436
    %440 = vrot.lane.b32.xlu0 %v374, 96
    %v441 = vpop.permute.xlu0 %440
    %v443 = vsel %vm236, %v437, %v441
    %v444 = vpack.c.bf16 %v443, %v443
    %v446 = vsel %vm321, %v444, 0
    %448 = vmatpush.bf16.msra.mxu0 0
    %449 = vmatpush.bf16.msra.mxu0 0
    %450 = vmatpush.bf16.msra.mxu0 0
    %451 = vmatpush.bf16.msra.mxu0 0
    %452 = vmatpush.bf16.msra.mxu0 %v316
    %453 = vmatpush.bf16.msra.mxu0 %v315
    %454 = vmatpush.bf16.msra.mxu0 %v314
    %455 = vmatpush.bf16.msra.mxu0 %v313
    %456 = vmatmul.bf16.gmra.mxu0 %v446
    %v457 = vpop.f32.mrf.mxu0
    %v458 = vadd.f32 %v91, %v457
    %v459 = vpop.f32.mrf.mxu0
    %460 = vdwg.mxu0
    %v461 = vxor.u32 %v458, 2147483648
    %v462 = vmul.f32 %v461, 1.442695
    %v463 = vpow.pop %v462
    %v464 = vadd.f32 %v463, 1.0
    %v465 = vrcp.pop %v464
    %v466 = vmul.f32 %v464, %v465
    %v467 = vsub.f32 1.0, %v466
    %v468 = vmul.f32 %v465, %v467
    %v469 = vadd.f32 %v465, %v468
    %vm470 = vweird.f32 %v464
    %vm471 = vweird.f32 %v465
    %vm472 = vmor %vm470, %vm471
    %v473 = vsel %vm472, %v465, %v469
    %v474 = vand.u32 2147483647, %v464
    %vm475 = vcmp.eq.f32.partialorder %v474, 8.507059e+37
    %v476 = vand.u32 %v464, 2147483648
    %v477 = vor.u32 1.1754944e-38, %v476
    %v478 = vsel %vm475, %v477, %v473
    %v479 = vmul.f32 1.0, %v478
    %v480 = vtanh.pop %v458
    %v481 = vmul.f32 %v479, %v368
    %483 = vrot.lane.b32.xlu0 %v480, 32
    %v484 = vpop.permute.xlu0 %483
    %v486 = vmul.f32 %v479, %v484
    %488 = vrot.lane.b32.xlu0 %v486, 32
    %v489 = vpop.permute.xlu0 %488
    %v491 = vadd.f32 %v481, %v489
    %v492 = vtanh.pop %v491
    %494 = vrot.lane.b32.xlu0 %v492, 32
    %v495 = vpop.permute.xlu0 %494
    %v497 = vmul.f32 %v479, %v495
    %s498 = scalar_lea.vmem [#allocation2], 16
    %v499 = vld [vmem:[%s498] sm:$0xff]
    %v500 = vpack.c.bf16 %v434, %v434
    %502 = vrot.lane.b32.xlu0 %v500, 64
    %v503 = vpop.permute.xlu0 %502
    %v505 = vsel %vm236, %v503, 0
    %507 = vmatpush.bf16.msra.mxu0 0
    %508 = vmatpush.bf16.msra.mxu0 0
    %509 = vmatpush.bf16.msra.mxu0 0
    %510 = vmatpush.bf16.msra.mxu0 0
    %511 = vmatpush.bf16.msra.mxu0 0
    %512 = vmatpush.bf16.msra.mxu0 0
    %513 = vmatpush.bf16.msra.mxu0 %v233
    %514 = vmatpush.bf16.msra.mxu0 %v232
    %515 = vmatmul.bf16.gmra.mxu0 %v505
    %v516 = vpop.f32.mrf.mxu0
    %v517 = vadd.f32 0.0, %v516
    %v518 = vpop.f32.mrf.mxu0
    %519 = vdwg.mxu0
    %v520 = vadd.f32 %v499, %v517
    %v521 = vxor.u32 %v520, 2147483648
    %v522 = vmul.f32 %v521, 1.442695
    %v523 = vpow.pop %v522
    %v524 = vadd.f32 %v523, 1.0
    %v525 = vrcp.pop %v524
    %v526 = vmul.f32 %v524, %v525
    %v527 = vsub.f32 1.0, %v526
    %v528 = vmul.f32 %v525, %v527
    %v529 = vadd.f32 %v525, %v528
    %vm530 = vweird.f32 %v524
    %vm531 = vweird.f32 %v525
    %vm532 = vmor %vm530, %vm531
    %v533 = vsel %vm532, %v525, %v529
    %v534 = vand.u32 2147483647, %v524
    %vm535 = vcmp.eq.f32.partialorder %v534, 8.507059e+37
    %v536 = vand.u32 %v524, 2147483648
    %v537 = vor.u32 1.1754944e-38, %v536
    %v538 = vsel %vm535, %v537, %v533
    %v539 = vmul.f32 1.0, %v538
    %v540 = vtanh.pop %v520
    %v541 = vmul.f32 %v539, %v428
    %543 = vrot.lane.b32.xlu0 %v540, 32
    %v544 = vpop.permute.xlu0 %543
    %v546 = vmul.f32 %v539, %v544
    %548 = vrot.lane.b32.xlu0 %v546, 32
    %v549 = vpop.permute.xlu0 %548
    %v551 = vadd.f32 %v541, %v549
    %v552 = vtanh.pop %v551
    %554 = vrot.lane.b32.xlu0 %v552, 32
    %v555 = vpop.permute.xlu0 %554
    %v557 = vmul.f32 %v539, %v555
    %559 = vrot.lane.b32.xlu0 %v557, 64
    %v560 = vpop.permute.xlu0 %559
    %563 = vrot.lane.b32.xlu0 %v497, 96
    %v564 = vpop.permute.xlu0 %563
    %v566 = vsel %vm236, %v560, %v564
    %v567 = vpack.c.bf16 %v566, %v566
    %v569 = vsel %vm321, %v567, 0
    %571 = vmatpush.bf16.msra.mxu0 0
    %572 = vmatpush.bf16.msra.mxu0 0
    %573 = vmatpush.bf16.msra.mxu0 0
    %574 = vmatpush.bf16.msra.mxu0 0
    %575 = vmatpush.bf16.msra.mxu0 %v316
    %576 = vmatpush.bf16.msra.mxu0 %v315
    %577 = vmatpush.bf16.msra.mxu0 %v314
    %578 = vmatpush.bf16.msra.mxu0 %v313
    %579 = vmatmul.bf16.gmra.mxu0 %v569
    %v580 = vpop.f32.mrf.mxu0
    %v581 = vadd.f32 %v91, %v580
    %v582 = vpop.f32.mrf.mxu0
    %583 = vdwg.mxu0
    %v584 = vxor.u32 %v581, 2147483648
    %v585 = vmul.f32 %v584, 1.442695
    %v586 = vpow.pop %v585
    %v587 = vadd.f32 %v586, 1.0
    %v588 = vrcp.pop %v587
    %v589 = vmul.f32 %v587, %v588
    %v590 = vsub.f32 1.0, %v589
    %v591 = vmul.f32 %v588, %v590
    %v592 = vadd.f32 %v588, %v591
    %vm593 = vweird.f32 %v587
    %vm594 = vweird.f32 %v588
    %vm595 = vmor %vm593, %vm594
    %v596 = vsel %vm595, %v588, %v592
    %v597 = vand.u32 2147483647, %v587
    %vm598 = vcmp.eq.f32.partialorder %v597, 8.507059e+37
    %v599 = vand.u32 %v587, 2147483648
    %v600 = vor.u32 1.1754944e-38, %v599
    %v601 = vsel %vm598, %v600, %v596
    %v602 = vmul.f32 1.0, %v601
    %v603 = vtanh.pop %v581
    %v604 = vmul.f32 %v602, %v491
    %606 = vrot.lane.b32.xlu0 %v603, 32
    %v607 = vpop.permute.xlu0 %606
    %v609 = vmul.f32 %v602, %v607
    %611 = vrot.lane.b32.xlu0 %v609, 32
    %v612 = vpop.permute.xlu0 %611
    %v614 = vadd.f32 %v604, %v612
    %v615 = vtanh.pop %v614
    %617 = vrot.lane.b32.xlu0 %v615, 32
    %v618 = vpop.permute.xlu0 %617
    %v620 = vmul.f32 %v602, %v618
    %s621 = scalar_lea.vmem [#allocation2], 24
    %v622 = vld [vmem:[%s621] sm:$0xff]
    %v623 = vpack.c.bf16 %v557, %v557
    %625 = vrot.lane.b32.xlu0 %v623, 64
    %v626 = vpop.permute.xlu0 %625
    %v628 = vsel %vm236, %v626, 0
    %630 = vmatpush.bf16.msra.mxu0 0
    %631 = vmatpush.bf16.msra.mxu0 0
    %632 = vmatpush.bf16.msra.mxu0 0
    %633 = vmatpush.bf16.msra.mxu0 0
    %634 = vmatpush.bf16.msra.mxu0 0
    %635 = vmatpush.bf16.msra.mxu0 0
    %636 = vmatpush.bf16.msra.mxu0 %v233
    %637 = vmatpush.bf16.msra.mxu0 %v232
    %638 = vmatmul.bf16.gmra.mxu0 %v628
    %v639 = vpop.f32.mrf.mxu0
    %v640 = vadd.f32 0.0, %v639
    %v641 = vpop.f32.mrf.mxu0
    %642 = vdwg.mxu0
    %v643 = vadd.f32 %v622, %v640
    %v644 = vxor.u32 %v643, 2147483648
    %v645 = vmul.f32 %v644, 1.442695
    %v646 = vpow.pop %v645
    %v647 = vadd.f32 %v646, 1.0
    %v648 = vrcp.pop %v647
    %v649 = vmul.f32 %v647, %v648
    %v650 = vsub.f32 1.0, %v649
    %v651 = vmul.f32 %v648, %v650
    %v652 = vadd.f32 %v648, %v651
    %vm653 = vweird.f32 %v647
    %vm654 = vweird.f32 %v648
    %vm655 = vmor %vm653, %vm654
    %v656 = vsel %vm655, %v648, %v652
    %v657 = vand.u32 2147483647, %v647
    %vm658 = vcmp.eq.f32.partialorder %v657, 8.507059e+37
    %v659 = vand.u32 %v647, 2147483648
    %v660 = vor.u32 1.1754944e-38, %v659
    %v661 = vsel %vm658, %v660, %v656
    %v662 = vmul.f32 1.0, %v661
    %v663 = vtanh.pop %v643
    %v664 = vmul.f32 %v662, %v551
    %666 = vrot.lane.b32.xlu0 %v663, 32
    %v667 = vpop.permute.xlu0 %666
    %v669 = vmul.f32 %v662, %v667
    %671 = vrot.lane.b32.xlu0 %v669, 32
    %v672 = vpop.permute.xlu0 %671
    %v674 = vadd.f32 %v664, %v672
    %v675 = vtanh.pop %v674
    %677 = vrot.lane.b32.xlu0 %v675, 32
    %v678 = vpop.permute.xlu0 %677
    %v680 = vmul.f32 %v662, %v678
    %682 = vrot.lane.b32.xlu0 %v680, 64
    %v683 = vpop.permute.xlu0 %682
    %686 = vrot.lane.b32.xlu0 %v620, 96
    %v687 = vpop.permute.xlu0 %686
    %v689 = vsel %vm236, %v683, %v687
    %v690 = vpack.c.bf16 %v689, %v689
    %v692 = vsel %vm321, %v690, 0
    %694 = vmatpush.bf16.msra.mxu0 0
    %695 = vmatpush.bf16.msra.mxu0 0
    %696 = vmatpush.bf16.msra.mxu0 0
    %697 = vmatpush.bf16.msra.mxu0 0
    %698 = vmatpush.bf16.msra.mxu0 %v316
    %699 = vmatpush.bf16.msra.mxu0 %v315
    %700 = vmatpush.bf16.msra.mxu0 %v314
    %701 = vmatpush.bf16.msra.mxu0 %v313
    %702 = vmatmul.bf16.gmra.mxu0 %v692
    %v703 = vpop.f32.mrf.mxu0
    %v704 = vadd.f32 %v91, %v703
    %v705 = vpop.f32.mrf.mxu0
    %706 = vdwg.mxu0
    %v707 = vxor.u32 %v704, 2147483648
    %v708 = vmul.f32 %v707, 1.442695
    %v709 = vpow.pop %v708
    %v710 = vadd.f32 %v709, 1.0
    %v711 = vrcp.pop %v710
    %v712 = vmul.f32 %v710, %v711
    %v713 = vsub.f32 1.0, %v712
    %v714 = vmul.f32 %v711, %v713
    %v715 = vadd.f32 %v711, %v714
    %vm716 = vweird.f32 %v710
    %vm717 = vweird.f32 %v711
    %vm718 = vmor %vm716, %vm717
    %v719 = vsel %vm718, %v711, %v715
    %v720 = vand.u32 2147483647, %v710
    %vm721 = vcmp.eq.f32.partialorder %v720, 8.507059e+37
    %v722 = vand.u32 %v710, 2147483648
    %v723 = vor.u32 1.1754944e-38, %v722
    %v724 = vsel %vm721, %v723, %v719
    %v725 = vmul.f32 1.0, %v724
    %v726 = vtanh.pop %v704
    %v727 = vmul.f32 %v725, %v614
    %729 = vrot.lane.b32.xlu0 %v726, 32
    %v730 = vpop.permute.xlu0 %729
    %v732 = vmul.f32 %v725, %v730
    %734 = vrot.lane.b32.xlu0 %v732, 32
    %v735 = vpop.permute.xlu0 %734
    %v737 = vadd.f32 %v727, %v735
    %v738 = vtanh.pop %v737
    %740 = vrot.lane.b32.xlu0 %v738, 32
    %v741 = vpop.permute.xlu0 %740
    %v743 = vmul.f32 %v725, %v741
    %s744 = scalar_lea.vmem [#allocation2], 32
    %v745 = vld [vmem:[%s744] sm:$0xff]
    %v746 = vpack.c.bf16 %v680, %v680
    %748 = vrot.lane.b32.xlu0 %v746, 64
    %v749 = vpop.permute.xlu0 %748
    %v751 = vsel %vm236, %v749, 0
    %753 = vmatpush.bf16.msra.mxu0 0
    %754 = vmatpush.bf16.msra.mxu0 0
    %755 = vmatpush.bf16.msra.mxu0 0
    %756 = vmatpush.bf16.msra.mxu0 0
    %757 = vmatpush.bf16.msra.mxu0 0
    %758 = vmatpush.bf16.msra.mxu0 0
    %759 = vmatpush.bf16.msra.mxu0 %v233
    %760 = vmatpush.bf16.msra.mxu0 %v232
    %761 = vmatmul.bf16.gmra.mxu0 %v751
    %v762 = vpop.f32.mrf.mxu0
    %v763 = vadd.f32 0.0, %v762
    %v764 = vpop.f32.mrf.mxu0
    %765 = vdwg.mxu0
    %v766 = vadd.f32 %v745, %v763
    %v767 = vxor.u32 %v766, 2147483648
    %v768 = vmul.f32 %v767, 1.442695
    %v769 = vpow.pop %v768
    %v770 = vadd.f32 %v769, 1.0
    %v771 = vrcp.pop %v770
    %v772 = vmul.f32 %v770, %v771
    %v773 = vsub.f32 1.0, %v772
    %v774 = vmul.f32 %v771, %v773
    %v775 = vadd.f32 %v771, %v774
    %vm776 = vweird.f32 %v770
    %vm777 = vweird.f32 %v771
    %vm778 = vmor %vm776, %vm777
    %v779 = vsel %vm778, %v771, %v775
    %v780 = vand.u32 2147483647, %v770
    %vm781 = vcmp.eq.f32.partialorder %v780, 8.507059e+37
    %v782 = vand.u32 %v770, 2147483648
    %v783 = vor.u32 1.1754944e-38, %v782
    %v784 = vsel %vm781, %v783, %v779
    %v785 = vmul.f32 1.0, %v784
    %v786 = vtanh.pop %v766
    %v787 = vmul.f32 %v785, %v674
    %789 = vrot.lane.b32.xlu0 %v786, 32
    %v790 = vpop.permute.xlu0 %789
    %v792 = vmul.f32 %v785, %v790
    %794 = vrot.lane.b32.xlu0 %v792, 32
    %v795 = vpop.permute.xlu0 %794
    %v797 = vadd.f32 %v787, %v795
    %v798 = vtanh.pop %v797
    %800 = vrot.lane.b32.xlu0 %v798, 32
    %v801 = vpop.permute.xlu0 %800
    %v803 = vmul.f32 %v785, %v801
    %805 = vrot.lane.b32.xlu0 %v803, 64
    %v806 = vpop.permute.xlu0 %805
    %809 = vrot.lane.b32.xlu0 %v743, 96
    %v810 = vpop.permute.xlu0 %809
    %v812 = vsel %vm236, %v806, %v810
    %v813 = vpack.c.bf16 %v812, %v812
    %v815 = vsel %vm321, %v813, 0
    %817 = vmatpush.bf16.msra.mxu0 0
    %818 = vmatpush.bf16.msra.mxu0 0
    %819 = vmatpush.bf16.msra.mxu0 0
    %820 = vmatpush.bf16.msra.mxu0 0
    %821 = vmatpush.bf16.msra.mxu0 %v316
    %822 = vmatpush.bf16.msra.mxu0 %v315
    %823 = vmatpush.bf16.msra.mxu0 %v314
    %824 = vmatpush.bf16.msra.mxu0 %v313
    %825 = vmatmul.bf16.gmra.mxu0 %v815
    %v826 = vpop.f32.mrf.mxu0
    %v827 = vadd.f32 %v91, %v826
    %v828 = vpop.f32.mrf.mxu0
    %829 = vdwg.mxu0
    %v830 = vxor.u32 %v827, 2147483648
    %v831 = vmul.f32 %v830, 1.442695
    %v832 = vpow.pop %v831
    %v833 = vadd.f32 %v832, 1.0
    %v834 = vrcp.pop %v833
    %v835 = vmul.f32 %v833, %v834
    %v836 = vsub.f32 1.0, %v835
    %v837 = vmul.f32 %v834, %v836
    %v838 = vadd.f32 %v834, %v837
    %vm839 = vweird.f32 %v833
    %vm840 = vweird.f32 %v834
    %vm841 = vmor %vm839, %vm840
    %v842 = vsel %vm841, %v834, %v838
    %v843 = vand.u32 2147483647, %v833
    %vm844 = vcmp.eq.f32.partialorder %v843, 8.507059e+37
    %v845 = vand.u32 %v833, 2147483648
    %v846 = vor.u32 1.1754944e-38, %v845
    %v847 = vsel %vm844, %v846, %v842
    %v848 = vmul.f32 1.0, %v847
    %v849 = vtanh.pop %v827
    %v850 = vmul.f32 %v848, %v737
    %852 = vrot.lane.b32.xlu0 %v849, 32
    %v853 = vpop.permute.xlu0 %852
    %v855 = vmul.f32 %v848, %v853
    %857 = vrot.lane.b32.xlu0 %v855, 32
    %v858 = vpop.permute.xlu0 %857
    %v860 = vadd.f32 %v850, %v858
    %v861 = vtanh.pop %v860
    %863 = vrot.lane.b32.xlu0 %v861, 32
    %v864 = vpop.permute.xlu0 %863
    %v866 = vmul.f32 %v848, %v864
    %s867 = scalar_lea.vmem [#allocation2], 40
    %v868 = vld [vmem:[%s867] sm:$0xff]
    %v869 = vpack.c.bf16 %v803, %v803
    %871 = vrot.lane.b32.xlu0 %v869, 64
    %v872 = vpop.permute.xlu0 %871
    %v874 = vsel %vm236, %v872, 0
    %876 = vmatpush.bf16.msra.mxu0 0
    %877 = vmatpush.bf16.msra.mxu0 0
    %878 = vmatpush.bf16.msra.mxu0 0
    %879 = vmatpush.bf16.msra.mxu0 0
    %880 = vmatpush.bf16.msra.mxu0 0
    %881 = vmatpush.bf16.msra.mxu0 0
    %882 = vmatpush.bf16.msra.mxu0 %v233
    %883 = vmatpush.bf16.msra.mxu0 %v232
    %884 = vmatmul.bf16.gmra.mxu0 %v874
    %v885 = vpop.f32.mrf.mxu0
    %v886 = vadd.f32 0.0, %v885
    %v887 = vpop.f32.mrf.mxu0
    %888 = vdwg.mxu0
    %v889 = vadd.f32 %v868, %v886
    %v890 = vxor.u32 %v889, 2147483648
    %v891 = vmul.f32 %v890, 1.442695
    %v892 = vpow.pop %v891
    %v893 = vadd.f32 %v892, 1.0
    %v894 = vrcp.pop %v893
    %v895 = vmul.f32 %v893, %v894
    %v896 = vsub.f32 1.0, %v895
    %v897 = vmul.f32 %v894, %v896
    %v898 = vadd.f32 %v894, %v897
    %vm899 = vweird.f32 %v893
    %vm900 = vweird.f32 %v894
    %vm901 = vmor %vm899, %vm900
    %v902 = vsel %vm901, %v894, %v898
    %v903 = vand.u32 2147483647, %v893
    %vm904 = vcmp.eq.f32.partialorder %v903, 8.507059e+37
    %v905 = vand.u32 %v893, 2147483648
    %v906 = vor.u32 1.1754944e-38, %v905
    %v907 = vsel %vm904, %v906, %v902
    %v908 = vmul.f32 1.0, %v907
    %v909 = vtanh.pop %v889
    %v910 = vmul.f32 %v908, %v797
    %912 = vrot.lane.b32.xlu0 %v909, 32
    %v913 = vpop.permute.xlu0 %912
    %v915 = vmul.f32 %v908, %v913
    %917 = vrot.lane.b32.xlu0 %v915, 32
    %v918 = vpop.permute.xlu0 %917
    %v920 = vadd.f32 %v910, %v918
    %v921 = vtanh.pop %v920
    %923 = vrot.lane.b32.xlu0 %v921, 32
    %v924 = vpop.permute.xlu0 %923
    %v926 = vmul.f32 %v908, %v924
    %928 = vrot.lane.b32.xlu0 %v926, 64
    %v929 = vpop.permute.xlu0 %928
    %932 = vrot.lane.b32.xlu0 %v866, 96
    %v933 = vpop.permute.xlu0 %932
    %v935 = vsel %vm236, %v929, %v933
    %v936 = vpack.c.bf16 %v935, %v935
    %v938 = vsel %vm321, %v936, 0
    %940 = vmatpush.bf16.msra.mxu0 0
    %941 = vmatpush.bf16.msra.mxu0 0
    %942 = vmatpush.bf16.msra.mxu0 0
    %943 = vmatpush.bf16.msra.mxu0 0
    %944 = vmatpush.bf16.msra.mxu0 %v316
    %945 = vmatpush.bf16.msra.mxu0 %v315
    %946 = vmatpush.bf16.msra.mxu0 %v314
    %947 = vmatpush.bf16.msra.mxu0 %v313
    %948 = vmatmul.bf16.gmra.mxu0 %v938
    %v949 = vpop.f32.mrf.mxu0
    %v950 = vadd.f32 %v91, %v949
    %v951 = vpop.f32.mrf.mxu0
    %952 = vdwg.mxu0
    %v953 = vxor.u32 %v950, 2147483648
    %v954 = vmul.f32 %v953, 1.442695
    %v955 = vpow.pop %v954
    %v956 = vadd.f32 %v955, 1.0
    %v957 = vrcp.pop %v956
    %v958 = vmul.f32 %v956, %v957
    %v959 = vsub.f32 1.0, %v958
    %v960 = vmul.f32 %v957, %v959
    %v961 = vadd.f32 %v957, %v960
    %vm962 = vweird.f32 %v956
    %vm963 = vweird.f32 %v957
    %vm964 = vmor %vm962, %vm963
    %v965 = vsel %vm964, %v957, %v961
    %v966 = vand.u32 2147483647, %v956
    %vm967 = vcmp.eq.f32.partialorder %v966, 8.507059e+37
    %v968 = vand.u32 %v956, 2147483648
    %v969 = vor.u32 1.1754944e-38, %v968
    %v970 = vsel %vm967, %v969, %v965
    %v971 = vmul.f32 1.0, %v970
    %v972 = vtanh.pop %v950
    %v973 = vmul.f32 %v971, %v860
    %975 = vrot.lane.b32.xlu0 %v972, 32
    %v976 = vpop.permute.xlu0 %975
    %v978 = vmul.f32 %v971, %v976
    %980 = vrot.lane.b32.xlu0 %v978, 32
    %v981 = vpop.permute.xlu0 %980
    %v983 = vadd.f32 %v973, %v981
    %v984 = vtanh.pop %v983
    %986 = vrot.lane.b32.xlu0 %v984, 32
    %v987 = vpop.permute.xlu0 %986
    %v989 = vmul.f32 %v971, %v987
    %s990 = scalar_lea.vmem [#allocation2], 48
    %v991 = vld [vmem:[%s990] sm:$0xff]
    %v992 = vpack.c.bf16 %v926, %v926
    %994 = vrot.lane.b32.xlu0 %v992, 64
    %v995 = vpop.permute.xlu0 %994
    %v997 = vsel %vm236, %v995, 0
    %999 = vmatpush.bf16.msra.mxu0 0
    %1000 = vmatpush.bf16.msra.mxu0 0
    %1001 = vmatpush.bf16.msra.mxu0 0
    %1002 = vmatpush.bf16.msra.mxu0 0
    %1003 = vmatpush.bf16.msra.mxu0 0
    %1004 = vmatpush.bf16.msra.mxu0 0
    %1005 = vmatpush.bf16.msra.mxu0 %v233
    %1006 = vmatpush.bf16.msra.mxu0 %v232
    %1007 = vmatmul.bf16.gmra.mxu0 %v997
    %v1008 = vpop.f32.mrf.mxu0
    %v1009 = vadd.f32 0.0, %v1008
    %v1010 = vpop.f32.mrf.mxu0
    %1011 = vdwg.mxu0
    %v1012 = vadd.f32 %v991, %v1009
    %v1013 = vxor.u32 %v1012, 2147483648
    %v1014 = vmul.f32 %v1013, 1.442695
    %v1015 = vpow.pop %v1014
    %v1016 = vadd.f32 %v1015, 1.0
    %v1017 = vrcp.pop %v1016
    %v1018 = vmul.f32 %v1016, %v1017
    %v1019 = vsub.f32 1.0, %v1018
    %v1020 = vmul.f32 %v1017, %v1019
    %v1021 = vadd.f32 %v1017, %v1020
    %vm1022 = vweird.f32 %v1016
    %vm1023 = vweird.f32 %v1017
    %vm1024 = vmor %vm1022, %vm1023
    %v1025 = vsel %vm1024, %v1017, %v1021
    %v1026 = vand.u32 2147483647, %v1016
    %vm1027 = vcmp.eq.f32.partialorder %v1026, 8.507059e+37
    %v1028 = vand.u32 %v1016, 2147483648
    %v1029 = vor.u32 1.1754944e-38, %v1028
    %v1030 = vsel %vm1027, %v1029, %v1025
    %v1031 = vmul.f32 1.0, %v1030
    %v1032 = vtanh.pop %v1012
    %v1033 = vmul.f32 %v1031, %v920
    %1035 = vrot.lane.b32.xlu0 %v1032, 32
    %v1036 = vpop.permute.xlu0 %1035
    %v1038 = vmul.f32 %v1031, %v1036
    %1040 = vrot.lane.b32.xlu0 %v1038, 32
    %v1041 = vpop.permute.xlu0 %1040
    %v1043 = vadd.f32 %v1033, %v1041
    %v1044 = vtanh.pop %v1043
    %1046 = vrot.lane.b32.xlu0 %v1044, 32
    %v1047 = vpop.permute.xlu0 %1046
    %v1049 = vmul.f32 %v1031, %v1047
    %1051 = vrot.lane.b32.xlu0 %v1049, 64
    %v1052 = vpop.permute.xlu0 %1051
    %1055 = vrot.lane.b32.xlu0 %v989, 96
    %v1056 = vpop.permute.xlu0 %1055
    %v1058 = vsel %vm236, %v1052, %v1056
    %v1059 = vpack.c.bf16 %v1058, %v1058
    %v1061 = vsel %vm321, %v1059, 0
    %1063 = vmatpush.bf16.msra.mxu0 0
    %1064 = vmatpush.bf16.msra.mxu0 0
    %1065 = vmatpush.bf16.msra.mxu0 0
    %1066 = vmatpush.bf16.msra.mxu0 0
    %1067 = vmatpush.bf16.msra.mxu0 %v316
    %1068 = vmatpush.bf16.msra.mxu0 %v315
    %1069 = vmatpush.bf16.msra.mxu0 %v314
    %1070 = vmatpush.bf16.msra.mxu0 %v313
    %1071 = vmatmul.bf16.gmra.mxu0 %v1061
    %v1072 = vpop.f32.mrf.mxu0
    %v1073 = vadd.f32 %v91, %v1072
    %v1074 = vpop.f32.mrf.mxu0
    %1075 = vdwg.mxu0
    %v1076 = vxor.u32 %v1073, 2147483648
    %v1077 = vmul.f32 %v1076, 1.442695
    %v1078 = vpow.pop %v1077
    %v1079 = vadd.f32 %v1078, 1.0
    %v1080 = vrcp.pop %v1079
    %v1081 = vmul.f32 %v1079, %v1080
    %v1082 = vsub.f32 1.0, %v1081
    %v1083 = vmul.f32 %v1080, %v1082
    %v1084 = vadd.f32 %v1080, %v1083
    %vm1085 = vweird.f32 %v1079
    %vm1086 = vweird.f32 %v1080
    %vm1087 = vmor %vm1085, %vm1086
    %v1088 = vsel %vm1087, %v1080, %v1084
    %v1089 = vand.u32 2147483647, %v1079
    %vm1090 = vcmp.eq.f32.partialorder %v1089, 8.507059e+37
    %v1091 = vand.u32 %v1079, 2147483648
    %v1092 = vor.u32 1.1754944e-38, %v1091
    %v1093 = vsel %vm1090, %v1092, %v1088
    %v1094 = vmul.f32 1.0, %v1093
    %v1095 = vtanh.pop %v1073
    %v1096 = vmul.f32 %v1094, %v983
    %1098 = vrot.lane.b32.xlu0 %v1095, 32
    %v1099 = vpop.permute.xlu0 %1098
    %v1101 = vmul.f32 %v1094, %v1099
    %1103 = vrot.lane.b32.xlu0 %v1101, 32
    %v1104 = vpop.permute.xlu0 %1103
    %v1106 = vadd.f32 %v1096, %v1104
    %v1107 = vtanh.pop %v1106
    %1109 = vrot.lane.b32.xlu0 %v1107, 32
    %v1110 = vpop.permute.xlu0 %1109
    %v1112 = vmul.f32 %v1094, %v1110
    %s1113 = scalar_lea.vmem [#allocation2], 56
    %v1114 = vld [vmem:[%s1113] sm:$0xff]
    %v1115 = vpack.c.bf16 %v1049, %v1049
    %1117 = vrot.lane.b32.xlu0 %v1115, 64
    %v1118 = vpop.permute.xlu0 %1117
    %v1120 = vsel %vm236, %v1118, 0
    %1122 = vmatpush.bf16.msra.mxu0 0
    %1123 = vmatpush.bf16.msra.mxu0 0
    %1124 = vmatpush.bf16.msra.mxu0 0
    %1125 = vmatpush.bf16.msra.mxu0 0
    %1126 = vmatpush.bf16.msra.mxu0 0
    %1127 = vmatpush.bf16.msra.mxu0 0
    %1128 = vmatpush.bf16.msra.mxu0 %v233
    %1129 = vmatpush.bf16.msra.mxu0 %v232
    %1130 = vmatmul.bf16.gmra.mxu0 %v1120
    %v1131 = vpop.f32.mrf.mxu0
    %v1132 = vadd.f32 0.0, %v1131
    %v1133 = vpop.f32.mrf.mxu0
    %1134 = vdwg.mxu0
    %v1135 = vadd.f32 %v1114, %v1132
    %v1136 = vxor.u32 %v1135, 2147483648
    %v1137 = vmul.f32 %v1136, 1.442695
    %v1138 = vpow.pop %v1137
    %v1139 = vadd.f32 %v1138, 1.0
    %v1140 = vrcp.pop %v1139
    %v1141 = vmul.f32 %v1139, %v1140
    %v1142 = vsub.f32 1.0, %v1141
    %v1143 = vmul.f32 %v1140, %v1142
    %v1144 = vadd.f32 %v1140, %v1143
    %vm1145 = vweird.f32 %v1139
    %vm1146 = vweird.f32 %v1140
    %vm1147 = vmor %vm1145, %vm1146
    %v1148 = vsel %vm1147, %v1140, %v1144
    %v1149 = vand.u32 2147483647, %v1139
    %vm1150 = vcmp.eq.f32.partialorder %v1149, 8.507059e+37
    %v1151 = vand.u32 %v1139, 2147483648
    %v1152 = vor.u32 1.1754944e-38, %v1151
    %v1153 = vsel %vm1150, %v1152, %v1148
    %v1154 = vmul.f32 1.0, %v1153
    %v1155 = vtanh.pop %v1135
    %v1156 = vmul.f32 %v1154, %v1043
    %1158 = vrot.lane.b32.xlu0 %v1155, 32
    %v1159 = vpop.permute.xlu0 %1158
    %v1161 = vmul.f32 %v1154, %v1159
    %1163 = vrot.lane.b32.xlu0 %v1161, 32
    %v1164 = vpop.permute.xlu0 %1163
    %v1166 = vadd.f32 %v1156, %v1164
    %v1167 = vtanh.pop %v1166
    %1169 = vrot.lane.b32.xlu0 %v1167, 32
    %v1170 = vpop.permute.xlu0 %1169
    %v1172 = vmul.f32 %v1154, %v1170
    %1174 = vrot.lane.b32.xlu0 %v1172, 64
    %v1175 = vpop.permute.xlu0 %1174
    %1178 = vrot.lane.b32.xlu0 %v1112, 96
    %v1179 = vpop.permute.xlu0 %1178
    %v1181 = vsel %vm236, %v1175, %v1179
    %v1182 = vpack.c.bf16 %v1181, %v1181
    %v1184 = vsel %vm321, %v1182, 0
    %1186 = vmatpush.bf16.msra.mxu0 0
    %1187 = vmatpush.bf16.msra.mxu0 0
    %1188 = vmatpush.bf16.msra.mxu0 0
    %1189 = vmatpush.bf16.msra.mxu0 0
    %1190 = vmatpush.bf16.msra.mxu0 %v316
    %1191 = vmatpush.bf16.msra.mxu0 %v315
    %1192 = vmatpush.bf16.msra.mxu0 %v314
    %1193 = vmatpush.bf16.msra.mxu0 %v313
    %1194 = vmatmul.bf16.gmra.mxu0 %v1184
    %v1195 = vpop.f32.mrf.mxu0
    %v1196 = vadd.f32 %v91, %v1195
    %v1197 = vpop.f32.mrf.mxu0
    %1198 = vdwg.mxu0
    %v1199 = vxor.u32 %v1196, 2147483648
    %v1200 = vmul.f32 %v1199, 1.442695
    %v1201 = vpow.pop %v1200
    %v1202 = vadd.f32 %v1201, 1.0
    %v1203 = vrcp.pop %v1202
    %v1204 = vmul.f32 %v1202, %v1203
    %v1205 = vsub.f32 1.0, %v1204
    %v1206 = vmul.f32 %v1203, %v1205
    %v1207 = vadd.f32 %v1203, %v1206
    %vm1208 = vweird.f32 %v1202
    %vm1209 = vweird.f32 %v1203
    %vm1210 = vmor %vm1208, %vm1209
    %v1211 = vsel %vm1210, %v1203, %v1207
    %v1212 = vand.u32 2147483647, %v1202
    %vm1213 = vcmp.eq.f32.partialorder %v1212, 8.507059e+37
    %v1214 = vand.u32 %v1202, 2147483648
    %v1215 = vor.u32 1.1754944e-38, %v1214
    %v1216 = vsel %vm1213, %v1215, %v1211
    %v1217 = vmul.f32 1.0, %v1216
    %v1218 = vtanh.pop %v1196
    %v1219 = vmul.f32 %v1217, %v1106
    %1221 = vrot.lane.b32.xlu0 %v1218, 32
    %v1222 = vpop.permute.xlu0 %1221
    %v1224 = vmul.f32 %v1217, %v1222
    %1226 = vrot.lane.b32.xlu0 %v1224, 32
    %v1227 = vpop.permute.xlu0 %1226
    %v1229 = vadd.f32 %v1219, %v1227
    %v1230 = vtanh.pop %v1229
    %1232 = vrot.lane.b32.xlu0 %v1230, 32
    %v1233 = vpop.permute.xlu0 %1232
    %v1235 = vmul.f32 %v1217, %v1233
    %v1236 = vld [vmem:[%s10] sm:$0x1]
    %v1238 = vperm.slane %v1236, 0
    %1240 = vrot.lane.b32.xlu0 %v1172, 96
    %v1241 = vpop.permute.xlu0 %1240
    %v1243 = vsel %vm236, %v1238, %v1241
    %v1244 = vpack.c.bf16 %v1243, %v1243
    %v1253 = vunpack.c.l.b16 %v93
    %v1254 = vunpack.c.l.b16 %v94
    %v1255 = vunpack.c.l.b16 %v95
    %v1256 = vunpack.c.l.b16 %v96
    %v1257 = vunpack.c.l.b16 %v97
    %v1258 = vunpack.c.l.b16 %v98
    %v1259 = vunpack.c.l.b16 %v99
    %v1260 = vunpack.c.l.b16 %v100
    %v1261 = vpack.c.b16 %v1254, %v1253
    %v1262 = vpack.c.b16 %v1256, %v1255
    %v1263 = vpack.c.b16 %v1258, %v1257
    %v1264 = vpack.c.b16 %v1260, %v1259
    %v1270 = vsel %vm321, %v1244, 0
    %1272 = vmatpush.bf16.msra.mxu0 0
    %1273 = vmatpush.bf16.msra.mxu0 0
    %1274 = vmatpush.bf16.msra.mxu0 0
    %1275 = vmatpush.bf16.msra.mxu0 0
    %1276 = vmatpush.bf16.msra.mxu0 %v1264
    %1277 = vmatpush.bf16.msra.mxu0 %v1263
    %1278 = vmatpush.bf16.msra.mxu0 %v1262
    %1279 = vmatpush.bf16.msra.mxu0 %v1261
    %1280 = vmatmul.bf16.gmra.mxu0 %v1270
    %v1281 = vpop.f32.mrf.mxu0
    %v1282 = vadd.f32 %v111, %v1281
    %v1283 = vpop.f32.mrf.mxu0
    %1284 = vdwg.mxu0
    %v1285 = vxor.u32 %v1282, 2147483648
    %v1286 = vmul.f32 %v1285, 1.442695
    %v1287 = vpow.pop %v1286
    %v1288 = vadd.f32 %v1287, 1.0
    %v1289 = vrcp.pop %v1288
    %v1290 = vmul.f32 %v1288, %v1289
    %v1291 = vsub.f32 1.0, %v1290
    %v1292 = vmul.f32 %v1289, %v1291
    %v1293 = vadd.f32 %v1289, %v1292
    %vm1294 = vweird.f32 %v1288
    %vm1295 = vweird.f32 %v1289
    %vm1296 = vmor %vm1294, %vm1295
    %v1297 = vsel %vm1296, %v1289, %v1293
    %v1298 = vand.u32 2147483647, %v1288
    %vm1299 = vcmp.eq.f32.partialorder %v1298, 8.507059e+37
    %v1300 = vand.u32 %v1288, 2147483648
    %v1301 = vor.u32 1.1754944e-38, %v1300
    %v1302 = vsel %vm1299, %v1301, %v1297
    %v1303 = vmul.f32 1.0, %v1302
    %v1304 = vtanh.pop %v1282
    %v1305 = vmul.f32 %v1303, %v1166
    %1307 = vrot.lane.b32.xlu0 %v1304, 32
    %v1308 = vpop.permute.xlu0 %1307
    %v1310 = vmul.f32 %v1303, %v1308
    %1312 = vrot.lane.b32.xlu0 %v1310, 32
    %v1313 = vpop.permute.xlu0 %1312
    %v1315 = vadd.f32 %v1305, %v1313
    %v1316 = vtanh.pop %v1315
    %1318 = vrot.lane.b32.xlu0 %v1316, 32
    %v1319 = vpop.permute.xlu0 %1318
    %v1321 = vmul.f32 %v1303, %v1319
    %1323 = vrot.lane.b32.xlu0 %v1321, 64
    %v1324 = vpop.permute.xlu0 %1323
    %1327 = vrot.lane.b32.xlu0 %v1235, 96
    %v1328 = vpop.permute.xlu0 %1327
    %v1330 = vsel %vm236, %v1324, %v1328
    %v1331 = vpack.c.bf16 %v1330, %v1330
    %v1340 = vunpack.c.l.b16 %v101
    %v1341 = vunpack.c.l.b16 %v102
    %v1342 = vunpack.c.l.b16 %v103
    %v1343 = vunpack.c.l.b16 %v104
    %v1344 = vunpack.c.l.b16 %v105
    %v1345 = vunpack.c.l.b16 %v106
    %v1346 = vunpack.c.l.b16 %v107
    %v1347 = vunpack.c.l.b16 %v108
    %v1348 = vpack.c.b16 %v1341, %v1340
    %v1349 = vpack.c.b16 %v1343, %v1342
    %v1350 = vpack.c.b16 %v1345, %v1344
    %v1351 = vpack.c.b16 %v1347, %v1346
    %v1357 = vsel %vm321, %v1331, 0
    %1359 = vmatpush.bf16.msra.mxu0 0
    %1360 = vmatpush.bf16.msra.mxu0 0
    %1361 = vmatpush.bf16.msra.mxu0 0
    %1362 = vmatpush.bf16.msra.mxu0 0
    %1363 = vmatpush.bf16.msra.mxu0 %v1351
    %1364 = vmatpush.bf16.msra.mxu0 %v1350
    %1365 = vmatpush.bf16.msra.mxu0 %v1349
    %1366 = vmatpush.bf16.msra.mxu0 %v1348
    %1367 = vmatmul.bf16.gmra.mxu0 %v1357
    %v1368 = vpop.f32.mrf.mxu0
    %v1369 = vadd.f32 %v115, %v1368
    %v1370 = vpop.f32.mrf.mxu0
    %1371 = vdwg.mxu0
    %v1372 = vxor.u32 %v1369, 2147483648
    %v1373 = vmul.f32 %v1372, 1.442695
    %v1374 = vpow.pop %v1373
    %v1375 = vadd.f32 %v1374, 1.0
    %v1376 = vrcp.pop %v1375
    %v1377 = vmul.f32 %v1375, %v1376
    %v1378 = vsub.f32 1.0, %v1377
    %v1379 = vmul.f32 %v1376, %v1378
    %v1380 = vadd.f32 %v1376, %v1379
    %vm1381 = vweird.f32 %v1375
    %vm1382 = vweird.f32 %v1376
    %vm1383 = vmor %vm1381, %vm1382
    %v1384 = vsel %vm1383, %v1376, %v1380
    %v1385 = vand.u32 2147483647, %v1375
    %vm1386 = vcmp.eq.f32.partialorder %v1385, 8.507059e+37
    %v1387 = vand.u32 %v1375, 2147483648
    %v1388 = vor.u32 1.1754944e-38, %v1387
    %v1389 = vsel %vm1386, %v1388, %v1384
    %v1390 = vmul.f32 1.0, %v1389
    %v1391 = vtanh.pop %v1369
    %v1392 = vmul.f32 %v1390, %v1229
    %1394 = vrot.lane.b32.xlu0 %v1391, 32
    %v1395 = vpop.permute.xlu0 %1394
    %v1397 = vmul.f32 %v1390, %v1395
    %1399 = vrot.lane.b32.xlu0 %v1397, 32
    %v1400 = vpop.permute.xlu0 %1399
    %v1402 = vadd.f32 %v1392, %v1400
    %v1403 = vtanh.pop %v1402
    %1405 = vrot.lane.b32.xlu0 %v1403, 32
    %v1406 = vpop.permute.xlu0 %1405
    %v1408 = vmul.f32 %v1390, %v1406
    %1410 = vrot.lane.b32.xlu0 %v1408, 64
    %v1411 = vpop.permute.xlu0 %1410
    %1413 = vst.msk [vmem:[#allocation3] sm:$0xff] %vm236, %v1411
    %1414 = vrot.lane.b32.xlu0 %v1321, 96
    %v1415 = vpop.permute.xlu0 %1414
    %v1417 = vsel %vm236, %v1411, %v1415
    %v1418 = vpack.c.bf16 %v1417, %v1417
    %v1420 = vsel %vm321, %v1418, 0
    %1422 = vmatpush.bf16.msra.mxu0 0
    %1423 = vmatpush.bf16.msra.mxu0 0
    %1424 = vmatpush.bf16.msra.mxu0 0
    %1425 = vmatpush.bf16.msra.mxu0 0
    %1426 = vmatpush.bf16.msra.mxu0 %v1264
    %1427 = vmatpush.bf16.msra.mxu0 %v1263
    %1428 = vmatpush.bf16.msra.mxu0 %v1262
    %1429 = vmatpush.bf16.msra.mxu0 %v1261
    %1430 = vmatmul.bf16.gmra.mxu0 %v1420
    %v1431 = vpop.f32.mrf.mxu0
    %v1432 = vadd.f32 %v111, %v1431
    %v1433 = vpop.f32.mrf.mxu0
    %1434 = vdwg.mxu0
    %v1435 = vxor.u32 %v1432, 2147483648
    %v1436 = vmul.f32 %v1435, 1.442695
    %v1437 = vpow.pop %v1436
    %v1438 = vadd.f32 %v1437, 1.0
    %v1439 = vrcp.pop %v1438
    %v1440 = vmul.f32 %v1438, %v1439
    %v1441 = vsub.f32 1.0, %v1440
    %v1442 = vmul.f32 %v1439, %v1441
    %v1443 = vadd.f32 %v1439, %v1442
    %vm1444 = vweird.f32 %v1438
    %vm1445 = vweird.f32 %v1439
    %vm1446 = vmor %vm1444, %vm1445
    %v1447 = vsel %vm1446, %v1439, %v1443
    %v1448 = vand.u32 2147483647, %v1438
    %vm1449 = vcmp.eq.f32.partialorder %v1448, 8.507059e+37
    %v1450 = vand.u32 %v1438, 2147483648
    %v1451 = vor.u32 1.1754944e-38, %v1450
    %v1452 = vsel %vm1449, %v1451, %v1447
    %v1453 = vmul.f32 1.0, %v1452
    %v1454 = vtanh.pop %v1432
    %v1455 = vmul.f32 %v1453, %v1315
    %1457 = vrot.lane.b32.xlu0 %v1454, 32
    %v1458 = vpop.permute.xlu0 %1457
    %v1460 = vmul.f32 %v1453, %v1458
    %1462 = vrot.lane.b32.xlu0 %v1460, 32
    %v1463 = vpop.permute.xlu0 %1462
    %v1465 = vadd.f32 %v1455, %v1463
    %v1466 = vtanh.pop %v1465
    %1468 = vrot.lane.b32.xlu0 %v1466, 32
    %v1469 = vpop.permute.xlu0 %1468
    %v1471 = vmul.f32 %v1453, %v1469
    %1473 = vrot.lane.b32.xlu0 %v1471, 64
    %v1474 = vpop.permute.xlu0 %1473
    %1476 = vrot.lane.b32.xlu0 %v1408, 96
    %v1477 = vpop.permute.xlu0 %1476
    %v1479 = vsel %vm236, %v1474, %v1477
    %v1480 = vpack.c.bf16 %v1479, %v1479
    %v1482 = vsel %vm321, %v1480, 0
    %1484 = vmatpush.bf16.msra.mxu0 0
    %1485 = vmatpush.bf16.msra.mxu0 0
    %1486 = vmatpush.bf16.msra.mxu0 0
    %1487 = vmatpush.bf16.msra.mxu0 0
    %1488 = vmatpush.bf16.msra.mxu0 %v1351
    %1489 = vmatpush.bf16.msra.mxu0 %v1350
    %1490 = vmatpush.bf16.msra.mxu0 %v1349
    %1491 = vmatpush.bf16.msra.mxu0 %v1348
    %1492 = vmatmul.bf16.gmra.mxu0 %v1482
    %v1493 = vpop.f32.mrf.mxu0
    %v1494 = vadd.f32 %v115, %v1493
    %v1495 = vpop.f32.mrf.mxu0
    %1496 = vdwg.mxu0
    %v1497 = vxor.u32 %v1494, 2147483648
    %v1498 = vmul.f32 %v1497, 1.442695
    %v1499 = vpow.pop %v1498
    %v1500 = vadd.f32 %v1499, 1.0
    %v1501 = vrcp.pop %v1500
    %v1502 = vmul.f32 %v1500, %v1501
    %v1503 = vsub.f32 1.0, %v1502
    %v1504 = vmul.f32 %v1501, %v1503
    %v1505 = vadd.f32 %v1501, %v1504
    %vm1506 = vweird.f32 %v1500
    %vm1507 = vweird.f32 %v1501
    %vm1508 = vmor %vm1506, %vm1507
    %v1509 = vsel %vm1508, %v1501, %v1505
    %v1510 = vand.u32 2147483647, %v1500
    %vm1511 = vcmp.eq.f32.partialorder %v1510, 8.507059e+37
    %v1512 = vand.u32 %v1500, 2147483648
    %v1513 = vor.u32 1.1754944e-38, %v1512
    %v1514 = vsel %vm1511, %v1513, %v1509
    %v1515 = vmul.f32 1.0, %v1514
    %v1516 = vtanh.pop %v1494
    %v1517 = vmul.f32 %v1515, %v1402
    %1519 = vrot.lane.b32.xlu0 %v1516, 32
    %v1520 = vpop.permute.xlu0 %1519
    %v1522 = vmul.f32 %v1515, %v1520
    %1524 = vrot.lane.b32.xlu0 %v1522, 32
    %v1525 = vpop.permute.xlu0 %1524
    %v1527 = vadd.f32 %v1517, %v1525
    %v1528 = vtanh.pop %v1527
    %1530 = vrot.lane.b32.xlu0 %v1528, 32
    %v1531 = vpop.permute.xlu0 %1530
    %v1533 = vmul.f32 %v1515, %v1531
    %1535 = vrot.lane.b32.xlu0 %v1533, 64
    %v1536 = vpop.permute.xlu0 %1535
    %s1538 = scalar_lea.vmem [#allocation3], 8
    %1539 = vst.msk [vmem:[%s1538] sm:$0xff] %vm236, %v1536
    %1540 = vrot.lane.b32.xlu0 %v1471, 96
    %v1541 = vpop.permute.xlu0 %1540
    %v1543 = vsel %vm236, %v1536, %v1541
    %v1544 = vpack.c.bf16 %v1543, %v1543
    %v1546 = vsel %vm321, %v1544, 0
    %1548 = vmatpush.bf16.msra.mxu0 0
    %1549 = vmatpush.bf16.msra.mxu0 0
    %1550 = vmatpush.bf16.msra.mxu0 0
    %1551 = vmatpush.bf16.msra.mxu0 0
    %1552 = vmatpush.bf16.msra.mxu0 %v1264
    %1553 = vmatpush.bf16.msra.mxu0 %v1263
    %1554 = vmatpush.bf16.msra.mxu0 %v1262
    %1555 = vmatpush.bf16.msra.mxu0 %v1261
    %1556 = vmatmul.bf16.gmra.mxu0 %v1546
    %v1557 = vpop.f32.mrf.mxu0
    %v1558 = vadd.f32 %v111, %v1557
    %v1559 = vpop.f32.mrf.mxu0
    %1560 = vdwg.mxu0
    %v1561 = vxor.u32 %v1558, 2147483648
    %v1562 = vmul.f32 %v1561, 1.442695
    %v1563 = vpow.pop %v1562
    %v1564 = vadd.f32 %v1563, 1.0
    %v1565 = vrcp.pop %v1564
    %v1566 = vmul.f32 %v1564, %v1565
    %v1567 = vsub.f32 1.0, %v1566
    %v1568 = vmul.f32 %v1565, %v1567
    %v1569 = vadd.f32 %v1565, %v1568
    %vm1570 = vweird.f32 %v1564
    %vm1571 = vweird.f32 %v1565
    %vm1572 = vmor %vm1570, %vm1571
    %v1573 = vsel %vm1572, %v1565, %v1569
    %v1574 = vand.u32 2147483647, %v1564
    %vm1575 = vcmp.eq.f32.partialorder %v1574, 8.507059e+37
    %v1576 = vand.u32 %v1564, 2147483648
    %v1577 = vor.u32 1.1754944e-38, %v1576
    %v1578 = vsel %vm1575, %v1577, %v1573
    %v1579 = vmul.f32 1.0, %v1578
    %v1580 = vtanh.pop %v1558
    %v1581 = vmul.f32 %v1579, %v1465
    %1583 = vrot.lane.b32.xlu0 %v1580, 32
    %v1584 = vpop.permute.xlu0 %1583
    %v1586 = vmul.f32 %v1579, %v1584
    %1588 = vrot.lane.b32.xlu0 %v1586, 32
    %v1589 = vpop.permute.xlu0 %1588
    %v1591 = vadd.f32 %v1581, %v1589
    %v1592 = vtanh.pop %v1591
    %1594 = vrot.lane.b32.xlu0 %v1592, 32
    %v1595 = vpop.permute.xlu0 %1594
    %v1597 = vmul.f32 %v1579, %v1595
    %1599 = vrot.lane.b32.xlu0 %v1597, 64
    %v1600 = vpop.permute.xlu0 %1599
    %1602 = vrot.lane.b32.xlu0 %v1533, 96
    %v1603 = vpop.permute.xlu0 %1602
    %v1605 = vsel %vm236, %v1600, %v1603
    %v1606 = vpack.c.bf16 %v1605, %v1605
    %v1608 = vsel %vm321, %v1606, 0
    %1610 = vmatpush.bf16.msra.mxu0 0
    %1611 = vmatpush.bf16.msra.mxu0 0
    %1612 = vmatpush.bf16.msra.mxu0 0
    %1613 = vmatpush.bf16.msra.mxu0 0
    %1614 = vmatpush.bf16.msra.mxu0 %v1351
    %1615 = vmatpush.bf16.msra.mxu0 %v1350
    %1616 = vmatpush.bf16.msra.mxu0 %v1349
    %1617 = vmatpush.bf16.msra.mxu0 %v1348
    %1618 = vmatmul.bf16.gmra.mxu0 %v1608
    %v1619 = vpop.f32.mrf.mxu0
    %v1620 = vadd.f32 %v115, %v1619
    %v1621 = vpop.f32.mrf.mxu0
    %1622 = vdwg.mxu0
    %v1623 = vxor.u32 %v1620, 2147483648
    %v1624 = vmul.f32 %v1623, 1.442695
    %v1625 = vpow.pop %v1624
    %v1626 = vadd.f32 %v1625, 1.0
    %v1627 = vrcp.pop %v1626
    %v1628 = vmul.f32 %v1626, %v1627
    %v1629 = vsub.f32 1.0, %v1628
    %v1630 = vmul.f32 %v1627, %v1629
    %v1631 = vadd.f32 %v1627, %v1630
    %vm1632 = vweird.f32 %v1626
    %vm1633 = vweird.f32 %v1627
    %vm1634 = vmor %vm1632, %vm1633
    %v1635 = vsel %vm1634, %v1627, %v1631
    %v1636 = vand.u32 2147483647, %v1626
    %vm1637 = vcmp.eq.f32.partialorder %v1636, 8.507059e+37
    %v1638 = vand.u32 %v1626, 2147483648
    %v1639 = vor.u32 1.1754944e-38, %v1638
    %v1640 = vsel %vm1637, %v1639, %v1635
    %v1641 = vmul.f32 1.0, %v1640
    %v1642 = vtanh.pop %v1620
    %v1643 = vmul.f32 %v1641, %v1527
    %1645 = vrot.lane.b32.xlu0 %v1642, 32
    %v1646 = vpop.permute.xlu0 %1645
    %v1648 = vmul.f32 %v1641, %v1646
    %1650 = vrot.lane.b32.xlu0 %v1648, 32
    %v1651 = vpop.permute.xlu0 %1650
    %v1653 = vadd.f32 %v1643, %v1651
    %v1654 = vtanh.pop %v1653
    %1656 = vrot.lane.b32.xlu0 %v1654, 32
    %v1657 = vpop.permute.xlu0 %1656
    %v1659 = vmul.f32 %v1641, %v1657
    %1661 = vrot.lane.b32.xlu0 %v1659, 64
    %v1662 = vpop.permute.xlu0 %1661
    %s1664 = scalar_lea.vmem [#allocation3], 16
    %1665 = vst.msk [vmem:[%s1664] sm:$0xff] %vm236, %v1662
    %1666 = vrot.lane.b32.xlu0 %v1597, 96
    %v1667 = vpop.permute.xlu0 %1666
    %v1669 = vsel %vm236, %v1662, %v1667
    %v1670 = vpack.c.bf16 %v1669, %v1669
    %v1672 = vsel %vm321, %v1670, 0
    %1674 = vmatpush.bf16.msra.mxu0 0
    %1675 = vmatpush.bf16.msra.mxu0 0
    %1676 = vmatpush.bf16.msra.mxu0 0
    %1677 = vmatpush.bf16.msra.mxu0 0
    %1678 = vmatpush.bf16.msra.mxu0 %v1264
    %1679 = vmatpush.bf16.msra.mxu0 %v1263
    %1680 = vmatpush.bf16.msra.mxu0 %v1262
    %1681 = vmatpush.bf16.msra.mxu0 %v1261
    %1682 = vmatmul.bf16.gmra.mxu0 %v1672
    %v1683 = vpop.f32.mrf.mxu0
    %v1684 = vadd.f32 %v111, %v1683
    %v1685 = vpop.f32.mrf.mxu0
    %1686 = vdwg.mxu0
    %v1687 = vxor.u32 %v1684, 2147483648
    %v1688 = vmul.f32 %v1687, 1.442695
    %v1689 = vpow.pop %v1688
    %v1690 = vadd.f32 %v1689, 1.0
    %v1691 = vrcp.pop %v1690
    %v1692 = vmul.f32 %v1690, %v1691
    %v1693 = vsub.f32 1.0, %v1692
    %v1694 = vmul.f32 %v1691, %v1693
    %v1695 = vadd.f32 %v1691, %v1694
    %vm1696 = vweird.f32 %v1690
    %vm1697 = vweird.f32 %v1691
    %vm1698 = vmor %vm1696, %vm1697
    %v1699 = vsel %vm1698, %v1691, %v1695
    %v1700 = vand.u32 2147483647, %v1690
    %vm1701 = vcmp.eq.f32.partialorder %v1700, 8.507059e+37
    %v1702 = vand.u32 %v1690, 2147483648
    %v1703 = vor.u32 1.1754944e-38, %v1702
    %v1704 = vsel %vm1701, %v1703, %v1699
    %v1705 = vmul.f32 1.0, %v1704
    %v1706 = vtanh.pop %v1684
    %v1707 = vmul.f32 %v1705, %v1591
    %1709 = vrot.lane.b32.xlu0 %v1706, 32
    %v1710 = vpop.permute.xlu0 %1709
    %v1712 = vmul.f32 %v1705, %v1710
    %1714 = vrot.lane.b32.xlu0 %v1712, 32
    %v1715 = vpop.permute.xlu0 %1714
    %v1717 = vadd.f32 %v1707, %v1715
    %v1718 = vtanh.pop %v1717
    %1720 = vrot.lane.b32.xlu0 %v1718, 32
    %v1721 = vpop.permute.xlu0 %1720
    %v1723 = vmul.f32 %v1705, %v1721
    %1725 = vrot.lane.b32.xlu0 %v1723, 64
    %v1726 = vpop.permute.xlu0 %1725
    %1728 = vrot.lane.b32.xlu0 %v1659, 96
    %v1729 = vpop.permute.xlu0 %1728
    %v1731 = vsel %vm236, %v1726, %v1729
    %v1732 = vpack.c.bf16 %v1731, %v1731
    %v1734 = vsel %vm321, %v1732, 0
    %1736 = vmatpush.bf16.msra.mxu0 0
    %1737 = vmatpush.bf16.msra.mxu0 0
    %1738 = vmatpush.bf16.msra.mxu0 0
    %1739 = vmatpush.bf16.msra.mxu0 0
    %1740 = vmatpush.bf16.msra.mxu0 %v1351
    %1741 = vmatpush.bf16.msra.mxu0 %v1350
    %1742 = vmatpush.bf16.msra.mxu0 %v1349
    %1743 = vmatpush.bf16.msra.mxu0 %v1348
    %1744 = vmatmul.bf16.gmra.mxu0 %v1734
    %v1745 = vpop.f32.mrf.mxu0
    %v1746 = vadd.f32 %v115, %v1745
    %v1747 = vpop.f32.mrf.mxu0
    %1748 = vdwg.mxu0
    %v1749 = vxor.u32 %v1746, 2147483648
    %v1750 = vmul.f32 %v1749, 1.442695
    %v1751 = vpow.pop %v1750
    %v1752 = vadd.f32 %v1751, 1.0
    %v1753 = vrcp.pop %v1752
    %v1754 = vmul.f32 %v1752, %v1753
    %v1755 = vsub.f32 1.0, %v1754
    %v1756 = vmul.f32 %v1753, %v1755
    %v1757 = vadd.f32 %v1753, %v1756
    %vm1758 = vweird.f32 %v1752
    %vm1759 = vweird.f32 %v1753
    %vm1760 = vmor %vm1758, %vm1759
    %v1761 = vsel %vm1760, %v1753, %v1757
    %v1762 = vand.u32 2147483647, %v1752
    %vm1763 = vcmp.eq.f32.partialorder %v1762, 8.507059e+37
    %v1764 = vand.u32 %v1752, 2147483648
    %v1765 = vor.u32 1.1754944e-38, %v1764
    %v1766 = vsel %vm1763, %v1765, %v1761
    %v1767 = vmul.f32 1.0, %v1766
    %v1768 = vtanh.pop %v1746
    %v1769 = vmul.f32 %v1767, %v1653
    %1771 = vrot.lane.b32.xlu0 %v1768, 32
    %v1772 = vpop.permute.xlu0 %1771
    %v1774 = vmul.f32 %v1767, %v1772
    %1776 = vrot.lane.b32.xlu0 %v1774, 32
    %v1777 = vpop.permute.xlu0 %1776
    %v1779 = vadd.f32 %v1769, %v1777
    %v1780 = vtanh.pop %v1779
    %1782 = vrot.lane.b32.xlu0 %v1780, 32
    %v1783 = vpop.permute.xlu0 %1782
    %v1785 = vmul.f32 %v1767, %v1783
    %1787 = vrot.lane.b32.xlu0 %v1785, 64
    %v1788 = vpop.permute.xlu0 %1787
    %s1790 = scalar_lea.vmem [#allocation3], 24
    %1791 = vst.msk [vmem:[%s1790] sm:$0xff] %vm236, %v1788
    %1792 = vrot.lane.b32.xlu0 %v1723, 96
    %v1793 = vpop.permute.xlu0 %1792
    %v1795 = vsel %vm236, %v1788, %v1793
    %v1796 = vpack.c.bf16 %v1795, %v1795
    %v1798 = vsel %vm321, %v1796, 0
    %1800 = vmatpush.bf16.msra.mxu0 0
    %1801 = vmatpush.bf16.msra.mxu0 0
    %1802 = vmatpush.bf16.msra.mxu0 0
    %1803 = vmatpush.bf16.msra.mxu0 0
    %1804 = vmatpush.bf16.msra.mxu0 %v1264
    %1805 = vmatpush.bf16.msra.mxu0 %v1263
    %1806 = vmatpush.bf16.msra.mxu0 %v1262
    %1807 = vmatpush.bf16.msra.mxu0 %v1261
    %1808 = vmatmul.bf16.gmra.mxu0 %v1798
    %v1809 = vpop.f32.mrf.mxu0
    %v1810 = vadd.f32 %v111, %v1809
    %v1811 = vpop.f32.mrf.mxu0
    %1812 = vdwg.mxu0
    %v1813 = vxor.u32 %v1810, 2147483648
    %v1814 = vmul.f32 %v1813, 1.442695
    %v1815 = vpow.pop %v1814
    %v1816 = vadd.f32 %v1815, 1.0
    %v1817 = vrcp.pop %v1816
    %v1818 = vmul.f32 %v1816, %v1817
    %v1819 = vsub.f32 1.0, %v1818
    %v1820 = vmul.f32 %v1817, %v1819
    %v1821 = vadd.f32 %v1817, %v1820
    %vm1822 = vweird.f32 %v1816
    %vm1823 = vweird.f32 %v1817
    %vm1824 = vmor %vm1822, %vm1823
    %v1825 = vsel %vm1824, %v1817, %v1821
    %v1826 = vand.u32 2147483647, %v1816
    %vm1827 = vcmp.eq.f32.partialorder %v1826, 8.507059e+37
    %v1828 = vand.u32 %v1816, 2147483648
    %v1829 = vor.u32 1.1754944e-38, %v1828
    %v1830 = vsel %vm1827, %v1829, %v1825
    %v1831 = vmul.f32 1.0, %v1830
    %v1832 = vtanh.pop %v1810
    %v1833 = vmul.f32 %v1831, %v1717
    %1835 = vrot.lane.b32.xlu0 %v1832, 32
    %v1836 = vpop.permute.xlu0 %1835
    %v1838 = vmul.f32 %v1831, %v1836
    %1840 = vrot.lane.b32.xlu0 %v1838, 32
    %v1841 = vpop.permute.xlu0 %1840
    %v1843 = vadd.f32 %v1833, %v1841
    %v1844 = vtanh.pop %v1843
    %1846 = vrot.lane.b32.xlu0 %v1844, 32
    %v1847 = vpop.permute.xlu0 %1846
    %v1849 = vmul.f32 %v1831, %v1847
    %1851 = vrot.lane.b32.xlu0 %v1849, 64
    %v1852 = vpop.permute.xlu0 %1851
    %1854 = vrot.lane.b32.xlu0 %v1785, 96
    %v1855 = vpop.permute.xlu0 %1854
    %v1857 = vsel %vm236, %v1852, %v1855
    %v1858 = vpack.c.bf16 %v1857, %v1857
    %v1860 = vsel %vm321, %v1858, 0
    %1862 = vmatpush.bf16.msra.mxu0 0
    %1863 = vmatpush.bf16.msra.mxu0 0
    %1864 = vmatpush.bf16.msra.mxu0 0
    %1865 = vmatpush.bf16.msra.mxu0 0
    %1866 = vmatpush.bf16.msra.mxu0 %v1351
    %1867 = vmatpush.bf16.msra.mxu0 %v1350
    %1868 = vmatpush.bf16.msra.mxu0 %v1349
    %1869 = vmatpush.bf16.msra.mxu0 %v1348
    %1870 = vmatmul.bf16.gmra.mxu0 %v1860
    %v1871 = vpop.f32.mrf.mxu0
    %v1872 = vadd.f32 %v115, %v1871
    %v1873 = vpop.f32.mrf.mxu0
    %1874 = vdwg.mxu0
    %v1875 = vxor.u32 %v1872, 2147483648
    %v1876 = vmul.f32 %v1875, 1.442695
    %v1877 = vpow.pop %v1876
    %v1878 = vadd.f32 %v1877, 1.0
    %v1879 = vrcp.pop %v1878
    %v1880 = vmul.f32 %v1878, %v1879
    %v1881 = vsub.f32 1.0, %v1880
    %v1882 = vmul.f32 %v1879, %v1881
    %v1883 = vadd.f32 %v1879, %v1882
    %vm1884 = vweird.f32 %v1878
    %vm1885 = vweird.f32 %v1879
    %vm1886 = vmor %vm1884, %vm1885
    %v1887 = vsel %vm1886, %v1879, %v1883
    %v1888 = vand.u32 2147483647, %v1878
    %vm1889 = vcmp.eq.f32.partialorder %v1888, 8.507059e+37
    %v1890 = vand.u32 %v1878, 2147483648
    %v1891 = vor.u32 1.1754944e-38, %v1890
    %v1892 = vsel %vm1889, %v1891, %v1887
    %v1893 = vmul.f32 1.0, %v1892
    %v1894 = vtanh.pop %v1872
    %v1895 = vmul.f32 %v1893, %v1779
    %1897 = vrot.lane.b32.xlu0 %v1894, 32
    %v1898 = vpop.permute.xlu0 %1897
    %v1900 = vmul.f32 %v1893, %v1898
    %1902 = vrot.lane.b32.xlu0 %v1900, 32
    %v1903 = vpop.permute.xlu0 %1902
    %v1905 = vadd.f32 %v1895, %v1903
    %v1906 = vtanh.pop %v1905
    %1908 = vrot.lane.b32.xlu0 %v1906, 32
    %v1909 = vpop.permute.xlu0 %1908
    %v1911 = vmul.f32 %v1893, %v1909
    %1913 = vrot.lane.b32.xlu0 %v1911, 64
    %v1914 = vpop.permute.xlu0 %1913
    %s1916 = scalar_lea.vmem [#allocation3], 32
    %1917 = vst.msk [vmem:[%s1916] sm:$0xff] %vm236, %v1914
    %1918 = vrot.lane.b32.xlu0 %v1849, 96
    %v1919 = vpop.permute.xlu0 %1918
    %v1921 = vsel %vm236, %v1914, %v1919
    %v1922 = vpack.c.bf16 %v1921, %v1921
    %v1924 = vsel %vm321, %v1922, 0
    %1926 = vmatpush.bf16.msra.mxu0 0
    %1927 = vmatpush.bf16.msra.mxu0 0
    %1928 = vmatpush.bf16.msra.mxu0 0
    %1929 = vmatpush.bf16.msra.mxu0 0
    %1930 = vmatpush.bf16.msra.mxu0 %v1264
    %1931 = vmatpush.bf16.msra.mxu0 %v1263
    %1932 = vmatpush.bf16.msra.mxu0 %v1262
    %1933 = vmatpush.bf16.msra.mxu0 %v1261
    %1934 = vmatmul.bf16.gmra.mxu0 %v1924
    %v1935 = vpop.f32.mrf.mxu0
    %v1936 = vadd.f32 %v111, %v1935
    %v1937 = vpop.f32.mrf.mxu0
    %1938 = vdwg.mxu0
    %v1939 = vxor.u32 %v1936, 2147483648
    %v1940 = vmul.f32 %v1939, 1.442695
    %v1941 = vpow.pop %v1940
    %v1942 = vadd.f32 %v1941, 1.0
    %v1943 = vrcp.pop %v1942
    %v1944 = vmul.f32 %v1942, %v1943
    %v1945 = vsub.f32 1.0, %v1944
    %v1946 = vmul.f32 %v1943, %v1945
    %v1947 = vadd.f32 %v1943, %v1946
    %vm1948 = vweird.f32 %v1942
    %vm1949 = vweird.f32 %v1943
    %vm1950 = vmor %vm1948, %vm1949
    %v1951 = vsel %vm1950, %v1943, %v1947
    %v1952 = vand.u32 2147483647, %v1942
    %vm1953 = vcmp.eq.f32.partialorder %v1952, 8.507059e+37
    %v1954 = vand.u32 %v1942, 2147483648
    %v1955 = vor.u32 1.1754944e-38, %v1954
    %v1956 = vsel %vm1953, %v1955, %v1951
    %v1957 = vmul.f32 1.0, %v1956
    %v1958 = vtanh.pop %v1936
    %v1959 = vmul.f32 %v1957, %v1843
    %1961 = vrot.lane.b32.xlu0 %v1958, 32
    %v1962 = vpop.permute.xlu0 %1961
    %v1964 = vmul.f32 %v1957, %v1962
    %1966 = vrot.lane.b32.xlu0 %v1964, 32
    %v1967 = vpop.permute.xlu0 %1966
    %v1969 = vadd.f32 %v1959, %v1967
    %v1970 = vtanh.pop %v1969
    %1972 = vrot.lane.b32.xlu0 %v1970, 32
    %v1973 = vpop.permute.xlu0 %1972
    %v1975 = vmul.f32 %v1957, %v1973
    %1977 = vrot.lane.b32.xlu0 %v1975, 64
    %v1978 = vpop.permute.xlu0 %1977
    %1980 = vrot.lane.b32.xlu0 %v1911, 96
    %v1981 = vpop.permute.xlu0 %1980
    %v1983 = vsel %vm236, %v1978, %v1981
    %v1984 = vpack.c.bf16 %v1983, %v1983
    %v1986 = vsel %vm321, %v1984, 0
    %1988 = vmatpush.bf16.msra.mxu0 0
    %1989 = vmatpush.bf16.msra.mxu0 0
    %1990 = vmatpush.bf16.msra.mxu0 0
    %1991 = vmatpush.bf16.msra.mxu0 0
    %1992 = vmatpush.bf16.msra.mxu0 %v1351
    %1993 = vmatpush.bf16.msra.mxu0 %v1350
    %1994 = vmatpush.bf16.msra.mxu0 %v1349
    %1995 = vmatpush.bf16.msra.mxu0 %v1348
    %1996 = vmatmul.bf16.gmra.mxu0 %v1986
    %v1997 = vpop.f32.mrf.mxu0
    %v1998 = vadd.f32 %v115, %v1997
    %v1999 = vpop.f32.mrf.mxu0
    %2000 = vdwg.mxu0
    %v2001 = vxor.u32 %v1998, 2147483648
    %v2002 = vmul.f32 %v2001, 1.442695
    %v2003 = vpow.pop %v2002
    %v2004 = vadd.f32 %v2003, 1.0
    %v2005 = vrcp.pop %v2004
    %v2006 = vmul.f32 %v2004, %v2005
    %v2007 = vsub.f32 1.0, %v2006
    %v2008 = vmul.f32 %v2005, %v2007
    %v2009 = vadd.f32 %v2005, %v2008
    %vm2010 = vweird.f32 %v2004
    %vm2011 = vweird.f32 %v2005
    %vm2012 = vmor %vm2010, %vm2011
    %v2013 = vsel %vm2012, %v2005, %v2009
    %v2014 = vand.u32 2147483647, %v2004
    %vm2015 = vcmp.eq.f32.partialorder %v2014, 8.507059e+37
    %v2016 = vand.u32 %v2004, 2147483648
    %v2017 = vor.u32 1.1754944e-38, %v2016
    %v2018 = vsel %vm2015, %v2017, %v2013
    %v2019 = vmul.f32 1.0, %v2018
    %v2020 = vtanh.pop %v1998
    %v2021 = vmul.f32 %v2019, %v1905
    %2023 = vrot.lane.b32.xlu0 %v2020, 32
    %v2024 = vpop.permute.xlu0 %2023
    %v2026 = vmul.f32 %v2019, %v2024
    %2028 = vrot.lane.b32.xlu0 %v2026, 32
    %v2029 = vpop.permute.xlu0 %2028
    %v2031 = vadd.f32 %v2021, %v2029
    %v2032 = vtanh.pop %v2031
    %2034 = vrot.lane.b32.xlu0 %v2032, 32
    %v2035 = vpop.permute.xlu0 %2034
    %v2037 = vmul.f32 %v2019, %v2035
    %2039 = vrot.lane.b32.xlu0 %v2037, 64
    %v2040 = vpop.permute.xlu0 %2039
    %s2042 = scalar_lea.vmem [#allocation3], 40
    %2043 = vst.msk [vmem:[%s2042] sm:$0xff] %vm236, %v2040
    %2044 = vrot.lane.b32.xlu0 %v1975, 96
    %v2045 = vpop.permute.xlu0 %2044
    %v2047 = vsel %vm236, %v2040, %v2045
    %v2048 = vpack.c.bf16 %v2047, %v2047
    %v2050 = vsel %vm321, %v2048, 0
    %2052 = vmatpush.bf16.msra.mxu0 0
    %2053 = vmatpush.bf16.msra.mxu0 0
    %2054 = vmatpush.bf16.msra.mxu0 0
    %2055 = vmatpush.bf16.msra.mxu0 0
    %2056 = vmatpush.bf16.msra.mxu0 %v1264
    %2057 = vmatpush.bf16.msra.mxu0 %v1263
    %2058 = vmatpush.bf16.msra.mxu0 %v1262
    %2059 = vmatpush.bf16.msra.mxu0 %v1261
    %2060 = vmatmul.bf16.gmra.mxu0 %v2050
    %v2061 = vpop.f32.mrf.mxu0
    %v2062 = vadd.f32 %v111, %v2061
    %v2063 = vpop.f32.mrf.mxu0
    %2064 = vdwg.mxu0
    %v2065 = vxor.u32 %v2062, 2147483648
    %v2066 = vmul.f32 %v2065, 1.442695
    %v2067 = vpow.pop %v2066
    %v2068 = vadd.f32 %v2067, 1.0
    %v2069 = vrcp.pop %v2068
    %v2070 = vmul.f32 %v2068, %v2069
    %v2071 = vsub.f32 1.0, %v2070
    %v2072 = vmul.f32 %v2069, %v2071
    %v2073 = vadd.f32 %v2069, %v2072
    %vm2074 = vweird.f32 %v2068
    %vm2075 = vweird.f32 %v2069
    %vm2076 = vmor %vm2074, %vm2075
    %v2077 = vsel %vm2076, %v2069, %v2073
    %v2078 = vand.u32 2147483647, %v2068
    %vm2079 = vcmp.eq.f32.partialorder %v2078, 8.507059e+37
    %v2080 = vand.u32 %v2068, 2147483648
    %v2081 = vor.u32 1.1754944e-38, %v2080
    %v2082 = vsel %vm2079, %v2081, %v2077
    %v2083 = vmul.f32 1.0, %v2082
    %v2084 = vtanh.pop %v2062
    %v2085 = vmul.f32 %v2083, %v1969
    %2087 = vrot.lane.b32.xlu0 %v2084, 32
    %v2088 = vpop.permute.xlu0 %2087
    %v2090 = vmul.f32 %v2083, %v2088
    %2092 = vrot.lane.b32.xlu0 %v2090, 32
    %v2093 = vpop.permute.xlu0 %2092
    %v2095 = vadd.f32 %v2085, %v2093
    %v2096 = vtanh.pop %v2095
    %2098 = vrot.lane.b32.xlu0 %v2096, 32
    %v2099 = vpop.permute.xlu0 %2098
    %v2101 = vmul.f32 %v2083, %v2099
    %2103 = vrot.lane.b32.xlu0 %v2101, 64
    %v2104 = vpop.permute.xlu0 %2103
    %2106 = vrot.lane.b32.xlu0 %v2037, 96
    %v2107 = vpop.permute.xlu0 %2106
    %v2109 = vsel %vm236, %v2104, %v2107
    %v2110 = vpack.c.bf16 %v2109, %v2109
    %v2112 = vsel %vm321, %v2110, 0
    %2114 = vmatpush.bf16.msra.mxu0 0
    %2115 = vmatpush.bf16.msra.mxu0 0
    %2116 = vmatpush.bf16.msra.mxu0 0
    %2117 = vmatpush.bf16.msra.mxu0 0
    %2118 = vmatpush.bf16.msra.mxu0 %v1351
    %2119 = vmatpush.bf16.msra.mxu0 %v1350
    %2120 = vmatpush.bf16.msra.mxu0 %v1349
    %2121 = vmatpush.bf16.msra.mxu0 %v1348
    %2122 = vmatmul.bf16.gmra.mxu0 %v2112
    %v2123 = vpop.f32.mrf.mxu0
    %v2124 = vadd.f32 %v115, %v2123
    %v2125 = vpop.f32.mrf.mxu0
    %2126 = vdwg.mxu0
    %v2127 = vxor.u32 %v2124, 2147483648
    %v2128 = vmul.f32 %v2127, 1.442695
    %v2129 = vpow.pop %v2128
    %v2130 = vadd.f32 %v2129, 1.0
    %v2131 = vrcp.pop %v2130
    %v2132 = vmul.f32 %v2130, %v2131
    %v2133 = vsub.f32 1.0, %v2132
    %v2134 = vmul.f32 %v2131, %v2133
    %v2135 = vadd.f32 %v2131, %v2134
    %vm2136 = vweird.f32 %v2130
    %vm2137 = vweird.f32 %v2131
    %vm2138 = vmor %vm2136, %vm2137
    %v2139 = vsel %vm2138, %v2131, %v2135
    %v2140 = vand.u32 2147483647, %v2130
    %vm2141 = vcmp.eq.f32.partialorder %v2140, 8.507059e+37
    %v2142 = vand.u32 %v2130, 2147483648
    %v2143 = vor.u32 1.1754944e-38, %v2142
    %v2144 = vsel %vm2141, %v2143, %v2139
    %v2145 = vmul.f32 1.0, %v2144
    %v2146 = vtanh.pop %v2124
    %v2147 = vmul.f32 %v2145, %v2031
    %2149 = vrot.lane.b32.xlu0 %v2146, 32
    %v2150 = vpop.permute.xlu0 %2149
    %v2152 = vmul.f32 %v2145, %v2150
    %2154 = vrot.lane.b32.xlu0 %v2152, 32
    %v2155 = vpop.permute.xlu0 %2154
    %v2157 = vadd.f32 %v2147, %v2155
    %v2158 = vtanh.pop %v2157
    %2160 = vrot.lane.b32.xlu0 %v2158, 32
    %v2161 = vpop.permute.xlu0 %2160
    %v2163 = vmul.f32 %v2145, %v2161
    %2165 = vrot.lane.b32.xlu0 %v2163, 64
    %v2166 = vpop.permute.xlu0 %2165
    %s2168 = scalar_lea.vmem [#allocation3], 48
    %2169 = vst.msk [vmem:[%s2168] sm:$0xff] %vm236, %v2166
    %2170 = vrot.lane.b32.xlu0 %v2101, 96
    %v2171 = vpop.permute.xlu0 %2170
    %v2173 = vsel %vm236, %v2166, %v2171
    %v2174 = vpack.c.bf16 %v2173, %v2173
    %v2176 = vsel %vm321, %v2174, 0
    %2178 = vmatpush.bf16.msra.mxu0 0
    %2179 = vmatpush.bf16.msra.mxu0 0
    %2180 = vmatpush.bf16.msra.mxu0 0
    %2181 = vmatpush.bf16.msra.mxu0 0
    %2182 = vmatpush.bf16.msra.mxu0 %v1264
    %2183 = vmatpush.bf16.msra.mxu0 %v1263
    %2184 = vmatpush.bf16.msra.mxu0 %v1262
    %2185 = vmatpush.bf16.msra.mxu0 %v1261
    %2186 = vmatmul.bf16.gmra.mxu0 %v2176
    %v2187 = vpop.f32.mrf.mxu0
    %v2188 = vadd.f32 %v111, %v2187
    %v2189 = vpop.f32.mrf.mxu0
    %2190 = vdwg.mxu0
    %v2191 = vxor.u32 %v2188, 2147483648
    %v2192 = vmul.f32 %v2191, 1.442695
    %v2193 = vpow.pop %v2192
    %v2194 = vadd.f32 %v2193, 1.0
    %v2195 = vrcp.pop %v2194
    %v2196 = vmul.f32 %v2194, %v2195
    %v2197 = vsub.f32 1.0, %v2196
    %v2198 = vmul.f32 %v2195, %v2197
    %v2199 = vadd.f32 %v2195, %v2198
    %vm2200 = vweird.f32 %v2194
    %vm2201 = vweird.f32 %v2195
    %vm2202 = vmor %vm2200, %vm2201
    %v2203 = vsel %vm2202, %v2195, %v2199
    %v2204 = vand.u32 2147483647, %v2194
    %vm2205 = vcmp.eq.f32.partialorder %v2204, 8.507059e+37
    %v2206 = vand.u32 %v2194, 2147483648
    %v2207 = vor.u32 1.1754944e-38, %v2206
    %v2208 = vsel %vm2205, %v2207, %v2203
    %v2209 = vmul.f32 1.0, %v2208
    %v2210 = vtanh.pop %v2188
    %v2211 = vmul.f32 %v2209, %v2095
    %2213 = vrot.lane.b32.xlu0 %v2210, 32
    %v2214 = vpop.permute.xlu0 %2213
    %v2216 = vmul.f32 %v2209, %v2214
    %2218 = vrot.lane.b32.xlu0 %v2216, 32
    %v2219 = vpop.permute.xlu0 %2218
    %v2221 = vadd.f32 %v2211, %v2219
    %v2222 = vtanh.pop %v2221
    %2224 = vrot.lane.b32.xlu0 %v2222, 32
    %v2225 = vpop.permute.xlu0 %2224
    %v2227 = vmul.f32 %v2209, %v2225
    %2229 = vrot.lane.b32.xlu0 %v2227, 64
    %v2230 = vpop.permute.xlu0 %2229
    %2232 = vrot.lane.b32.xlu0 %v2163, 96
    %v2233 = vpop.permute.xlu0 %2232
    %v2235 = vsel %vm236, %v2230, %v2233
    %v2236 = vpack.c.bf16 %v2235, %v2235
    %v2238 = vsel %vm321, %v2236, 0
    %2240 = vmatpush.bf16.msra.mxu0 0
    %2241 = vmatpush.bf16.msra.mxu0 0
    %2242 = vmatpush.bf16.msra.mxu0 0
    %2243 = vmatpush.bf16.msra.mxu0 0
    %2244 = vmatpush.bf16.msra.mxu0 %v1351
    %2245 = vmatpush.bf16.msra.mxu0 %v1350
    %2246 = vmatpush.bf16.msra.mxu0 %v1349
    %2247 = vmatpush.bf16.msra.mxu0 %v1348
    %2248 = vmatmul.bf16.gmra.mxu0 %v2238
    %v2249 = vpop.f32.mrf.mxu0
    %v2250 = vadd.f32 %v115, %v2249
    %v2251 = vpop.f32.mrf.mxu0
    %2252 = vdwg.mxu0
    %v2253 = vxor.u32 %v2250, 2147483648
    %v2254 = vmul.f32 %v2253, 1.442695
    %v2255 = vpow.pop %v2254
    %v2256 = vadd.f32 %v2255, 1.0
    %v2257 = vrcp.pop %v2256
    %v2258 = vmul.f32 %v2256, %v2257
    %v2259 = vsub.f32 1.0, %v2258
    %v2260 = vmul.f32 %v2257, %v2259
    %v2261 = vadd.f32 %v2257, %v2260
    %vm2262 = vweird.f32 %v2256
    %vm2263 = vweird.f32 %v2257
    %vm2264 = vmor %vm2262, %vm2263
    %v2265 = vsel %vm2264, %v2257, %v2261
    %v2266 = vand.u32 2147483647, %v2256
    %vm2267 = vcmp.eq.f32.partialorder %v2266, 8.507059e+37
    %v2268 = vand.u32 %v2256, 2147483648
    %v2269 = vor.u32 1.1754944e-38, %v2268
    %v2270 = vsel %vm2267, %v2269, %v2265
    %v2271 = vmul.f32 1.0, %v2270
    %v2272 = vtanh.pop %v2250
    %v2273 = vmul.f32 %v2271, %v2157
    %2275 = vrot.lane.b32.xlu0 %v2272, 32
    %v2276 = vpop.permute.xlu0 %2275
    %v2278 = vmul.f32 %v2271, %v2276
    %2280 = vrot.lane.b32.xlu0 %v2278, 32
    %v2281 = vpop.permute.xlu0 %2280
    %v2283 = vadd.f32 %v2273, %v2281
    %v2284 = vtanh.pop %v2283
    %2286 = vrot.lane.b32.xlu0 %v2284, 32
    %v2287 = vpop.permute.xlu0 %2286
    %v2289 = vmul.f32 %v2271, %v2287
    %2291 = vrot.lane.b32.xlu0 %v2289, 64
    %v2292 = vpop.permute.xlu0 %2291
    %s2294 = scalar_lea.vmem [#allocation3], 56
    %2295 = vst.msk [vmem:[%s2294] sm:$0xff] %vm236, %v2292
    %v2296 = vld [vmem:[#allocation3] sm:$0xff]
    %v2297 = vld [vmem:[#allocation3 + $0x8] sm:$0xff]
    %v2298 = vld [vmem:[#allocation3 + $0x10] sm:$0xff]
    %v2299 = vld [vmem:[#allocation3 + $0x18] sm:$0xff]
    %v2300 = vld [vmem:[#allocation3 + $0x20] sm:$0xff]
    %v2301 = vld [vmem:[#allocation3 + $0x28] sm:$0xff]
    %v2302 = vld [vmem:[#allocation3 + $0x30] sm:$0xff]
    %v2303 = vld [vmem:[#allocation3 + $0x38] sm:$0xff]
    %v2304 = vld [vmem:[%s11] sm:$0xff]
    %v2305 = vld [vmem:[%s11 + $0x8] sm:$0xff]
    %v2306 = vld [vmem:[%s11 + $0x10] sm:$0xff]
    %v2307 = vld [vmem:[%s11 + $0x18] sm:$0xff]
    %v2308 = vld [vmem:[%s12] sm:$0x1]
    %v2310 = vperm.slane %v2308, 0
    %v2313 = vsel %vm236, %v2296, 0
    %v2316 = vsel %vm236, %v2297, 0
    %v2319 = vsel %vm236, %v2298, 0
    %v2322 = vsel %vm236, %v2299, 0
    %v2325 = vsel %vm236, %v2300, 0
    %v2328 = vsel %vm236, %v2301, 0
    %v2331 = vsel %vm236, %v2302, 0
    %v2334 = vsel %vm236, %v2303, 0
    %2336 = vmatpush.msra.mxu0 0.0
    %2337 = vmatpush.msra.mxu0 0.0
    %2338 = vmatpush.msra.mxu0 0.0
    %2339 = vmatpush.msra.mxu0 0.0
    %2340 = vmatpush.msra.mxu0 0.0
    %2341 = vmatpush.msra.mxu0 0.0
    %2342 = vmatpush.msra.mxu0 0.0
    %2343 = vmatpush.msra.mxu0 0.0
    %2344 = vmatpush.msra.mxu0 0.0
    %2345 = vmatpush.msra.mxu0 0.0
    %2346 = vmatpush.msra.mxu0 0.0
    %2347 = vmatpush.msra.mxu0 0.0
    %2348 = vmatpush.msra.mxu0 %v2307
    %2349 = vmatpush.msra.mxu0 %v2306
    %2350 = vmatpush.msra.mxu0 %v2305
    %2351 = vmatpush.msra.mxu0 %v2304
    %2352 = vmatmul.f32.gmra.mxu0 %v2313
    %v2353 = vpop.f32.mrf.mxu0
    %v2354 = vadd.f32 %v2310, %v2353
    %2355 = vmatmul.f32.gmra.mxu0 %v2316
    %v2356 = vpop.f32.mrf.mxu0
    %v2357 = vadd.f32 %v2310, %v2356
    %2358 = vmatmul.f32.gmra.mxu0 %v2319
    %v2359 = vpop.f32.mrf.mxu0
    %v2360 = vadd.f32 %v2310, %v2359
    %2361 = vmatmul.f32.gmra.mxu0 %v2322
    %v2362 = vpop.f32.mrf.mxu0
    %v2363 = vadd.f32 %v2310, %v2362
    %2364 = vmatmul.f32.gmra.mxu0 %v2325
    %v2365 = vpop.f32.mrf.mxu0
    %v2366 = vadd.f32 %v2310, %v2365
    %2367 = vmatmul.f32.gmra.mxu0 %v2328
    %v2368 = vpop.f32.mrf.mxu0
    %v2369 = vadd.f32 %v2310, %v2368
    %2370 = vmatmul.f32.gmra.mxu0 %v2331
    %v2371 = vpop.f32.mrf.mxu0
    %v2372 = vadd.f32 %v2310, %v2371
    %2373 = vmatmul.f32.gmra.mxu0 %v2334
    %v2374 = vpop.f32.mrf.mxu0
    %v2375 = vadd.f32 %v2310, %v2374
    %2376 = vdwg.mxu0
    %vm2377 = vcmask 15360
    %2378 = vst.msk [vmem:[%s13] sm:$0xff] %vm2377, %v2354
    %2379 = vst.msk [vmem:[%s13 + $0x8] sm:$0xff] %vm2377, %v2357
    %2380 = vst.msk [vmem:[%s13 + $0x10] sm:$0xff] %vm2377, %v2360
    %2381 = vst.msk [vmem:[%s13 + $0x18] sm:$0xff] %vm2377, %v2363
    %2382 = vst.msk [vmem:[%s13 + $0x20] sm:$0xff] %vm2377, %v2366
    %2383 = vst.msk [vmem:[%s13 + $0x28] sm:$0xff] %vm2377, %v2369
    %2384 = vst.msk [vmem:[%s13 + $0x30] sm:$0xff] %vm2377, %v2372
    %2385 = vst.msk [vmem:[%s13 + $0x38] sm:$0xff] %vm2377, %v2375
    // Predicated region
    $region62: #{tpu_custom_call.1} parent=1 // pred_check
      _
    $region63: #{tpu_custom_call.1} parent=1 // pred_check_branch
      %2387 = sbr.rel (0) target = $region65
    $region64: #{tpu_custom_call.1} parent=1 // pred_region
      _
    $region65: #{tpu_custom_call.1} parent=1 // pred_fallthru
      _
    // Predicated region
    $region66: #{tpu_custom_call.1} parent=1 // pred_check
      _
    $region67: #{tpu_custom_call.1} parent=1 // pred_check_branch
      %2389 = sbr.rel (0) target = $region69
    $region68: #{tpu_custom_call.1} parent=1 // pred_region
      _
    $region69: #{tpu_custom_call.1} parent=1 // pred_fallthru
      _
    %2390 = vsyncpa [#allocation5], 1
    %2391 = vsyncpa [#allocation7], 1

</llo_original>
